<compile_context>
chip_gen: v7x
topology: tpu7x:2x2x1
jax: 0.10.0
libtpu: 0.0.40
codegen_flags: <defaults>
</compile_context>

<pallas_src>
import functools

import jax
import jax.numpy as jnp
from jax.experimental import pallas as pl
from jax.experimental.pallas import tpu as pltpu


# ---------------------------------------------------------------------------
# Fused kernel: per-point MLP (3->64->1024) + global max-pool over points
#               + fused head relu(fc3) -> tanh(fc4), all feature-major (NCW).
# ---------------------------------------------------------------------------
def _tnet_kernel(feat_chunk,
                 x_ref, w1t_ref, b1t_ref, w2t_ref, b2t_ref,
                 w3t_ref, b3t_ref, w4t_ref, b4t_ref,
                 out_ref, acc_ref):
    nk = pl.program_id(1)

    # ---- init lane-dense running max over points ---------------------------
    @pl.when(nk == 0)
    def _():
        acc_ref[...] = jnp.full(acc_ref.shape, -jnp.inf, acc_ref.dtype)

    # ---- fc1 (3 -> 64): three VPU FMAs (a K=3 MXU matmul is ~all padding) --
    x = x_ref[0]                                      # (3, TN), points on lanes
    w1t = w1t_ref[...]                                # (64, 3) f32
    h1 = (w1t[:, 0:1] * x[0:1, :]
          + w1t[:, 1:2] * x[1:2, :]
          + w1t[:, 2:3] * x[2:3, :]
          + b1t_ref[...])                             # (64, TN) f32
    h1 = jnp.maximum(h1, 0.0).astype(jnp.bfloat16)    # relu(fc1), bf16 for MXU

    tn = x.shape[1]                                   # static tile width (128k)

    # ---- fc2 (64 -> 1024) on the MXU, chunked along the 1024-feature axis ---
    # Each chunk's max is folded into the accumulator via VPU elementwise max
    # over static 128-lane slices (no XLU reduce, no full-tile f32 spill).
    for f0 in range(0, 1024, feat_chunk):
        w2c = w2t_ref[f0:f0 + feat_chunk, :]          # (FC, 64) bf16
        h2c = jnp.dot(w2c, h1,
                      preferred_element_type=jnp.float32)   # (FC, TN) f32
        m = acc_ref[f0:f0 + feat_chunk, :]            # (FC, 128) f32
        for k in range(0, tn, 128):
            m = jnp.maximum(m, h2c[:, k:k + 128])
        acc_ref[f0:f0 + feat_chunk, :] = m

    # ---- epilogue: cross-lane max + fused head, once per batch element -----
    @pl.when(nk == pl.num_programs(1) - 1)
    def _():
        pooled = jnp.max(acc_ref[...], axis=1, keepdims=True) + b2t_ref[...]
        h3 = jnp.dot(w3t_ref[...], pooled.astype(jnp.bfloat16),
                     preferred_element_type=jnp.float32) + b3t_ref[...]
        h3 = jnp.maximum(h3, 0.0)                                   # (256, 1)
        o9 = jnp.tanh(jnp.dot(w4t_ref[...], h3,
                              preferred_element_type=jnp.float32)
                      + b4t_ref[...])                               # (9, 1)
        out_ref[0] = o9


def t_net_forward(x, params, *, tile_n=1024):
    """x: (B, 3, N) float32 -- same NCW layout as the PyTorch module."""
    B, C, N = x.shape
    assert C == 3
    w1, b1, w2, b2, w3, b3, w4, b4 = params

    x = x.astype(jnp.float32)
    # Pre-transpose weights to the feature-major ("NCW-native") orientation so
    # the kernel never needs a (B,3,N)->(B,N,3) transpose pass over x.
    w1t = jnp.asarray(w1, jnp.float32).T                        # (64, 3)
    b1t = jnp.asarray(b1, jnp.float32).reshape(64, 1)
    w2t = jnp.asarray(w2, jnp.float32).T.astype(jnp.bfloat16)   # (1024, 64)
    b2t = jnp.asarray(b2, jnp.float32).reshape(1024, 1)
    w3t = jnp.asarray(w3, jnp.float32).T.astype(jnp.bfloat16)   # (256, 1024)
    b3t = jnp.asarray(b3, jnp.float32).reshape(256, 1)
    w4t = jnp.asarray(w4, jnp.float32).T                        # (9, 256)
    b4t = jnp.asarray(b4, jnp.float32).reshape(9, 1)

    # ---- point-axis tiling: tn is always a multiple of 128 ------------------
    n_pad = ((N + 127) // 128) * 128
    if n_pad <= tile_n:
        tn = n_pad
    else:
        tn = (max(tile_n, 128) // 128) * 128
        n_pad = ((N + tn - 1) // tn) * tn

    # Pad the point axis by repeating an existing point: duplicates cannot
    # change a global max-pool, so no in-kernel mask is needed (exact result).
    if n_pad != N:
        pad = jnp.broadcast_to(x[:, :, :1], (B, C, n_pad - N))
        x = jnp.concatenate([x, pad], axis=-1)
    num_nt = n_pad // tn

    # Feature chunk chosen so the live f32 fc2 chunk stays ~<=128 vregs.
    feat_chunk = 256 if tn <= 512 else 128

    kernel = functools.partial(_tnet_kernel, feat_chunk)
    const = lambda b, nk: (0, 0)

    nine = pl.pallas_call(
        kernel,
        out_shape=jax.ShapeDtypeStruct((B, 9, 1), jnp.float32),
        grid_spec=pltpu.PrefetchScalarGridSpec(
            num_scalar_prefetch=0,
            grid=(B, num_nt),
            in_specs=[
                pl.BlockSpec((1, 3, tn), lambda b, nk: (b, 0, nk)),  # x tile
                pl.BlockSpec((64, 3), const),      # w1^T
                pl.BlockSpec((64, 1), const),      # b1
                pl.BlockSpec((1024, 64), const),   # w2^T (bf16)
                pl.BlockSpec((1024, 1), const),    # b2
                pl.BlockSpec((256, 1024), const),  # w3^T (bf16)
                pl.BlockSpec((256, 1), const),     # b3
                pl.BlockSpec((9, 256), const),     # w4^T
                pl.BlockSpec((9, 1), const),       # b4
            ],
            out_specs=pl.BlockSpec((1, 9, 1), lambda b, nk: (b, 0, 0)),
            scratch_shapes=[pltpu.VMEM((1024, 128), jnp.float32)],  # lane-dense max
        ),
        compiler_params=pltpu.CompilerParams(
            dimension_semantics=("parallel", "arbitrary"),
            vmem_limit_bytes=32 * 1024 * 1024),
    )(x, w1t, b1t, w2t, b2t, w3t, b3t, w4t, b4t)

    # --- glue: reshape, regularize, QR --------------------------------------
    mat = nine[..., 0].reshape(B, 3, 3)
    mat_reg = mat + 1e-6 * jnp.eye(3, dtype=jnp.float32)
    # TODO(synk): 3x3 QR factorization has no Pallas primitive; done with jnp.linalg.qr.
    q, r = jnp.linalg.qr(mat_reg)
    return q, r


def t_net_reference(x, params):
    """Pure-JAX f32 reference (matches the PyTorch forward)."""
    w1, b1, w2, b2, w3, b3, w4, b4 = params
    xt = jnp.swapaxes(x.astype(jnp.float32), 1, 2)      # (B, N, 3)
    h1 = jax.nn.relu(xt @ w1 + b1)
    h2 = h1 @ w2 + b2
    g = jnp.max(h2, axis=1)                             # global max over points
    h3 = jax.nn.relu(g @ w3 + b3)
    o = jnp.tanh(h3 @ w4 + b4).reshape(-1, 3, 3)
    o = o + 1e-6 * jnp.eye(3, dtype=jnp.float32)
    return jnp.linalg.qr(o)


def init_params(key):
    """Deterministic init matching the nn.Linear shapes in T_net.__init__."""
    def linear(k, fan_in, fan_out):
        kw, kb = jax.random.split(k)
        bound = 1.0 / jnp.sqrt(fan_in)
        w = jax.random.uniform(kw, (fan_in, fan_out), jnp.float32, -bound, bound)
        b = jax.random.uniform(kb, (fan_out,), jnp.float32, -bound, bound)
        return w, b

    k1, k2, k3, k4 = jax.random.split(key, 4)
    w1, b1 = linear(k1, 3, 64)       # fc1
    w2, b2 = linear(k2, 64, 1024)    # fc2
    w3, b3 = linear(k3, 1024, 256)   # fc3
    w4, b4 = linear(k4, 256, 9)      # fc4
    return (w1, b1, w2, b2, w3, b3, w4, b4)


if __name__ == "__main__":
    key = jax.random.PRNGKey(0)
    kx, kp = jax.random.split(key)

    B, N = 2, 64                      # small: batch=2, 64 points, 3 coords
    x = jax.random.normal(kx, (B, 3, N), dtype=jnp.float32)
    params = init_params(kp)

    q, r = jax.jit(t_net_forward)(x, params)
    jax.block_until_ready((q, r))
    assert q.shape == (B, 3, 3) and r.shape == (B, 3, 3)

    # Sanity: compare the regularized matrix (q@r) against the f32 reference
    # (loose tol: fc2/fc3 run with bf16 inputs on the MXU) and check Q orthogonality.
    q_ref, r_ref = t_net_reference(x, params)
    err = float(jnp.max(jnp.abs(q @ r - q_ref @ r_ref)))
    assert err < 0.1, f"mismatch vs reference: {err}"
    ortho = float(jnp.max(jnp.abs(q @ jnp.swapaxes(q, 1, 2) - jnp.eye(3))))
    assert ortho < 1e-4, f"Q not orthogonal: {ortho}"

    # Multi-tile + padded path: N=300 with a small tile forces 3 point tiles
    # and non-trivial wrapper padding (duplicated-point padding must be exact).
    x2 = jax.random.normal(jax.random.PRNGKey(1), (B, 3, 300), dtype=jnp.float32)
    q2, r2 = jax.jit(functools.partial(t_net_forward, tile_n=128))(x2, params)
    jax.block_until_ready((q2, r2))
    q2_ref, r2_ref = t_net_reference(x2, params)
    err2 = float(jnp.max(jnp.abs(q2 @ r2 - q2_ref @ r2_ref)))
    assert err2 < 0.1, f"multi-tile mismatch vs reference: {err2}"

    print("KERNEL_OK")
</pallas_src>

<mosaic_0001>
module attributes {stable_mosaic.version = 11 : i64} {
  func.func @_tnet_kernel(%arg0: i32, %arg1: i32, %arg2: memref<1x3x128xf32, #tpu.memory_space<vmem>>, %arg3: memref<64x3xf32, #tpu.memory_space<vmem>>, %arg4: memref<64x1xf32, #tpu.memory_space<vmem>>, %arg5: memref<1024x64xbf16, #tpu.memory_space<vmem>>, %arg6: memref<1024x1xf32, #tpu.memory_space<vmem>>, %arg7: memref<256x1024xbf16, #tpu.memory_space<vmem>>, %arg8: memref<256x1xf32, #tpu.memory_space<vmem>>, %arg9: memref<9x256xf32, #tpu.memory_space<vmem>>, %arg10: memref<9x1xf32, #tpu.memory_space<vmem>>, %arg11: memref<1x9x1xf32, #tpu.memory_space<vmem>>, %arg12: memref<1024x128xf32, #tpu.memory_space<vmem>>) attributes {dimension_semantics = [#tpu.dimension_semantics<parallel>, #tpu.dimension_semantics<arbitrary>], iteration_bounds = array<i64: 2, 1>, scalar_prefetch = 0 : i64, scratch_operands = 1 : i64, tpu.core_type = #tpu.core_type<tc>, window_params = [{transform_indices = @transform_0, window_bounds = array<i64: 1, 3, 128>}, {pipeline_mode = #tpu.pipeline_mode<synchronous>, transform_indices = @transform_1, window_bounds = array<i64: 64, 3>}, {pipeline_mode = #tpu.pipeline_mode<synchronous>, transform_indices = @transform_2, window_bounds = array<i64: 64, 1>}, {pipeline_mode = #tpu.pipeline_mode<synchronous>, transform_indices = @transform_3, window_bounds = array<i64: 1024, 64>}, {pipeline_mode = #tpu.pipeline_mode<synchronous>, transform_indices = @transform_4, window_bounds = array<i64: 1024, 1>}, {pipeline_mode = #tpu.pipeline_mode<synchronous>, transform_indices = @transform_5, window_bounds = array<i64: 256, 1024>}, {pipeline_mode = #tpu.pipeline_mode<synchronous>, transform_indices = @transform_6, window_bounds = array<i64: 256, 1>}, {pipeline_mode = #tpu.pipeline_mode<synchronous>, transform_indices = @transform_7, window_bounds = array<i64: 9, 256>}, {pipeline_mode = #tpu.pipeline_mode<synchronous>, transform_indices = @transform_8, window_bounds = array<i64: 9, 1>}, {transform_indices = @transform_9, window_bounds = array<i64: 1, 9, 1>}]} {
    %c0_i32 = arith.constant 0 : i32
    %0 = arith.cmpi eq, %arg1, %c0_i32 : i32
    %1 = arith.extui %0 : i1 to i32
    %c0_i32_0 = arith.constant 0 : i32
    %2 = arith.cmpi ne, %1, %c0_i32_0 : i32
    scf.if %2 {
      %cst_34 = arith.constant 0xFF800000 : f32
      %52 = vector.broadcast %cst_34 : f32 to vector<1024x128xf32>
      %c0_35 = arith.constant 0 : index
      %c0_36 = arith.constant 0 : index
      %53 = vector.load %arg12[%c0_35, %c0_36] : memref<1024x128xf32, #tpu.memory_space<vmem>>, vector<1024x128xf32>
      tpu.vector_store %arg12[%c0_35, %c0_36], %52 {strides = array<i32>} : memref<1024x128xf32, #tpu.memory_space<vmem>>, vector<1024x128xf32>,
    } else {
    }
    %c0 = arith.constant 0 : index
    %c0_1 = arith.constant 0 : index
    %c0_2 = arith.constant 0 : index
    %3 = vector.load %arg2[%c0, %c0_1, %c0_2] : memref<1x3x128xf32, #tpu.memory_space<vmem>>, vector<1x3x128xf32>
    %4 = vector.shape_cast %3 : vector<1x3x128xf32> to vector<3x128xf32>
    %c0_3 = arith.constant 0 : index
    %c0_4 = arith.constant 0 : index
    %5 = vector.load %arg3[%c0_3, %c0_4] : memref<64x3xf32, #tpu.memory_space<vmem>>, vector<64x3xf32>
    %6 = vector.extract_strided_slice %5 {offsets = [0, 0], sizes = [64, 1], strides = [1, 1]} : vector<64x3xf32> to vector<64x1xf32>
    %7 = vector.extract_strided_slice %4 {offsets = [0, 0], sizes = [1, 128], strides = [1, 1]} : vector<3x128xf32> to vector<1x128xf32>
    %8 = vector.broadcast %6 : vector<64x1xf32> to vector<64x128xf32>
    %9 = vector.broadcast %7 : vector<1x128xf32> to vector<64x128xf32>
    %10 = arith.mulf %8, %9 : vector<64x128xf32>
    %11 = vector.extract_strided_slice %5 {offsets = [0, 1], sizes = [64, 1], strides = [1, 1]} : vector<64x3xf32> to vector<64x1xf32>
    %12 = vector.extract_strided_slice %4 {offsets = [1, 0], sizes = [1, 128], strides = [1, 1]} : vector<3x128xf32> to vector<1x128xf32>
    %13 = vector.broadcast %11 : vector<64x1xf32> to vector<64x128xf32>
    %14 = vector.broadcast %12 : vector<1x128xf32> to vector<64x128xf32>
    %15 = arith.mulf %13, %14 : vector<64x128xf32>
    %16 = arith.addf %10, %15 : vector<64x128xf32>
    %17 = vector.extract_strided_slice %5 {offsets = [0, 2], sizes = [64, 1], strides = [1, 1]} : vector<64x3xf32> to vector<64x1xf32>
    %18 = vector.extract_strided_slice %4 {offsets = [2, 0], sizes = [1, 128], strides = [1, 1]} : vector<3x128xf32> to vector<1x128xf32>
    %19 = vector.broadcast %17 : vector<64x1xf32> to vector<64x128xf32>
    %20 = vector.broadcast %18 : vector<1x128xf32> to vector<64x128xf32>
    %21 = arith.mulf %19, %20 : vector<64x128xf32>
    %22 = arith.addf %16, %21 : vector<64x128xf32>
    %c0_5 = arith.constant 0 : index
    %c0_6 = arith.constant 0 : index
    %23 = vector.load %arg4[%c0_5, %c0_6] : memref<64x1xf32, #tpu.memory_space<vmem>>, vector<64x1xf32>
    %24 = vector.broadcast %23 : vector<64x1xf32> to vector<64x128xf32>
    %25 = arith.addf %22, %24 : vector<64x128xf32>
    %cst = arith.constant 0.000000e+00 : f32
    %26 = vector.broadcast %cst : f32 to vector<64x128xf32>
    %27 = arith.maximumf %25, %26 : vector<64x128xf32>
    %28 = arith.truncf %27 : vector<64x128xf32> to vector<64x128xbf16>
    %c0_7 = arith.constant 0 : index
    %c0_8 = arith.constant 0 : index
    %29 = vector.load %arg5[%c0_7, %c0_8] : memref<1024x64xbf16, #tpu.memory_space<vmem>>, vector<256x64xbf16>
    %cst_9 = arith.constant dense<0.000000e+00> : vector<256x128xf32>
    %30 = tpu.matmul %29, %28, %cst_9 {dimension_numbers = #tpu.dot_dimension_numbers<[1], [0], [0], [1], [0, 0, 1, 1], [], []>} : vector<256x64xbf16>, vector<64x128xbf16>, vector<256x128xf32> -> vector<256x128xf32>
    %c0_10 = arith.constant 0 : index
    %c0_11 = arith.constant 0 : index
    %31 = vector.load %arg12[%c0_10, %c0_11] : memref<1024x128xf32, #tpu.memory_space<vmem>>, vector<256x128xf32>
    %32 = arith.maximumf %31, %30 : vector<256x128xf32>
    %c0_12 = arith.constant 0 : index
    %c0_13 = arith.constant 0 : index
    %33 = vector.load %arg12[%c0_12, %c0_13] : memref<1024x128xf32, #tpu.memory_space<vmem>>, vector<256x128xf32>
    tpu.vector_store %arg12[%c0_12, %c0_13], %32 {strides = array<i32>} : memref<1024x128xf32, #tpu.memory_space<vmem>>, vector<256x128xf32>,
    %c256 = arith.constant 256 : index
    %c0_14 = arith.constant 0 : index
    %34 = vector.load %arg5[%c256, %c0_14] : memref<1024x64xbf16, #tpu.memory_space<vmem>>, vector<256x64xbf16>
    %cst_15 = arith.constant dense<0.000000e+00> : vector<256x128xf32>
    %35 = tpu.matmul %34, %28, %cst_15 {dimension_numbers = #tpu.dot_dimension_numbers<[1], [0], [0], [1], [0, 0, 1, 1], [], []>} : vector<256x64xbf16>, vector<64x128xbf16>, vector<256x128xf32> -> vector<256x128xf32>
    %c256_16 = arith.constant 256 : index
    %c0_17 = arith.constant 0 : index
    %36 = vector.load %arg12[%c256_16, %c0_17] : memref<1024x128xf32, #tpu.memory_space<vmem>>, vector<256x128xf32>
    %37 = arith.maximumf %36, %35 : vector<256x128xf32>
    %c256_18 = arith.constant 256 : index
    %c0_19 = arith.constant 0 : index
    %38 = vector.load %arg12[%c256_18, %c0_19] : memref<1024x128xf32, #tpu.memory_space<vmem>>, vector<256x128xf32>
    tpu.vector_store %arg12[%c256_18, %c0_19], %37 {strides = array<i32>} : memref<1024x128xf32, #tpu.memory_space<vmem>>, vector<256x128xf32>,
    %c512 = arith.constant 512 : index
    %c0_20 = arith.constant 0 : index
    %39 = vector.load %arg5[%c512, %c0_20] : memref<1024x64xbf16, #tpu.memory_space<vmem>>, vector<256x64xbf16>
    %cst_21 = arith.constant dense<0.000000e+00> : vector<256x128xf32>
    %40 = tpu.matmul %39, %28, %cst_21 {dimension_numbers = #tpu.dot_dimension_numbers<[1], [0], [0], [1], [0, 0, 1, 1], [], []>} : vector<256x64xbf16>, vector<64x128xbf16>, vector<256x128xf32> -> vector<256x128xf32>
    %c512_22 = arith.constant 512 : index
    %c0_23 = arith.constant 0 : index
    %41 = vector.load %arg12[%c512_22, %c0_23] : memref<1024x128xf32, #tpu.memory_space<vmem>>, vector<256x128xf32>
    %42 = arith.maximumf %41, %40 : vector<256x128xf32>
    %c512_24 = arith.constant 512 : index
    %c0_25 = arith.constant 0 : index
    %43 = vector.load %arg12[%c512_24, %c0_25] : memref<1024x128xf32, #tpu.memory_space<vmem>>, vector<256x128xf32>
    tpu.vector_store %arg12[%c512_24, %c0_25], %42 {strides = array<i32>} : memref<1024x128xf32, #tpu.memory_space<vmem>>, vector<256x128xf32>,
    %c768 = arith.constant 768 : index
    %c0_26 = arith.constant 0 : index
    %44 = vector.load %arg5[%c768, %c0_26] : memref<1024x64xbf16, #tpu.memory_space<vmem>>, vector<256x64xbf16>
    %cst_27 = arith.constant dense<0.000000e+00> : vector<256x128xf32>
    %45 = tpu.matmul %44, %28, %cst_27 {dimension_numbers = #tpu.dot_dimension_numbers<[1], [0], [0], [1], [0, 0, 1, 1], [], []>} : vector<256x64xbf16>, vector<64x128xbf16>, vector<256x128xf32> -> vector<256x128xf32>
    %c768_28 = arith.constant 768 : index
    %c0_29 = arith.constant 0 : index
    %46 = vector.load %arg12[%c768_28, %c0_29] : memref<1024x128xf32, #tpu.memory_space<vmem>>, vector<256x128xf32>
    %47 = arith.maximumf %46, %45 : vector<256x128xf32>
    %c768_30 = arith.constant 768 : index
    %c0_31 = arith.constant 0 : index
    %48 = vector.load %arg12[%c768_30, %c0_31] : memref<1024x128xf32, #tpu.memory_space<vmem>>, vector<256x128xf32>
    tpu.vector_store %arg12[%c768_30, %c0_31], %47 {strides = array<i32>} : memref<1024x128xf32, #tpu.memory_space<vmem>>, vector<256x128xf32>,
    %c0_i32_32 = arith.constant 0 : i32
    %49 = arith.cmpi eq, %arg1, %c0_i32_32 : i32
    %50 = arith.extui %49 : i1 to i32
    %c0_i32_33 = arith.constant 0 : i32
    %51 = arith.cmpi ne, %50, %c0_i32_33 : i32
    scf.if %51 {
      %c0_34 = arith.constant 0 : index
      %c0_35 = arith.constant 0 : index
      %52 = vector.load %arg12[%c0_34, %c0_35] : memref<1024x128xf32, #tpu.memory_space<vmem>>, vector<1024x128xf32>
      %cst_36 = arith.constant dense<0xFF800000> : vector<1024xf32>
      %53 = vector.multi_reduction <maximumf>, %52, %cst_36 [1] : vector<1024x128xf32> to vector<1024xf32>
      %54 = vector.shape_cast %53 : vector<1024xf32> to vector<1024x1xf32>
      %c0_37 = arith.constant 0 : index
      %c0_38 = arith.constant 0 : index
      %55 = vector.load %arg6[%c0_37, %c0_38] : memref<1024x1xf32, #tpu.memory_space<vmem>>, vector<1024x1xf32>
      %56 = arith.addf %54, %55 : vector<1024x1xf32>
      %c0_39 = arith.constant 0 : index
      %c0_40 = arith.constant 0 : index
      %57 = vector.load %arg7[%c0_39, %c0_40] : memref<256x1024xbf16, #tpu.memory_space<vmem>>, vector<256x1024xbf16>
      %58 = arith.truncf %56 : vector<1024x1xf32> to vector<1024x1xbf16>
      %cst_41 = arith.constant dense<0.000000e+00> : vector<256x1xf32>
      %59 = tpu.matmul %57, %58, %cst_41 {dimension_numbers = #tpu.dot_dimension_numbers<[1], [0], [0], [1], [0, 0, 1, 1], [], []>} : vector<256x1024xbf16>, vector<1024x1xbf16>, vector<256x1xf32> -> vector<256x1xf32>
      %c0_42 = arith.constant 0 : index
      %c0_43 = arith.constant 0 : index
      %60 = vector.load %arg8[%c0_42, %c0_43] : memref<256x1xf32, #tpu.memory_space<vmem>>, vector<256x1xf32>
      %61 = arith.addf %59, %60 : vector<256x1xf32>
      %cst_44 = arith.constant 0.000000e+00 : f32
      %62 = vector.broadcast %cst_44 : f32 to vector<256x1xf32>
      %63 = arith.maximumf %61, %62 : vector<256x1xf32>
      %c0_45 = arith.constant 0 : index
      %c0_46 = arith.constant 0 : index
      %64 = vector.load %arg9[%c0_45, %c0_46] : memref<9x256xf32, #tpu.memory_space<vmem>>, vector<9x256xf32>
      %cst_47 = arith.constant dense<0.000000e+00> : vector<9x1xf32>
      %65 = tpu.matmul %64, %63, %cst_47 {dimension_numbers = #tpu.dot_dimension_numbers<[1], [0], [0], [1], [0, 0, 1, 1], [], []>} : vector<9x256xf32>, vector<256x1xf32>, vector<9x1xf32> -> vector<9x1xf32>
      %c0_48 = arith.constant 0 : index
      %c0_49 = arith.constant 0 : index
      %66 = vector.load %arg10[%c0_48, %c0_49] : memref<9x1xf32, #tpu.memory_space<vmem>>, vector<9x1xf32>
      %67 = arith.addf %65, %66 : vector<9x1xf32>
      %68 = math.tanh %67 : vector<9x1xf32>
      %c0_50 = arith.constant 0 : index
      %c0_51 = arith.constant 0 : index
      %c0_52 = arith.constant 0 : index
      %69 = vector.load %arg11[%c0_50, %c0_51, %c0_52] : memref<1x9x1xf32, #tpu.memory_space<vmem>>, vector<1x9x1xf32>
      %70 = vector.shape_cast %69 : vector<1x9x1xf32> to vector<9x1xf32>
      %71 = vector.shape_cast %68 : vector<9x1xf32> to vector<1x9x1xf32>
      tpu.vector_store %arg11[%c0_50, %c0_51, %c0_52], %71 {strides = array<i32>} : memref<1x9x1xf32, #tpu.memory_space<vmem>>, vector<1x9x1xf32>,
    } else {
    }
    return
  }
  func.func @transform_0(%arg0: i32, %arg1: i32) -> (i32, i32, i32) {
    %c0_i32 = arith.constant 0 : i32
    %c0_i32_0 = arith.constant 0 : i32
    return %arg0, %c0_i32, %arg1 : i32, i32, i32
  }
  func.func @transform_1(%arg0: i32, %arg1: i32) -> (i32, i32) {
    %c0_i32 = arith.constant 0 : i32
    %c0_i32_0 = arith.constant 0 : i32
    %c0_i32_1 = arith.constant 0 : i32
    return %c0_i32, %c0_i32_0 : i32, i32
  }
  func.func @transform_2(%arg0: i32, %arg1: i32) -> (i32, i32) {
    %c0_i32 = arith.constant 0 : i32
    %c0_i32_0 = arith.constant 0 : i32
    %c0_i32_1 = arith.constant 0 : i32
    return %c0_i32, %c0_i32_0 : i32, i32
  }
  func.func @transform_3(%arg0: i32, %arg1: i32) -> (i32, i32) {
    %c0_i32 = arith.constant 0 : i32
    %c0_i32_0 = arith.constant 0 : i32
    %c0_i32_1 = arith.constant 0 : i32
    return %c0_i32, %c0_i32_0 : i32, i32
  }
  func.func @transform_4(%arg0: i32, %arg1: i32) -> (i32, i32) {
    %c0_i32 = arith.constant 0 : i32
    %c0_i32_0 = arith.constant 0 : i32
    %c0_i32_1 = arith.constant 0 : i32
    return %c0_i32, %c0_i32_0 : i32, i32
  }
  func.func @transform_5(%arg0: i32, %arg1: i32) -> (i32, i32) {
    %c0_i32 = arith.constant 0 : i32
    %c0_i32_0 = arith.constant 0 : i32
    %c0_i32_1 = arith.constant 0 : i32
    return %c0_i32, %c0_i32_0 : i32, i32
  }
  func.func @transform_6(%arg0: i32, %arg1: i32) -> (i32, i32) {
    %c0_i32 = arith.constant 0 : i32
    %c0_i32_0 = arith.constant 0 : i32
    %c0_i32_1 = arith.constant 0 : i32
    return %c0_i32, %c0_i32_0 : i32, i32
  }
  func.func @transform_7(%arg0: i32, %arg1: i32) -> (i32, i32) {
    %c0_i32 = arith.constant 0 : i32
    %c0_i32_0 = arith.constant 0 : i32
    %c0_i32_1 = arith.constant 0 : i32
    return %c0_i32, %c0_i32_0 : i32, i32
  }
  func.func @transform_8(%arg0: i32, %arg1: i32) -> (i32, i32) {
    %c0_i32 = arith.constant 0 : i32
    %c0_i32_0 = arith.constant 0 : i32
    %c0_i32_1 = arith.constant 0 : i32
    return %c0_i32, %c0_i32_0 : i32, i32
  }
  func.func @transform_9(%arg0: i32, %arg1: i32) -> (i32, i32, i32) {
    %c0_i32 = arith.constant 0 : i32
    %c0_i32_0 = arith.constant 0 : i32
    %c0_i32_1 = arith.constant 0 : i32
    return %arg0, %c0_i32, %c0_i32_0 : i32, i32, i32
  }
}

</mosaic_0001>

<llo_original>
// kernel: squeeze.1
$region0: #{squeeze.1}
  %s0 = inlined_call_operand.vmem [shape: f32[2,9], index: 0, kind: input, shape index: {}]
  %s1 = inlined_call_operand.vmem [shape: f32[2,3,3], index: 1, kind: output, shape index: {}]
  $region1: #{squeeze.1} parent=0
    #allocation0 [shape = 'u8[8192]{0}', space=vmem, size = 0x2000, scoped, tag = 'scoped mem for output reshape']
    #allocation1 [shape = 'u8[4096]{0}', space=vmem, size = 0x1000, scoped, tag = 'scoped mem for input reshape']
    %s3 = sshllo.u32 0, 2
    %v4 = vld [vmem:[%s0] sm:%s3]
    %5 = vst [vmem:[#allocation1] sm:%s3] %v4
    %v6 = vld [vmem:[#allocation1] sm:$0x3]
    %vm7 = vcmask 23552
    %8 = vst.msk [vmem:[#allocation0] ss:$8 sm:$0x3] %vm7, %v6
    %v9 = vld [vmem:[#allocation1] sm:$0x3]
    %10 = vrot.lane.b32.xlu0 %v9, 125
    %v11 = vpop.permute.xlu0 %10
    %vm12 = vcmask 23552
    %s13 = scalar_lea.vmem [#allocation0], 1
    %14 = vst.msk [vmem:[%s13] ss:$8 sm:$0x3] %vm12, %v11
    %v15 = vld [vmem:[#allocation1] sm:$0x3]
    %16 = vrot.lane.b32.xlu0 %v15, 122
    %v17 = vpop.permute.xlu0 %16
    %vm18 = vcmask 23552
    %s19 = scalar_lea.vmem [#allocation0], 2
    %20 = vst.msk [vmem:[%s19] ss:$8 sm:$0x3] %vm18, %v17
    %s22 = sshllo.u32 0, 4
    %v24 = vld [vmem:[#allocation0] sm:%s22]
    %s25 = sshllo.u32 0, 4
    %26 = vst [vmem:[%s1] sm:%s25] %v24
    %s27 = scalar_lea.vmem [#allocation0], 8
    %v28 = vld [vmem:[%s27] sm:%s22]
    %s29 = sshllo.u32 0, 4
    %s30 = scalar_lea.vmem %s1, 4
    %31 = vst [vmem:[%s30] sm:%s29] %v28

// kernel: custom-call.6
$region0: #{custom-call.6}
  %s0 = inlined_call_operand.vmem [shape: f32[2,3,3], index: 0, kind: input, shape index: {}]
  %s1 = inlined_call_operand.vmem [shape: f32[2,3,3], index: 1, kind: output, shape index: {0}]
  %s2 = inlined_call_operand.vmem [shape: f32[2,3], index: 2, kind: output, shape index: {1}]
  %3 = xla_tuple %s1, %s2
  $region1: #{custom-call.6} parent=0
    #allocation0 [shape = 'u8[4096]{0}', space=vmem, size = 0x1000, scoped, tag = 'operand span for operand 0']
    #allocation1 [shape = 'u8[4096]{0}', space=vmem, size = 0x1000, scoped, tag = 'packed  for operand 0']
    #allocation2 [shape = 'u8[4096]{0}', space=vmem, size = 0x1000, scoped, tag = 'operand span for operand 1']
    #allocation3 [shape = 'u8[4096]{0}', space=vmem, size = 0x1000, scoped, tag = 'packed  for operand 1']
    #allocation4 [shape = 'u8[4096]{0}', space=vmem, size = 0x1000, scoped, tag = 'operand span for operand 2']
    #allocation5 [shape = 'u8[2048]{0}', space=vmem, size = 0x800, scoped, tag = 'packed  for operand 2']
    loop: start=0, step=1, limit=4
    $region2: #{custom-call.6} parent=1 // loop_pre_header
      _
    $region3: #{custom-call.6} parent=1 // loop_header
      %s5 = sphi 0, %s9
      %p6 = scmp.ge.s32.totalorder %s5, 4
      %s12 = sphi 0, %s31
      %s13 = sphi 0, %s27
      %s14 = sphi 0, %s23
      %s15 = sphi 0, %s12
      %s16 = sphi 0, %s13
      %s17 = sphi 0, %s14
      %s18 = sphi 0, %s15
      %s19 = sphi 0, %s16
      %s20 = sphi 0, %s17
      %s46 = sphi 0, %s48
      %s49 = sphi 0, %s46
      %s50 = sphi 0, %s49
      %s66 = sphi 0, %s50
    $region4: #{custom-call.6} parent=1 // loop_header_branch
      %8 = sbr.rel (%p6) target = $region8
    $region5: #{custom-call.6} parent=1 // loop_body
      %s10 = ssub.s32 %s5, 1
      %s11 = ssub.s32 %s5, 2
      %s21 = sadd.s32 1, %s14
      %p22 = scmp.ge.s32.totalorder %s21, 1
      %s23 = scalar_select %p22, 0, %s21
      %s24 = sadd.s32 1, %s13
      %s25 = scalar_select %p22, %s24, %s13
      %p26 = scmp.ge.s32.totalorder %s25, 1
      %s27 = scalar_select %p26, 0, %s25
      %s28 = sadd.s32 1, %s12
      %s29 = scalar_select %p26, %s28, %s12
      %p30 = scmp.ge.s32.totalorder %s29, 2
      %s31 = scalar_select %p30, 0, %s29
      %p32 = scmp.lt.s32.totalorder %s12, 0
      %s33 = ssub.s32 0, %s12
      %s34 = scalar_select %p32, %s33, %s12
      %s35 = sshrl.u32 %s34, 3
      %s36 = ssub.s32 0, %s35
      %s37 = scalar_select %p32, %s36, %s35
      %p38 = scmp.lt.s32.totalorder %s31, 0
      %s39 = ssub.s32 0, %s31
      %s40 = scalar_select %p38, %s39, %s31
      %s41 = sshrl.u32 %s40, 3
      %s42 = ssub.s32 0, %s41
      %s43 = scalar_select %p38, %s42, %s41
      %s44 = ssub.s32 %s37, %s43
      %p45 = scmp.eq.s32.totalorder %s44, 0
      %s47 = sadd.s32 %s46, 1
      %s48 = scalar_select %p45, %s46, %s47
      %p51 = pneg %p45
      %p52 = scmp.eq.s32.totalorder %s5, 1
      %p53 = por %p51, %p52
      %p54 = scmp.ne.s32.totalorder %s46, %s49
      %p55 = scmp.eq.s32.totalorder %s5, 0
      %p56 = por %p54, %p55
      %p57 = scmp.ne.s32.totalorder %s46, %s49
      %p58 = scmp.eq.s32.totalorder %s10, 1
      %p59 = por %p57, %p58
      %p60 = scmp.ne.s32.totalorder %s49, %s50
      %p61 = scmp.eq.s32.totalorder %s10, 0
      %p62 = por %p60, %p61
      %p63 = scmp.ne.s32.totalorder %s49, %s50
      %p64 = scmp.eq.s32.totalorder %s11, 1
      %p65 = por %p63, %p64
      %p67 = scmp.ne.s32.totalorder %s50, %s66
      %p68 = scmp.eq.s32.totalorder %s11, 0
      %p69 = por %p67, %p68
      %p70 = scmp.le.s32.totalorder 1, %s5
      %p71 = scmp.lt.s32.totalorder %s5, 3
      %p72 = pnand %p70, %p71
      %p73 = pneg %p72
      // Predicated region
      $region9: #{custom-call.6} parent=5 // pred_check
        _
      $region10: #{custom-call.6} parent=5 // pred_check_branch
        %75 = sbr.rel (%p72) target = $region12
      $region11: #{custom-call.6} parent=5 // pred_region
        %s76 = ssub.s32 %s5, 1
      $region12: #{custom-call.6} parent=5 // pred_fallthru
        _
      %p77 = scmp.lt.s32.totalorder %s5, 2
      // Predicated region
      $region13: #{custom-call.6} parent=5 // pred_check
        %p78 = pneg %p77
      $region14: #{custom-call.6} parent=5 // pred_check_branch
        %80 = sbr.rel (%p78) target = $region16
      $region15: #{custom-call.6} parent=5 // pred_region
        %s81 = sand.u32 %s5, 1
        %s82 = sand.u32 %s5, 1
        %s83 = smul.addr %s82, 4
        %s84 = scalar_lea.vmem [#allocation1], %s83
        %s85 = sadd.s32 %s14, %s13
        %s86 = sadd.s32 %s85, %s12
        %s87 = smul.addr %s86, 4
        %s88 = scalar_lea.vmem %s0, %s87
        // Predicated region
        $region17: #{custom-call.6} parent=15 // pred_check
          _
        $region18: #{custom-call.6} parent=15 // pred_check_branch
          %90 = sbr.rel (0) target = $region20
        $region19: #{custom-call.6} parent=15 // pred_region
          // Predicated region
          $region21: #{custom-call.6} parent=19 // pred_check
            _
          $region22: #{custom-call.6} parent=19 // pred_check_branch
            %92 = sbr.rel target = $region24
          $region23: #{custom-call.6} parent=19 // pred_region
            // Predicated region
            $region36: #{custom-call.6} parent=23 // pred_check
              _
            $region37: #{custom-call.6} parent=23 // pred_check_branch
              %107 = sbr.rel (0) target = $region39
            $region38: #{custom-call.6} parent=23 // pred_region
              loop: start=0, step=1, limit=1
              $region40: #{custom-call.6} parent=38 // loop_pre_header
                _
              $region41: #{custom-call.6} parent=38 // loop_header
                %s110 = sphi 0, %s114
                %p111 = scmp.ge.s32.totalorder %s110, 1
                %s115 = sphi %s88, %s88
                %s116 = sphi %s84, %s84
              $region42: #{custom-call.6} parent=38 // loop_header_branch
                %113 = sbr.rel (%p111) target = $region46
              $region43: #{custom-call.6} parent=38 // loop_body
                %v117 = vld [vmem:[%s115] sm:$0xf]
                %118 = vst [vmem:[%s116] sm:$0xf] %v117
              $region44: #{custom-call.6} parent=38 // loop_footer
                %s114 = sadd.s32 1, %s110
              $region45: #{custom-call.6} parent=38 // loop_footer_branch
                %109 = sbr.rel target = $region41
              $region46: #{custom-call.6} parent=38 // loop_exit
                _
            $region39: #{custom-call.6} parent=23 // pred_fallthru
              _
          $region24: #{custom-call.6} parent=19 // pred_fallthru
            _
          // Predicated region
          $region25: #{custom-call.6} parent=19 // pred_check
            _
          $region26: #{custom-call.6} parent=19 // pred_check_branch
            %94 = sbr.rel (0) target = $region28
          $region27: #{custom-call.6} parent=19 // pred_region
            loop: start=0, step=1, limit=1
            $region29: #{custom-call.6} parent=27 // loop_pre_header
              _
            $region30: #{custom-call.6} parent=27 // loop_header
              %s97 = sphi 0, %s101
              %p98 = scmp.ge.s32.totalorder %s97, 1
              %s102 = sphi %s88, %s88
              %s103 = sphi %s84, %s84
            $region31: #{custom-call.6} parent=27 // loop_header_branch
              %100 = sbr.rel (%p98) target = $region35
            $region32: #{custom-call.6} parent=27 // loop_body
              %v104 = vld [vmem:[%s102] sm:$0xf]
              %105 = vst [vmem:[%s103] sm:$0xf] %v104
            $region33: #{custom-call.6} parent=27 // loop_footer
              %s101 = sadd.s32 1, %s97
            $region34: #{custom-call.6} parent=27 // loop_footer_branch
              %96 = sbr.rel target = $region30
            $region35: #{custom-call.6} parent=27 // loop_exit
              _
          $region28: #{custom-call.6} parent=19 // pred_fallthru
            _
        $region20: #{custom-call.6} parent=15 // pred_fallthru
          _
        %119 = vnop
      $region16: #{custom-call.6} parent=5 // pred_fallthru
        _
      %p120 = scmp.le.s32.totalorder 1, %s5
      %p121 = scmp.lt.s32.totalorder %s5, 3
      %p122 = pnand %p120, %p121
      %p123 = pneg %p122
      // Predicated region
      $region47: #{custom-call.6} parent=5 // pred_check
        _
      $region48: #{custom-call.6} parent=5 // pred_check_branch
        %125 = sbr.rel (%p122) target = $region50
      $region49: #{custom-call.6} parent=5 // pred_region
        #allocation6 [shape = 'f32[3,128]{1,0}', space=vmem, size = 0x1000, scoped, tag = 'scratch for Householder reflectors']
        %s126 = ssub.s32 %s5, 1
        %s127 = sand.u32 %s10, 1
        %s128 = sand.u32 %s10, 1
        %s129 = smul.addr %s128, 4
        %s130 = scalar_lea.vmem [#allocation1], %s129
        %s131 = sand.u32 %s10, 1
        %s132 = sand.u32 %s10, 1
        %s133 = smul.addr %s132, 4
        %s134 = scalar_lea.vmem [#allocation1], %s133
        %s135 = sand.u32 %s10, 1
        %s136 = sand.u32 %s10, 1
        %s137 = smul.addr %s136, 4
        %s138 = scalar_lea.vmem [#allocation3], %s137
        %p139 = pneg %p62
        %p140 = pneg %p59
        %s141 = sand.u32 %s49, 1
        %s142 = sand.u32 %s49, 1
        %s143 = smul.addr %s142, 2
        %s144 = scalar_lea.vmem [#allocation5], %s143
        %s146 = sshllo.u32 0, 4
        %v147 = vld [vmem:[%s134] sm:%s146]
        %148 = vst [vmem:[#allocation0] sm:%s146] %v147
        %p149 = scmp.lt.s32.totalorder %s15, 0
        %s150 = ssub.s32 0, %s15
        %s151 = scalar_select %p149, %s150, %s15
        %s152 = sshrl.u32 %s151, 3
        %s153 = ssub.s32 0, %s152
        %s154 = scalar_select %p149, %s153, %s152
        %s155 = sand.u32 %s15, 7
        %s156 = scalar_lea.vmem [#allocation4], %s155
        %v157 = vld [vmem:[#allocation0] sm:$0xff]
        %158 = vst [vmem:[#allocation2] sm:$0xff] %v157
        %159 = vst [vmem:[%s156] sm:$0x1] 0.0
        loop: start=0, step=1, limit=3
        $region51: #{custom-call.6} parent=49 // loop_pre_header
          _
        $region52: #{custom-call.6} parent=49 // loop_header
          %s161 = sphi 0, %s165
          %p162 = scmp.ge.s32.totalorder %s161, 3
        $region53: #{custom-call.6} parent=49 // loop_header_branch
          %164 = sbr.rel (%p162) target = $region57
        $region54: #{custom-call.6} parent=49 // loop_body
          %v166 = vld [vmem:[#allocation2] sm:$0xff]
          %v167 = vlaneseq
          %v168 = vshrl.u32 %v167, 7
          %v170 = vstv %s161
          %vm171 = vcmp.gt.s32.totalorder %v168, %v170
          %vm172 = vcmp.lt.s32.totalorder %v168, 3
          %vm173 = vmand %vm171, %vm172
          %v174 = vsel %vm173, %v166, 0.0
          %v175 = vmul.f32 %v174, %v174
          %v176 = vrot.slane %v175, 4
          %v177 = vadd.f32 %v175, %v176
          %v178 = vrot.slane %v177, 2
          %v179 = vadd.f32 %v177, %v178
          %v180 = vrot.slane %v179, 1
          %v181 = vadd.f32 %v179, %v180
          %v182 = vrsqrt.pop %v181
          %v183 = vmul.f32 %v181, %v182
          %vm184 = vcmp.eq.f32.partialorder %v181, inf
          %v185 = vsel %vm184, %v181, %v183
          %vm186 = vcmp.eq.f32.partialorder %v181, 0.0
          %v187 = vand.u32 %v181, 2147483648
          %v188 = vsel %vm186, %v187, %v185
          %vm189 = vcmp.eq.f32.partialorder %v181, 0.0
          %s190 = sshrl.u32 %s161, 3
          %s191 = sand.u32 %s161, 7
          %s192 = smul.addr %s190, 8
          %s193 = sadd.s32 %s191, %s192
          %s194 = scalar_lea.vmem [#allocation2], %s193
          %v195 = vld [vmem:[%s194] ss:$0 sm:$0xff]
          %v196 = vand.u32 2147483647, %v195
          %v197 = vmax.f32 %v196, 0.0
          %v198 = vand.u32 2147483647, %v188
          %v199 = vmax.f32 %v197, %v198
          %v200 = vrcp.pop %v199
          %v201 = vmul.f32 %v196, %v200
          %v202 = vmul.f32 %v201, %v201
          %v203 = vrcp.pop %v199
          %v204 = vmul.f32 0.0, %v203
          %v205 = vmul.f32 %v204, %v204
          %v206 = vadd.f32 %v202, %v205
          %v207 = vrcp.pop %v199
          %v208 = vmul.f32 %v198, %v207
          %v209 = vmul.f32 %v208, %v208
          %v210 = vadd.f32 %v206, %v209
          %vm211 = vcmp.eq.f32.partialorder %v199, 0.0
          %v212 = vrsqrt.pop %v210
          %v213 = vmul.f32 %v210, %v212
          %vm214 = vcmp.eq.f32.partialorder %v210, inf
          %v215 = vsel %vm214, %v210, %v213
          %vm216 = vcmp.eq.f32.partialorder %v210, 0.0
          %v217 = vand.u32 %v210, 2147483648
          %v218 = vsel %vm216, %v217, %v215
          %v219 = vmul.f32 %v199, %v218
          %v220 = vsel %vm211, 0.0, %v219
          %vm221 = vcmp.lt.f32.partialorder %v195, 0.0
          %v222 = vxor.u32 %v220, 2147483648
          %v223 = vsel %vm221, %v220, %v222
          %v224 = vsub.f32 %v223, %v195
          %v225 = vrcp.pop %v223
          %v226 = vmul.f32 %v224, %v225
          %v227 = vsel %vm189, %v195, %v223
          %v228 = vsel %vm189, 0.0, %v226
          %v229 = vsub.f32 %v195, %v227
          %s230 = smov [#allocation2]
          %v231 = vlaneseq
          %v232 = vshrl.u32 %v231, 7
          %v233 = vmov %v232
          %v234 = vld [vmem:[%s230] sm:$0xff]
          %v236 = vstv %s161
          %vm237 = vcmp.gt.s32.totalorder %v233, %v236
          %vm238 = vcmp.lt.s32.totalorder %v233, 3
          %vm239 = vmand %vm237, %vm238
          %v240 = vsel %vm239, %v234, 0.0
          %v241 = vrcp.pop %v229
          %v242 = vmul.f32 %v240, %v241
          %v243 = vsel %vm189, 0.0, %v242
          %v244 = vstv %s161
          %v245 = vlaneseq
          %v246 = vand.u32 %v245, 127
          %vm247 = vcmp.eq.s32.totalorder %v246, %v244
          %v248 = vsel %vm247, %v243, 0.0
          %249 = vadd.xlane.f32.xlu0 %v248
          %v250 = vpop.xlane.xlu0 %249
          %251 = vst [vmem:[#allocation6] sm:$0xff] %v250
          %s252 = scalar_lea.vmem [#allocation6], %s161
          %253 = vst [vmem:[%s252] sm:$0x1] 1.0
          %v254 = vstv %s161
          %v255 = vlaneseq
          %v256 = vand.u32 %v255, 127
          %vm257 = vcmp.eq.s32.totalorder %v256, %v254
          %v258 = vsel %vm257, %v228, 0.0
          %259 = vadd.xlane.f32.xlu0 %v258
          %v260 = vpop.xlane.xlu0 %259
          %v261 = vstv %s161
          %v262 = vlaneseq
          %v263 = vand.u32 %v262, 127
          %vm264 = vcmp.eq.s32.totalorder %v263, %v261
          %v265 = vld [vmem:[%s156] ss:$0 sm:$0xff]
          %v266 = vsel %vm264, %v260, %v265
          %267 = vst [vmem:[%s156] sm:$0x1] %v266
          %s268 = smov [#allocation2]
          %s269 = smov [#allocation6]
          %v270 = vlaneseq
          %v271 = vshrl.u32 %v270, 7
          %v272 = vmov %v271
          %v274 = vld [vmem:[%s269] sm:$0xff]
          %v275 = vld [vmem:[%s268] sm:$0xff]
          %v276 = vmul.f32 %v274, %v275
          %vm277 = vcmp.lt.s32.totalorder %v272, 3
          %v278 = vsel %vm277, %v276, 0.0
          %v279 = vrot.slane %v278, 4
          %v280 = vadd.f32 %v278, %v279
          %v281 = vrot.slane %v280, 2
          %v282 = vadd.f32 %v280, %v281
          %v283 = vrot.slane %v282, 1
          %v284 = vadd.f32 %v282, %v283
          %s285 = smov %s268
          %s286 = smov %s269
          %v287 = vlaneseq
          %v288 = vshrl.u32 %v287, 7
          %v289 = vmov %v288
          %v290 = vmul.f32 %v284, %v260
          %v292 = vlaneseq
          %v293 = vand.u32 %v292, 127
          %v294 = vld [vmem:[%s286] sm:$0xff]
          %v295 = vmul.f32 %v294, %v290
          %v296 = vld [vmem:[%s285] sm:$0xff]
          %v297 = vstv %s161
          %vm298 = vcmp.gt.s32.totalorder %v293, %v297
          %v299 = vsub.f32 %v296, %v295
          %v300 = vsel %vm298, %v299, %v296
          %v301 = vstv %s161
          %v302 = vlaneseq
          %v303 = vand.u32 %v302, 127
          %vm304 = vcmp.eq.s32.totalorder %v303, %v301
          %v305 = vstv %s161
          %vm306 = vcmp.ge.s32.totalorder %v289, %v305
          %vm307 = vmand %vm304, %vm306
          %v308 = vsel %vm307, %v294, %v300
          %309 = vst [vmem:[%s285] sm:$0xff] %v308
          %s310 = scalar_lea.vmem %s285, %s161
          %v311 = vld [vmem:[%s310] ss:$0 sm:$0xff]
          %v312 = vstv %s161
          %v313 = vlaneseq
          %v314 = vand.u32 %v313, 127
          %vm315 = vcmp.eq.s32.totalorder %v314, %v312
          %v316 = vsel %vm315, %v227, %v311
          %317 = vst [vmem:[%s310] sm:$0x1] %v316
        $region55: #{custom-call.6} parent=49 // loop_footer
          %s165 = sadd.s32 1, %s161
        $region56: #{custom-call.6} parent=49 // loop_footer_branch
          %160 = sbr.rel target = $region52
        $region57: #{custom-call.6} parent=49 // loop_exit
          _
        %s319 = sshllo.u32 0, 4
        %v321 = vld [vmem:[#allocation2] sm:%s319]
        %s322 = sshllo.u32 0, 4
        %323 = vst [vmem:[%s138] sm:%s322] %v321
        %s325 = sshllo.u32 0, 2
        %v327 = vld [vmem:[#allocation4] sm:%s325]
        %s328 = sshllo.u32 0, 2
        %329 = vst [vmem:[%s144] sm:%s328] %v327
        %s330 = sand.u32 %s10, 1
        %s331 = sand.u32 %s10, 1
        %s332 = smul.addr %s331, 4
        %s333 = scalar_lea.vmem [#allocation3], %s332
        %s334 = sand.u32 %s49, 1
        %s335 = sand.u32 %s49, 1
        %s336 = smul.addr %s335, 2
        %s337 = scalar_lea.vmem [#allocation5], %s336
        %s338 = sadd.s32 %s17, %s16
        %s339 = sadd.s32 %s338, %s15
        %s340 = smul.addr %s339, 4
        %s341 = scalar_lea.vmem %s1, %s340
        // Predicated region
        $region58: #{custom-call.6} parent=49 // pred_check
          _
        $region59: #{custom-call.6} parent=49 // pred_check_branch
          %343 = sbr.rel (0) target = $region61
        $region60: #{custom-call.6} parent=49 // pred_region
          // Predicated region
          $region62: #{custom-call.6} parent=60 // pred_check
            _
          $region63: #{custom-call.6} parent=60 // pred_check_branch
            %345 = sbr.rel target = $region65
          $region64: #{custom-call.6} parent=60 // pred_region
            // Predicated region
            $region77: #{custom-call.6} parent=64 // pred_check
              _
            $region78: #{custom-call.6} parent=64 // pred_check_branch
              %360 = sbr.rel (0) target = $region80
            $region79: #{custom-call.6} parent=64 // pred_region
              loop: start=0, step=1, limit=1
              $region81: #{custom-call.6} parent=79 // loop_pre_header
                _
              $region82: #{custom-call.6} parent=79 // loop_header
                %s363 = sphi 0, %s367
                %p364 = scmp.ge.s32.totalorder %s363, 1
                %s368 = sphi %s333, %s333
                %s369 = sphi %s341, %s341
              $region83: #{custom-call.6} parent=79 // loop_header_branch
                %366 = sbr.rel (%p364) target = $region87
              $region84: #{custom-call.6} parent=79 // loop_body
                %v370 = vld [vmem:[%s368] sm:$0xf]
                %371 = vst [vmem:[%s369] sm:$0xf] %v370
              $region85: #{custom-call.6} parent=79 // loop_footer
                %s367 = sadd.s32 1, %s363
              $region86: #{custom-call.6} parent=79 // loop_footer_branch
                %362 = sbr.rel target = $region82
              $region87: #{custom-call.6} parent=79 // loop_exit
                _
            $region80: #{custom-call.6} parent=64 // pred_fallthru
              _
          $region65: #{custom-call.6} parent=60 // pred_fallthru
            _
          // Predicated region
          $region66: #{custom-call.6} parent=60 // pred_check
            _
          $region67: #{custom-call.6} parent=60 // pred_check_branch
            %347 = sbr.rel (0) target = $region69
          $region68: #{custom-call.6} parent=60 // pred_region
            loop: start=0, step=1, limit=1
            $region70: #{custom-call.6} parent=68 // loop_pre_header
              _
            $region71: #{custom-call.6} parent=68 // loop_header
              %s350 = sphi 0, %s354
              %p351 = scmp.ge.s32.totalorder %s350, 1
              %s355 = sphi %s333, %s333
              %s356 = sphi %s341, %s341
            $region72: #{custom-call.6} parent=68 // loop_header_branch
              %353 = sbr.rel (%p351) target = $region76
            $region73: #{custom-call.6} parent=68 // loop_body
              %v357 = vld [vmem:[%s355] sm:$0xf]
              %358 = vst [vmem:[%s356] sm:$0xf] %v357
            $region74: #{custom-call.6} parent=68 // loop_footer
              %s354 = sadd.s32 1, %s350
            $region75: #{custom-call.6} parent=68 // loop_footer_branch
              %349 = sbr.rel target = $region71
            $region76: #{custom-call.6} parent=68 // loop_exit
              _
          $region69: #{custom-call.6} parent=60 // pred_fallthru
            _
        $region61: #{custom-call.6} parent=49 // pred_fallthru
          _
        %372 = vnop
        // Predicated region
        $region88: #{custom-call.6} parent=49 // pred_check
          %p373 = pneg %p59
        $region89: #{custom-call.6} parent=49 // pred_check_branch
          %375 = sbr.rel (%p373) target = $region91
        $region90: #{custom-call.6} parent=49 // pred_region
          %p376 = scmp.lt.s32.totalorder %s15, 0
          %s377 = ssub.s32 0, %s15
          %s378 = scalar_select %p376, %s377, %s15
          %s379 = sshrl.u32 %s378, 3
          %s380 = ssub.s32 0, %s379
          %s381 = scalar_select %p376, %s380, %s379
          %s382 = smul.addr %s381, 2
          %s383 = scalar_lea.vmem %s2, %s382
          // Predicated region
          $region92: #{custom-call.6} parent=90 // pred_check
            _
          $region93: #{custom-call.6} parent=90 // pred_check_branch
            %385 = sbr.rel (0) target = $region95
          $region94: #{custom-call.6} parent=90 // pred_region
            // Predicated region
            $region96: #{custom-call.6} parent=94 // pred_check
              _
            $region97: #{custom-call.6} parent=94 // pred_check_branch
              %387 = sbr.rel target = $region99
            $region98: #{custom-call.6} parent=94 // pred_region
              // Predicated region
              $region111: #{custom-call.6} parent=98 // pred_check
                _
              $region112: #{custom-call.6} parent=98 // pred_check_branch
                %402 = sbr.rel (0) target = $region114
              $region113: #{custom-call.6} parent=98 // pred_region
                loop: start=0, step=1, limit=1
                $region115: #{custom-call.6} parent=113 // loop_pre_header
                  _
                $region116: #{custom-call.6} parent=113 // loop_header
                  %s405 = sphi 0, %s409
                  %p406 = scmp.ge.s32.totalorder %s405, 1
                  %s410 = sphi %s337, %s337
                  %s411 = sphi %s383, %s383
                $region117: #{custom-call.6} parent=113 // loop_header_branch
                  %408 = sbr.rel (%p406) target = $region121
                $region118: #{custom-call.6} parent=113 // loop_body
                  %v412 = vld [vmem:[%s410] sm:$0x3]
                  %413 = vst [vmem:[%s411] sm:$0x3] %v412
                $region119: #{custom-call.6} parent=113 // loop_footer
                  %s409 = sadd.s32 1, %s405
                $region120: #{custom-call.6} parent=113 // loop_footer_branch
                  %404 = sbr.rel target = $region116
                $region121: #{custom-call.6} parent=113 // loop_exit
                  _
              $region114: #{custom-call.6} parent=98 // pred_fallthru
                _
            $region99: #{custom-call.6} parent=94 // pred_fallthru
              _
            // Predicated region
            $region100: #{custom-call.6} parent=94 // pred_check
              _
            $region101: #{custom-call.6} parent=94 // pred_check_branch
              %389 = sbr.rel (0) target = $region103
            $region102: #{custom-call.6} parent=94 // pred_region
              loop: start=0, step=1, limit=1
              $region104: #{custom-call.6} parent=102 // loop_pre_header
                _
              $region105: #{custom-call.6} parent=102 // loop_header
                %s392 = sphi 0, %s396
                %p393 = scmp.ge.s32.totalorder %s392, 1
                %s397 = sphi %s337, %s337
                %s398 = sphi %s383, %s383
              $region106: #{custom-call.6} parent=102 // loop_header_branch
                %395 = sbr.rel (%p393) target = $region110
              $region107: #{custom-call.6} parent=102 // loop_body
                %v399 = vld [vmem:[%s397] sm:$0x3]
                %400 = vst [vmem:[%s398] sm:$0x3] %v399
              $region108: #{custom-call.6} parent=102 // loop_footer
                %s396 = sadd.s32 1, %s392
              $region109: #{custom-call.6} parent=102 // loop_footer_branch
                %391 = sbr.rel target = $region105
              $region110: #{custom-call.6} parent=102 // loop_exit
                _
            $region103: #{custom-call.6} parent=94 // pred_fallthru
              _
          $region95: #{custom-call.6} parent=90 // pred_fallthru
            _
          %414 = vnop
        $region91: #{custom-call.6} parent=49 // pred_fallthru
          _
      $region50: #{custom-call.6} parent=5 // pred_fallthru
        _
      %p415 = scmp.le.s32.totalorder 2, %s5
      // Predicated region
      $region122: #{custom-call.6} parent=5 // pred_check
        %p416 = pneg %p415
      $region123: #{custom-call.6} parent=5 // pred_check_branch
        %418 = sbr.rel (%p416) target = $region125
      $region124: #{custom-call.6} parent=5 // pred_region
        %s419 = ssub.s32 %s5, 2
        %s420 = sand.u32 %s11, 1
        %s421 = sand.u32 %s11, 1
        %s422 = smul.addr %s421, 4
        %s423 = scalar_lea.vmem [#allocation3], %s422
        // Predicated region
        $region126: #{custom-call.6} parent=124 // pred_check
          %p424 = pneg %p65
        $region127: #{custom-call.6} parent=124 // pred_check_branch
          %426 = sbr.rel (%p424) target = $region129
        $region128: #{custom-call.6} parent=124 // pred_region
          %s427 = sand.u32 %s50, 1
          %s428 = sand.u32 %s50, 1
          %s429 = smul.addr %s428, 2
          %s430 = scalar_lea.vmem [#allocation5], %s429
        $region129: #{custom-call.6} parent=124 // pred_fallthru
          _
      $region125: #{custom-call.6} parent=5 // pred_fallthru
        _
    $region6: #{custom-call.6} parent=1 // loop_footer
      %s9 = sadd.s32 1, %s5
    $region7: #{custom-call.6} parent=1 // loop_footer_branch
      %4 = sbr.rel target = $region3
    $region8: #{custom-call.6} parent=1 // loop_exit
      _

// kernel: custom-call.8
$region0: #{custom-call.8}
  %s0 = inlined_call_operand.vmem [shape: f32[2,3,3], index: 0, kind: input, shape index: {}]
  %s1 = inlined_call_operand.vmem [shape: f32[2,3,3], index: 1, kind: output, shape index: {}]
  $region1: #{custom-call.8} parent=0
    #allocation0 [shape = 'u8[4096]{0}', space=vmem, size = 0x1000, scoped, tag = 'operand span for operand 0']
    #allocation1 [shape = 'u8[4096]{0}', space=vmem, size = 0x1000, scoped, tag = 'packed  for operand 0']
    #allocation2 [shape = 'u8[4096]{0}', space=vmem, size = 0x1000, scoped, tag = 'operand span for operand 1']
    #allocation3 [shape = 'u8[4096]{0}', space=vmem, size = 0x1000, scoped, tag = 'packed  for operand 1']
    loop: start=0, step=1, limit=4
    $region2: #{custom-call.8} parent=1 // loop_pre_header
      _
    $region3: #{custom-call.8} parent=1 // loop_header
      %s3 = sphi 0, %s7
      %p4 = scmp.ge.s32.totalorder %s3, 4
    $region4: #{custom-call.8} parent=1 // loop_header_branch
      %6 = sbr.rel (%p4) target = $region8
    $region5: #{custom-call.8} parent=1 // loop_body
      %s8 = ssub.s32 %s3, 1
      %s9 = ssub.s32 %s3, 2
      %s10 = sadd.s32 %s3, 1
      %p11 = scmp.le.s32.totalorder 1, %s3
      %p12 = scmp.lt.s32.totalorder %s3, 3
      %p13 = pnand %p11, %p12
      %p14 = pneg %p13
      // Predicated region
      $region9: #{custom-call.8} parent=5 // pred_check
        _
      $region10: #{custom-call.8} parent=5 // pred_check_branch
        %16 = sbr.rel (%p13) target = $region12
      $region11: #{custom-call.8} parent=5 // pred_region
        %s17 = ssub.s32 %s3, 1
      $region12: #{custom-call.8} parent=5 // pred_fallthru
        _
      %p18 = scmp.lt.s32.totalorder %s3, 2
      // Predicated region
      $region13: #{custom-call.8} parent=5 // pred_check
        %p19 = pneg %p18
      $region14: #{custom-call.8} parent=5 // pred_check_branch
        %21 = sbr.rel (%p19) target = $region16
      $region15: #{custom-call.8} parent=5 // pred_region
        %s22 = sand.u32 %s3, 1
        %s23 = sand.u32 %s3, 1
        %s24 = smul.addr %s23, 4
        %s25 = scalar_lea.vmem [#allocation1], %s24
        %s26 = smul.addr %s3, 4
        %s27 = scalar_lea.vmem %s0, %s26
        // Predicated region
        $region17: #{custom-call.8} parent=15 // pred_check
          _
        $region18: #{custom-call.8} parent=15 // pred_check_branch
          %29 = sbr.rel (0) target = $region20
        $region19: #{custom-call.8} parent=15 // pred_region
          // Predicated region
          $region21: #{custom-call.8} parent=19 // pred_check
            _
          $region22: #{custom-call.8} parent=19 // pred_check_branch
            %31 = sbr.rel target = $region24
          $region23: #{custom-call.8} parent=19 // pred_region
            // Predicated region
            $region36: #{custom-call.8} parent=23 // pred_check
              _
            $region37: #{custom-call.8} parent=23 // pred_check_branch
              %46 = sbr.rel (0) target = $region39
            $region38: #{custom-call.8} parent=23 // pred_region
              loop: start=0, step=1, limit=1
              $region40: #{custom-call.8} parent=38 // loop_pre_header
                _
              $region41: #{custom-call.8} parent=38 // loop_header
                %s49 = sphi 0, %s53
                %p50 = scmp.ge.s32.totalorder %s49, 1
                %s54 = sphi %s27, %s27
                %s55 = sphi %s25, %s25
              $region42: #{custom-call.8} parent=38 // loop_header_branch
                %52 = sbr.rel (%p50) target = $region46
              $region43: #{custom-call.8} parent=38 // loop_body
                %v56 = vld [vmem:[%s54] sm:$0xf]
                %57 = vst [vmem:[%s55] sm:$0xf] %v56
              $region44: #{custom-call.8} parent=38 // loop_footer
                %s53 = sadd.s32 1, %s49
              $region45: #{custom-call.8} parent=38 // loop_footer_branch
                %48 = sbr.rel target = $region41
              $region46: #{custom-call.8} parent=38 // loop_exit
                _
            $region39: #{custom-call.8} parent=23 // pred_fallthru
              _
          $region24: #{custom-call.8} parent=19 // pred_fallthru
            _
          // Predicated region
          $region25: #{custom-call.8} parent=19 // pred_check
            _
          $region26: #{custom-call.8} parent=19 // pred_check_branch
            %33 = sbr.rel (0) target = $region28
          $region27: #{custom-call.8} parent=19 // pred_region
            loop: start=0, step=1, limit=1
            $region29: #{custom-call.8} parent=27 // loop_pre_header
              _
            $region30: #{custom-call.8} parent=27 // loop_header
              %s36 = sphi 0, %s40
              %p37 = scmp.ge.s32.totalorder %s36, 1
              %s41 = sphi %s27, %s27
              %s42 = sphi %s25, %s25
            $region31: #{custom-call.8} parent=27 // loop_header_branch
              %39 = sbr.rel (%p37) target = $region35
            $region32: #{custom-call.8} parent=27 // loop_body
              %v43 = vld [vmem:[%s41] sm:$0xf]
              %44 = vst [vmem:[%s42] sm:$0xf] %v43
            $region33: #{custom-call.8} parent=27 // loop_footer
              %s40 = sadd.s32 1, %s36
            $region34: #{custom-call.8} parent=27 // loop_footer_branch
              %35 = sbr.rel target = $region30
            $region35: #{custom-call.8} parent=27 // loop_exit
              _
          $region28: #{custom-call.8} parent=19 // pred_fallthru
            _
        $region20: #{custom-call.8} parent=15 // pred_fallthru
          _
        %58 = vnop
      $region16: #{custom-call.8} parent=5 // pred_fallthru
        _
      %p59 = scmp.le.s32.totalorder 1, %s3
      %p60 = scmp.lt.s32.totalorder %s3, 3
      %p61 = pnand %p59, %p60
      %p62 = pneg %p61
      // Predicated region
      $region47: #{custom-call.8} parent=5 // pred_check
        _
      $region48: #{custom-call.8} parent=5 // pred_check_branch
        %64 = sbr.rel (%p61) target = $region50
      $region49: #{custom-call.8} parent=5 // pred_region
        %s65 = ssub.s32 %s3, 1
        %s66 = sand.u32 %s8, 1
        %s67 = sand.u32 %s8, 1
        %s68 = smul.addr %s67, 4
        %s69 = scalar_lea.vmem [#allocation1], %s68
        %s70 = sand.u32 %s8, 1
        %s71 = sand.u32 %s8, 1
        %s72 = smul.addr %s71, 4
        %s73 = scalar_lea.vmem [#allocation1], %s72
        %s74 = sand.u32 %s8, 1
        %s75 = sand.u32 %s8, 1
        %s76 = smul.addr %s75, 4
        %s77 = scalar_lea.vmem [#allocation3], %s76
        %s79 = sshllo.u32 0, 4
        %v80 = vld [vmem:[%s73] sm:%s79]
        %81 = vst [vmem:[#allocation0] sm:%s79] %v80
        %v82 = vlaneseq
        %v83 = vand.u32 %v82, 127
        %v84 = vlaneseq
        %v85 = vshrl.u32 %v84, 7
        %vm87 = vcmp.eq.s32.totalorder %v83, %v85
        %v88 = vld [vmem:[#allocation0] sm:$0xff]
        %v89 = vlaneseq
        %v90 = vand.u32 %v89, 127
        %vm91 = vcmp.eq.s32.totalorder %v90, 0
        %v92 = vsel %vm91, %v88, 1.0
        %v93 = vsel %vm87, %v92, 0.0
        %s94 = scalar_lea.vmem [#allocation0], 1
        %v95 = vld [vmem:[%s94] ss:$0 sm:$0xff]
        %vm96 = vcmask 23552
        %v97 = vsel %vm96, %v95, 0.0
        %v98 = vlaneseq
        %v99 = vand.u32 %v98, 127
        %vm100 = vcmp.eq.s32.totalorder %v99, 1
        %v101 = vmul.f32 %v97, %v93
        %102 = vadd.xlane.f32.xlu0 %v101
        %v103 = vpop.xlane.xlu0 %102
        %v104 = vsel %vm100, %v103, %v93
        %s105 = scalar_lea.vmem [#allocation0], 2
        %v106 = vld [vmem:[%s105] ss:$0 sm:$0xff]
        %vm107 = vcmask 23552
        %v108 = vsel %vm107, %v106, 0.0
        %v109 = vlaneseq
        %v110 = vand.u32 %v109, 127
        %vm111 = vcmp.eq.s32.totalorder %v110, 2
        %v112 = vmul.f32 %v108, %v104
        %113 = vadd.xlane.f32.xlu0 %v112
        %v114 = vpop.xlane.xlu0 %113
        %v115 = vsel %vm111, %v114, %v104
        %116 = vst [vmem:[#allocation2] sm:$0xff] %v115
        %s118 = sshllo.u32 0, 4
        %v120 = vld [vmem:[#allocation2] sm:%s118]
        %s121 = sshllo.u32 0, 4
        %122 = vst [vmem:[%s77] sm:%s121] %v120
        %s123 = sand.u32 %s8, 1
        %s124 = sand.u32 %s8, 1
        %s125 = smul.addr %s124, 4
        %s126 = scalar_lea.vmem [#allocation3], %s125
        %s127 = smul.addr %s8, 4
        %s128 = scalar_lea.vmem %s1, %s127
        // Predicated region
        $region51: #{custom-call.8} parent=49 // pred_check
          _
        $region52: #{custom-call.8} parent=49 // pred_check_branch
          %130 = sbr.rel (0) target = $region54
        $region53: #{custom-call.8} parent=49 // pred_region
          // Predicated region
          $region55: #{custom-call.8} parent=53 // pred_check
            _
          $region56: #{custom-call.8} parent=53 // pred_check_branch
            %132 = sbr.rel target = $region58
          $region57: #{custom-call.8} parent=53 // pred_region
            // Predicated region
            $region70: #{custom-call.8} parent=57 // pred_check
              _
            $region71: #{custom-call.8} parent=57 // pred_check_branch
              %147 = sbr.rel (0) target = $region73
            $region72: #{custom-call.8} parent=57 // pred_region
              loop: start=0, step=1, limit=1
              $region74: #{custom-call.8} parent=72 // loop_pre_header
                _
              $region75: #{custom-call.8} parent=72 // loop_header
                %s150 = sphi 0, %s154
                %p151 = scmp.ge.s32.totalorder %s150, 1
                %s155 = sphi %s126, %s126
                %s156 = sphi %s128, %s128
              $region76: #{custom-call.8} parent=72 // loop_header_branch
                %153 = sbr.rel (%p151) target = $region80
              $region77: #{custom-call.8} parent=72 // loop_body
                %v157 = vld [vmem:[%s155] sm:$0xf]
                %158 = vst [vmem:[%s156] sm:$0xf] %v157
              $region78: #{custom-call.8} parent=72 // loop_footer
                %s154 = sadd.s32 1, %s150
              $region79: #{custom-call.8} parent=72 // loop_footer_branch
                %149 = sbr.rel target = $region75
              $region80: #{custom-call.8} parent=72 // loop_exit
                _
            $region73: #{custom-call.8} parent=57 // pred_fallthru
              _
          $region58: #{custom-call.8} parent=53 // pred_fallthru
            _
          // Predicated region
          $region59: #{custom-call.8} parent=53 // pred_check
            _
          $region60: #{custom-call.8} parent=53 // pred_check_branch
            %134 = sbr.rel (0) target = $region62
          $region61: #{custom-call.8} parent=53 // pred_region
            loop: start=0, step=1, limit=1
            $region63: #{custom-call.8} parent=61 // loop_pre_header
              _
            $region64: #{custom-call.8} parent=61 // loop_header
              %s137 = sphi 0, %s141
              %p138 = scmp.ge.s32.totalorder %s137, 1
              %s142 = sphi %s126, %s126
              %s143 = sphi %s128, %s128
            $region65: #{custom-call.8} parent=61 // loop_header_branch
              %140 = sbr.rel (%p138) target = $region69
            $region66: #{custom-call.8} parent=61 // loop_body
              %v144 = vld [vmem:[%s142] sm:$0xf]
              %145 = vst [vmem:[%s143] sm:$0xf] %v144
            $region67: #{custom-call.8} parent=61 // loop_footer
              %s141 = sadd.s32 1, %s137
            $region68: #{custom-call.8} parent=61 // loop_footer_branch
              %136 = sbr.rel target = $region64
            $region69: #{custom-call.8} parent=61 // loop_exit
              _
          $region62: #{custom-call.8} parent=53 // pred_fallthru
            _
        $region54: #{custom-call.8} parent=49 // pred_fallthru
          _
        %159 = vnop
      $region50: #{custom-call.8} parent=5 // pred_fallthru
        _
      %p160 = scmp.le.s32.totalorder 2, %s3
      // Predicated region
      $region81: #{custom-call.8} parent=5 // pred_check
        %p161 = pneg %p160
      $region82: #{custom-call.8} parent=5 // pred_check_branch
        %163 = sbr.rel (%p161) target = $region84
      $region83: #{custom-call.8} parent=5 // pred_region
        %s164 = ssub.s32 %s3, 2
        %s165 = sand.u32 %s9, 1
        %s166 = sand.u32 %s9, 1
        %s167 = smul.addr %s166, 4
        %s168 = scalar_lea.vmem [#allocation3], %s167
      $region84: #{custom-call.8} parent=5 // pred_fallthru
        _
    $region6: #{custom-call.8} parent=1 // loop_footer
      %s7 = sadd.s32 1, %s3
    $region7: #{custom-call.8} parent=1 // loop_footer_branch
      %2 = sbr.rel target = $region3
    $region8: #{custom-call.8} parent=1 // loop_exit
      _

// kernel: t_net_forward.1
$region0: #{t_net_forward.1}
  #allocation0 [shape = 'u32[]', space=smem, size = 0x4, offset = 0x4, fixed_abs, tag = 'smem constant byte address 0x4 - core index']
  #allocation1 [shape = 'u32[144,128]{1,0:T(1,128)}', space=vmem, size = 0x12000, scoped, tag = 'internal scratch']
  #allocation2 [shape = 'f32[1024,128]{1,0:T(8,128)}', space=vmem, size = 0x80000, scoped, tag = 'scratch operand']
  %s0 = inlined_call_operand.vmem [shape: f32[2,3,128], index: 0, kind: input, shape index: {}]
  %s1 = inlined_call_operand.vmem [shape: f32[64,3], index: 1, kind: input, shape index: {}]
  %s2 = inlined_call_operand.vmem [shape: f32[64,1], index: 2, kind: input, shape index: {}]
  %s3 = inlined_call_operand.vmem [shape: bf16[1024,64], index: 3, kind: input, shape index: {}]
  %s4 = inlined_call_operand.vmem [shape: f32[1024,1], index: 4, kind: input, shape index: {}]
  %s5 = inlined_call_operand.vmem [shape: bf16[256,1024], index: 5, kind: input, shape index: {}]
  %s6 = inlined_call_operand.vmem [shape: f32[256,1], index: 6, kind: input, shape index: {}]
  %s7 = inlined_call_operand.vmem [shape: f32[9,256], index: 7, kind: input, shape index: {}]
  %s8 = inlined_call_operand.vmem [shape: f32[9,1], index: 8, kind: input, shape index: {}]
  %s9 = inlined_call_operand.vmem [shape: f32[2,9,1], index: 9, kind: output, shape index: {}]
  %s10 = sld [smem:[#allocation0]]
  $region77: #{t_net_forward.1} parent=0
    _
  %s12 = ssub.s32 1, %s10
  %s13 = scalar_select 0, %s12, %s10
  loop: start=0, step=1, limit=4
  $region2: #{t_net_forward.1} parent=0 // loop_pre_header
    _
  $region3: #{t_net_forward.1} parent=0 // loop_header
    %s15 = sphi 0, %s19
    %p16 = scmp.ge.s32.totalorder %s15, 4
    %s22 = sphi 0, %s34
    %s23 = sphi 0, %s30
    %s24 = sphi 0, %s22
    %s25 = sphi 0, %s23
    %s26 = sphi 0, %s24
    %s27 = sphi 0, %s25
    %s39 = sphi 0, %s41
    %s42 = sphi 0, %s39
    %s43 = sphi 0, %s42
    %s59 = sphi 0, %s43
    %s63 = sphi 0, %s63
    %s65 = sphi 0, %s63
    %s66 = sphi 0, %s65
    %s80 = sphi 0, %s66
    %s84 = sphi 0, %s84
    %s86 = sphi 0, %s84
    %s87 = sphi 0, %s86
    %s101 = sphi 0, %s87
    %s105 = sphi 0, %s105
    %s107 = sphi 0, %s105
    %s108 = sphi 0, %s107
    %s122 = sphi 0, %s108
    %s126 = sphi 0, %s126
    %s128 = sphi 0, %s126
    %s129 = sphi 0, %s128
    %s143 = sphi 0, %s129
    %s147 = sphi 0, %s147
    %s149 = sphi 0, %s147
    %s150 = sphi 0, %s149
    %s164 = sphi 0, %s150
    %s168 = sphi 0, %s168
    %s170 = sphi 0, %s168
    %s171 = sphi 0, %s170
    %s185 = sphi 0, %s171
    %s189 = sphi 0, %s189
    %s191 = sphi 0, %s189
    %s192 = sphi 0, %s191
    %s206 = sphi 0, %s192
    %s210 = sphi 0, %s210
    %s212 = sphi 0, %s210
    %s213 = sphi 0, %s212
    %s227 = sphi 0, %s213
    %s233 = sphi 0, %s235
    %s236 = sphi 0, %s233
    %s237 = sphi 0, %s236
    %s253 = sphi 0, %s237
  $region4: #{t_net_forward.1} parent=0 // loop_header_branch
    %18 = sbr.rel (%p16) target = $region8
  $region5: #{t_net_forward.1} parent=0 // loop_body
    %s20 = ssub.s32 %s15, 1
    %s21 = ssub.s32 %s15, 2
    %s28 = sadd.s32 1, %s23
    %p29 = scmp.ge.s32.totalorder %s28, 1
    %s30 = scalar_select %p29, 0, %s28
    %s31 = sadd.s32 1, %s22
    %s32 = scalar_select %p29, %s31, %s22
    %p33 = scmp.ge.s32.totalorder %s32, 2
    %s34 = scalar_select %p33, 0, %s32
    %s35 = ssub.s32 %s22, %s34
    %s36 = ssub.s32 %s23, %s30
    %s37 = sor.u32 %s35, %s36
    %p38 = scmp.eq.s32.totalorder %s37, 0
    %s40 = sadd.s32 %s39, 1
    %s41 = scalar_select %p38, %s39, %s40
    %p44 = pneg %p38
    %p45 = scmp.eq.s32.totalorder %s15, 1
    %p46 = por %p44, %p45
    %p47 = scmp.ne.s32.totalorder %s39, %s42
    %p48 = scmp.eq.s32.totalorder %s15, 0
    %p49 = por %p47, %p48
    %p50 = scmp.ne.s32.totalorder %s39, %s42
    %p51 = scmp.eq.s32.totalorder %s20, 1
    %p52 = por %p50, %p51
    %p53 = scmp.ne.s32.totalorder %s42, %s43
    %p54 = scmp.eq.s32.totalorder %s20, 0
    %p55 = por %p53, %p54
    %p56 = scmp.ne.s32.totalorder %s42, %s43
    %p57 = scmp.eq.s32.totalorder %s21, 1
    %p58 = por %p56, %p57
    %p60 = scmp.ne.s32.totalorder %s43, %s59
    %p61 = scmp.eq.s32.totalorder %s21, 0
    %p62 = por %p60, %p61
    %s64 = sadd.s32 %s63, 1
    %p67 = scmp.eq.s32.totalorder %s15, 1
    %p68 = scmp.ne.s32.totalorder %s63, %s65
    %p69 = scmp.eq.s32.totalorder %s15, 0
    %p70 = por %p68, %p69
    %p71 = scmp.ne.s32.totalorder %s63, %s65
    %p72 = scmp.eq.s32.totalorder %s20, 1
    %p73 = por %p71, %p72
    %p74 = scmp.ne.s32.totalorder %s65, %s66
    %p75 = scmp.eq.s32.totalorder %s20, 0
    %p76 = por %p74, %p75
    %p77 = scmp.ne.s32.totalorder %s65, %s66
    %p78 = scmp.eq.s32.totalorder %s21, 1
    %p79 = por %p77, %p78
    %p81 = scmp.ne.s32.totalorder %s66, %s80
    %p82 = scmp.eq.s32.totalorder %s21, 0
    %p83 = por %p81, %p82
    %s85 = sadd.s32 %s84, 1
    %p88 = scmp.eq.s32.totalorder %s15, 1
    %p89 = scmp.ne.s32.totalorder %s84, %s86
    %p90 = scmp.eq.s32.totalorder %s15, 0
    %p91 = por %p89, %p90
    %p92 = scmp.ne.s32.totalorder %s84, %s86
    %p93 = scmp.eq.s32.totalorder %s20, 1
    %p94 = por %p92, %p93
    %p95 = scmp.ne.s32.totalorder %s86, %s87
    %p96 = scmp.eq.s32.totalorder %s20, 0
    %p97 = por %p95, %p96
    %p98 = scmp.ne.s32.totalorder %s86, %s87
    %p99 = scmp.eq.s32.totalorder %s21, 1
    %p100 = por %p98, %p99
    %p102 = scmp.ne.s32.totalorder %s87, %s101
    %p103 = scmp.eq.s32.totalorder %s21, 0
    %p104 = por %p102, %p103
    %s106 = sadd.s32 %s105, 1
    %p109 = scmp.eq.s32.totalorder %s15, 1
    %p110 = scmp.ne.s32.totalorder %s105, %s107
    %p111 = scmp.eq.s32.totalorder %s15, 0
    %p112 = por %p110, %p111
    %p113 = scmp.ne.s32.totalorder %s105, %s107
    %p114 = scmp.eq.s32.totalorder %s20, 1
    %p115 = por %p113, %p114
    %p116 = scmp.ne.s32.totalorder %s107, %s108
    %p117 = scmp.eq.s32.totalorder %s20, 0
    %p118 = por %p116, %p117
    %p119 = scmp.ne.s32.totalorder %s107, %s108
    %p120 = scmp.eq.s32.totalorder %s21, 1
    %p121 = por %p119, %p120
    %p123 = scmp.ne.s32.totalorder %s108, %s122
    %p124 = scmp.eq.s32.totalorder %s21, 0
    %p125 = por %p123, %p124
    %s127 = sadd.s32 %s126, 1
    %p130 = scmp.eq.s32.totalorder %s15, 1
    %p131 = scmp.ne.s32.totalorder %s126, %s128
    %p132 = scmp.eq.s32.totalorder %s15, 0
    %p133 = por %p131, %p132
    %p134 = scmp.ne.s32.totalorder %s126, %s128
    %p135 = scmp.eq.s32.totalorder %s20, 1
    %p136 = por %p134, %p135
    %p137 = scmp.ne.s32.totalorder %s128, %s129
    %p138 = scmp.eq.s32.totalorder %s20, 0
    %p139 = por %p137, %p138
    %p140 = scmp.ne.s32.totalorder %s128, %s129
    %p141 = scmp.eq.s32.totalorder %s21, 1
    %p142 = por %p140, %p141
    %p144 = scmp.ne.s32.totalorder %s129, %s143
    %p145 = scmp.eq.s32.totalorder %s21, 0
    %p146 = por %p144, %p145
    %s148 = sadd.s32 %s147, 1
    %p151 = scmp.eq.s32.totalorder %s15, 1
    %p152 = scmp.ne.s32.totalorder %s147, %s149
    %p153 = scmp.eq.s32.totalorder %s15, 0
    %p154 = por %p152, %p153
    %p155 = scmp.ne.s32.totalorder %s147, %s149
    %p156 = scmp.eq.s32.totalorder %s20, 1
    %p157 = por %p155, %p156
    %p158 = scmp.ne.s32.totalorder %s149, %s150
    %p159 = scmp.eq.s32.totalorder %s20, 0
    %p160 = por %p158, %p159
    %p161 = scmp.ne.s32.totalorder %s149, %s150
    %p162 = scmp.eq.s32.totalorder %s21, 1
    %p163 = por %p161, %p162
    %p165 = scmp.ne.s32.totalorder %s150, %s164
    %p166 = scmp.eq.s32.totalorder %s21, 0
    %p167 = por %p165, %p166
    %s169 = sadd.s32 %s168, 1
    %p172 = scmp.eq.s32.totalorder %s15, 1
    %p173 = scmp.ne.s32.totalorder %s168, %s170
    %p174 = scmp.eq.s32.totalorder %s15, 0
    %p175 = por %p173, %p174
    %p176 = scmp.ne.s32.totalorder %s168, %s170
    %p177 = scmp.eq.s32.totalorder %s20, 1
    %p178 = por %p176, %p177
    %p179 = scmp.ne.s32.totalorder %s170, %s171
    %p180 = scmp.eq.s32.totalorder %s20, 0
    %p181 = por %p179, %p180
    %p182 = scmp.ne.s32.totalorder %s170, %s171
    %p183 = scmp.eq.s32.totalorder %s21, 1
    %p184 = por %p182, %p183
    %p186 = scmp.ne.s32.totalorder %s171, %s185
    %p187 = scmp.eq.s32.totalorder %s21, 0
    %p188 = por %p186, %p187
    %s190 = sadd.s32 %s189, 1
    %p193 = scmp.eq.s32.totalorder %s15, 1
    %p194 = scmp.ne.s32.totalorder %s189, %s191
    %p195 = scmp.eq.s32.totalorder %s15, 0
    %p196 = por %p194, %p195
    %p197 = scmp.ne.s32.totalorder %s189, %s191
    %p198 = scmp.eq.s32.totalorder %s20, 1
    %p199 = por %p197, %p198
    %p200 = scmp.ne.s32.totalorder %s191, %s192
    %p201 = scmp.eq.s32.totalorder %s20, 0
    %p202 = por %p200, %p201
    %p203 = scmp.ne.s32.totalorder %s191, %s192
    %p204 = scmp.eq.s32.totalorder %s21, 1
    %p205 = por %p203, %p204
    %p207 = scmp.ne.s32.totalorder %s192, %s206
    %p208 = scmp.eq.s32.totalorder %s21, 0
    %p209 = por %p207, %p208
    %s211 = sadd.s32 %s210, 1
    %p214 = scmp.eq.s32.totalorder %s15, 1
    %p215 = scmp.ne.s32.totalorder %s210, %s212
    %p216 = scmp.eq.s32.totalorder %s15, 0
    %p217 = por %p215, %p216
    %p218 = scmp.ne.s32.totalorder %s210, %s212
    %p219 = scmp.eq.s32.totalorder %s20, 1
    %p220 = por %p218, %p219
    %p221 = scmp.ne.s32.totalorder %s212, %s213
    %p222 = scmp.eq.s32.totalorder %s20, 0
    %p223 = por %p221, %p222
    %p224 = scmp.ne.s32.totalorder %s212, %s213
    %p225 = scmp.eq.s32.totalorder %s21, 1
    %p226 = por %p224, %p225
    %p228 = scmp.ne.s32.totalorder %s213, %s227
    %p229 = scmp.eq.s32.totalorder %s21, 0
    %p230 = por %p228, %p229
    %s231 = ssub.s32 %s22, %s34
    %p232 = scmp.eq.s32.totalorder %s231, 0
    %s234 = sadd.s32 %s233, 1
    %s235 = scalar_select %p232, %s233, %s234
    %p238 = pneg %p232
    %p239 = scmp.eq.s32.totalorder %s15, 1
    %p240 = por %p238, %p239
    %p241 = scmp.ne.s32.totalorder %s233, %s236
    %p242 = scmp.eq.s32.totalorder %s15, 0
    %p243 = por %p241, %p242
    %p244 = scmp.ne.s32.totalorder %s233, %s236
    %p245 = scmp.eq.s32.totalorder %s20, 1
    %p246 = por %p244, %p245
    %p247 = scmp.ne.s32.totalorder %s236, %s237
    %p248 = scmp.eq.s32.totalorder %s20, 0
    %p249 = por %p247, %p248
    %p250 = scmp.ne.s32.totalorder %s236, %s237
    %p251 = scmp.eq.s32.totalorder %s21, 1
    %p252 = por %p250, %p251
    %p254 = scmp.ne.s32.totalorder %s237, %s253
    %p255 = scmp.eq.s32.totalorder %s21, 0
    %p256 = por %p254, %p255
    %p257 = scmp.le.s32.totalorder 1, %s15
    %p258 = scmp.lt.s32.totalorder %s15, 3
    %p259 = pnand %p257, %p258
    %p260 = pneg %p259
    // Predicated region
    $region9: #{t_net_forward.1} parent=5 // pred_check
      _
    $region10: #{t_net_forward.1} parent=5 // pred_check_branch
      %262 = sbr.rel (%p259) target = $region12
    $region11: #{t_net_forward.1} parent=5 // pred_region
      %s263 = ssub.s32 %s15, 1
      // Predicated region
      $region13: #{t_net_forward.1} parent=11 // pred_check
        %p264 = pneg %p76
      $region14: #{t_net_forward.1} parent=11 // pred_check_branch
        %266 = sbr.rel (%p264) target = $region16
      $region15: #{t_net_forward.1} parent=11 // pred_region
        _
      $region16: #{t_net_forward.1} parent=11 // pred_fallthru
        _
      // Predicated region
      $region17: #{t_net_forward.1} parent=11 // pred_check
        %p267 = pneg %p97
      $region18: #{t_net_forward.1} parent=11 // pred_check_branch
        %269 = sbr.rel (%p267) target = $region20
      $region19: #{t_net_forward.1} parent=11 // pred_region
        _
      $region20: #{t_net_forward.1} parent=11 // pred_fallthru
        _
      // Predicated region
      $region21: #{t_net_forward.1} parent=11 // pred_check
        %p270 = pneg %p118
      $region22: #{t_net_forward.1} parent=11 // pred_check_branch
        %272 = sbr.rel (%p270) target = $region24
      $region23: #{t_net_forward.1} parent=11 // pred_region
        _
      $region24: #{t_net_forward.1} parent=11 // pred_fallthru
        _
      // Predicated region
      $region25: #{t_net_forward.1} parent=11 // pred_check
        %p273 = pneg %p139
      $region26: #{t_net_forward.1} parent=11 // pred_check_branch
        %275 = sbr.rel (%p273) target = $region28
      $region27: #{t_net_forward.1} parent=11 // pred_region
        _
      $region28: #{t_net_forward.1} parent=11 // pred_fallthru
        _
      // Predicated region
      $region29: #{t_net_forward.1} parent=11 // pred_check
        %p276 = pneg %p160
      $region30: #{t_net_forward.1} parent=11 // pred_check_branch
        %278 = sbr.rel (%p276) target = $region32
      $region31: #{t_net_forward.1} parent=11 // pred_region
        _
      $region32: #{t_net_forward.1} parent=11 // pred_fallthru
        _
      // Predicated region
      $region33: #{t_net_forward.1} parent=11 // pred_check
        %p279 = pneg %p181
      $region34: #{t_net_forward.1} parent=11 // pred_check_branch
        %281 = sbr.rel (%p279) target = $region36
      $region35: #{t_net_forward.1} parent=11 // pred_region
        _
      $region36: #{t_net_forward.1} parent=11 // pred_fallthru
        _
      // Predicated region
      $region37: #{t_net_forward.1} parent=11 // pred_check
        %p282 = pneg %p202
      $region38: #{t_net_forward.1} parent=11 // pred_check_branch
        %284 = sbr.rel (%p282) target = $region40
      $region39: #{t_net_forward.1} parent=11 // pred_region
        _
      $region40: #{t_net_forward.1} parent=11 // pred_fallthru
        _
      // Predicated region
      $region41: #{t_net_forward.1} parent=11 // pred_check
        %p285 = pneg %p223
      $region42: #{t_net_forward.1} parent=11 // pred_check_branch
        %287 = sbr.rel (%p285) target = $region44
      $region43: #{t_net_forward.1} parent=11 // pred_region
        _
      $region44: #{t_net_forward.1} parent=11 // pred_fallthru
        _
    $region12: #{t_net_forward.1} parent=5 // pred_fallthru
      _
    %p288 = scmp.lt.s32.totalorder %s15, 2
    // Predicated region
    $region45: #{t_net_forward.1} parent=5 // pred_check
      %p289 = pneg %p288
    $region46: #{t_net_forward.1} parent=5 // pred_check_branch
      %291 = sbr.rel (%p289) target = $region48
    $region47: #{t_net_forward.1} parent=5 // pred_region
      // Predicated region
      $region49: #{t_net_forward.1} parent=47 // pred_check
        %p292 = pneg %p49
      $region50: #{t_net_forward.1} parent=47 // pred_check_branch
        %294 = sbr.rel (%p292) target = $region52
      $region51: #{t_net_forward.1} parent=47 // pred_region
        %p295 = scmp.lt.s32.totalorder %s22, 1
        %s296 = scalar_select %p295, %s22, 1
        %p297 = scmp.lt.s32.totalorder %s23, 0
        %s298 = scalar_select %p297, %s23, 0
        %s299 = sadd.s32 %s298, %s296
        %s300 = smul.addr %s299, 4
        %s301 = scalar_lea.vmem %s0, %s300
      $region52: #{t_net_forward.1} parent=47 // pred_fallthru
        _
    $region48: #{t_net_forward.1} parent=5 // pred_fallthru
      _
    %p302 = scmp.le.s32.totalorder 1, %s15
    %p303 = scmp.lt.s32.totalorder %s15, 3
    %p304 = pnand %p302, %p303
    %p305 = pneg %p304
    // Predicated region
    $region53: #{t_net_forward.1} parent=5 // pred_check
      _
    $region54: #{t_net_forward.1} parent=5 // pred_check_branch
      %307 = sbr.rel (%p304) target = $region56
    $region55: #{t_net_forward.1} parent=5 // pred_region
      %s308 = ssub.s32 %s15, 1
      %p309 = scmp.lt.s32.totalorder %s24, 1
      %s310 = scalar_select %p309, %s24, 1
      %p311 = scmp.lt.s32.totalorder %s25, 0
      %s312 = scalar_select %p311, %s25, 0
      %s313 = sadd.s32 %s312, %s310
      %s314 = smul.addr %s313, 4
      %s315 = scalar_lea.vmem %s0, %s314
      %p316 = pneg %p55
      %p317 = pneg %p52
      %p318 = pneg %p76
      %p319 = pneg %p73
      %p320 = pneg %p97
      %p321 = pneg %p94
      %p322 = pneg %p118
      %p323 = pneg %p115
      %p324 = pneg %p139
      %p325 = pneg %p136
      %p326 = pneg %p160
      %p327 = pneg %p157
      %p328 = pneg %p181
      %p329 = pneg %p178
      %p330 = pneg %p202
      %p331 = pneg %p199
      %p332 = pneg %p223
      %p333 = pneg %p220
      %p334 = pneg %p249
      %p335 = pneg %p246
      %p336 = scmp.lt.s32.totalorder %s24, 1
      %s337 = scalar_select %p336, %s24, 1
      %s338 = smul.addr %s337, 2
      %s339 = smul.addr %s338, 8
      %s340 = scalar_lea.vmem %s9, %s339
      %p341 = scmp.lt.s32.totalorder %s24, 1
      %s342 = scalar_select %p341, %s24, 1
      %p343 = scmp.lt.s32.totalorder %s25, 0
      %s344 = scalar_select %p343, %s25, 0
      %s345 = sadd.s32 %s344, %s342
      %s346 = smul.addr %s345, 4
      %s347 = scalar_lea.vmem %s0, %s346
      %p348 = scmp.lt.s32.totalorder %s24, 1
      %s349 = scalar_select %p348, %s24, 1
      %s350 = smul.addr %s349, 2
      %s351 = smul.addr %s350, 8
      %s352 = scalar_lea.vmem %s9, %s351
      %p354 = scmp.eq.s32.totalorder %s25, 0
      // Predicated region
      $region57: #{t_net_forward.1} parent=55 // pred_check
        %p355 = pneg %p354
      $region58: #{t_net_forward.1} parent=55 // pred_check_branch
        %357 = sbr.rel (%p355) target = $region60
      $region59: #{t_net_forward.1} parent=55 // pred_region
        %358 = vst [vmem:[#allocation2] sm:$0xff] -inf
        %359 = vst [vmem:[#allocation2 + $0x8] sm:$0xff] -inf
        %360 = vst [vmem:[#allocation2 + $0x10] sm:$0xff] -inf
        %361 = vst [vmem:[#allocation2 + $0x18] sm:$0xff] -inf
        %362 = vst [vmem:[#allocation2 + $0x20] sm:$0xff] -inf
        %363 = vst [vmem:[#allocation2 + $0x28] sm:$0xff] -inf
        %364 = vst [vmem:[#allocation2 + $0x30] sm:$0xff] -inf
        %365 = vst [vmem:[#allocation2 + $0x38] sm:$0xff] -inf
        %366 = vst [vmem:[#allocation2 + $0x40] sm:$0xff] -inf
        %367 = vst [vmem:[#allocation2 + $0x48] sm:$0xff] -inf
        %368 = vst [vmem:[#allocation2 + $0x50] sm:$0xff] -inf
        %369 = vst [vmem:[#allocation2 + $0x58] sm:$0xff] -inf
        %370 = vst [vmem:[#allocation2 + $0x60] sm:$0xff] -inf
        %371 = vst [vmem:[#allocation2 + $0x68] sm:$0xff] -inf
        %372 = vst [vmem:[#allocation2 + $0x70] sm:$0xff] -inf
        %373 = vst [vmem:[#allocation2 + $0x78] sm:$0xff] -inf
        %374 = vst [vmem:[#allocation2 + $0x80] sm:$0xff] -inf
        %375 = vst [vmem:[#allocation2 + $0x88] sm:$0xff] -inf
        %376 = vst [vmem:[#allocation2 + $0x90] sm:$0xff] -inf
        %377 = vst [vmem:[#allocation2 + $0x98] sm:$0xff] -inf
        %378 = vst [vmem:[#allocation2 + $0xa0] sm:$0xff] -inf
        %379 = vst [vmem:[#allocation2 + $0xa8] sm:$0xff] -inf
        %380 = vst [vmem:[#allocation2 + $0xb0] sm:$0xff] -inf
        %381 = vst [vmem:[#allocation2 + $0xb8] sm:$0xff] -inf
        %382 = vst [vmem:[#allocation2 + $0xc0] sm:$0xff] -inf
        %383 = vst [vmem:[#allocation2 + $0xc8] sm:$0xff] -inf
        %384 = vst [vmem:[#allocation2 + $0xd0] sm:$0xff] -inf
        %385 = vst [vmem:[#allocation2 + $0xd8] sm:$0xff] -inf
        %386 = vst [vmem:[#allocation2 + $0xe0] sm:$0xff] -inf
        %387 = vst [vmem:[#allocation2 + $0xe8] sm:$0xff] -inf
        %388 = vst [vmem:[#allocation2 + $0xf0] sm:$0xff] -inf
        %389 = vst [vmem:[#allocation2 + $0xf8] sm:$0xff] -inf
        %390 = vst [vmem:[#allocation2 + $0x100] sm:$0xff] -inf
        %391 = vst [vmem:[#allocation2 + $0x108] sm:$0xff] -inf
        %392 = vst [vmem:[#allocation2 + $0x110] sm:$0xff] -inf
        %393 = vst [vmem:[#allocation2 + $0x118] sm:$0xff] -inf
        %394 = vst [vmem:[#allocation2 + $0x120] sm:$0xff] -inf
        %395 = vst [vmem:[#allocation2 + $0x128] sm:$0xff] -inf
        %396 = vst [vmem:[#allocation2 + $0x130] sm:$0xff] -inf
        %397 = vst [vmem:[#allocation2 + $0x138] sm:$0xff] -inf
        %398 = vst [vmem:[#allocation2 + $0x140] sm:$0xff] -inf
        %399 = vst [vmem:[#allocation2 + $0x148] sm:$0xff] -inf
        %400 = vst [vmem:[#allocation2 + $0x150] sm:$0xff] -inf
        %401 = vst [vmem:[#allocation2 + $0x158] sm:$0xff] -inf
        %402 = vst [vmem:[#allocation2 + $0x160] sm:$0xff] -inf
        %403 = vst [vmem:[#allocation2 + $0x168] sm:$0xff] -inf
        %404 = vst [vmem:[#allocation2 + $0x170] sm:$0xff] -inf
        %405 = vst [vmem:[#allocation2 + $0x178] sm:$0xff] -inf
        %406 = vst [vmem:[#allocation2 + $0x180] sm:$0xff] -inf
        %407 = vst [vmem:[#allocation2 + $0x188] sm:$0xff] -inf
        %408 = vst [vmem:[#allocation2 + $0x190] sm:$0xff] -inf
        %409 = vst [vmem:[#allocation2 + $0x198] sm:$0xff] -inf
        %410 = vst [vmem:[#allocation2 + $0x1a0] sm:$0xff] -inf
        %411 = vst [vmem:[#allocation2 + $0x1a8] sm:$0xff] -inf
        %412 = vst [vmem:[#allocation2 + $0x1b0] sm:$0xff] -inf
        %413 = vst [vmem:[#allocation2 + $0x1b8] sm:$0xff] -inf
        %414 = vst [vmem:[#allocation2 + $0x1c0] sm:$0xff] -inf
        %415 = vst [vmem:[#allocation2 + $0x1c8] sm:$0xff] -inf
        %416 = vst [vmem:[#allocation2 + $0x1d0] sm:$0xff] -inf
        %417 = vst [vmem:[#allocation2 + $0x1d8] sm:$0xff] -inf
        %418 = vst [vmem:[#allocation2 + $0x1e0] sm:$0xff] -inf
        %419 = vst [vmem:[#allocation2 + $0x1e8] sm:$0xff] -inf
        %420 = vst [vmem:[#allocation2 + $0x1f0] sm:$0xff] -inf
        %421 = vst [vmem:[#allocation2 + $0x1f8] sm:$0xff] -inf
        %422 = vst [vmem:[#allocation2 + $0x200] sm:$0xff] -inf
        %423 = vst [vmem:[#allocation2 + $0x208] sm:$0xff] -inf
        %424 = vst [vmem:[#allocation2 + $0x210] sm:$0xff] -inf
        %425 = vst [vmem:[#allocation2 + $0x218] sm:$0xff] -inf
        %426 = vst [vmem:[#allocation2 + $0x220] sm:$0xff] -inf
        %427 = vst [vmem:[#allocation2 + $0x228] sm:$0xff] -inf
        %428 = vst [vmem:[#allocation2 + $0x230] sm:$0xff] -inf
        %429 = vst [vmem:[#allocation2 + $0x238] sm:$0xff] -inf
        %430 = vst [vmem:[#allocation2 + $0x240] sm:$0xff] -inf
        %431 = vst [vmem:[#allocation2 + $0x248] sm:$0xff] -inf
        %432 = vst [vmem:[#allocation2 + $0x250] sm:$0xff] -inf
        %433 = vst [vmem:[#allocation2 + $0x258] sm:$0xff] -inf
        %434 = vst [vmem:[#allocation2 + $0x260] sm:$0xff] -inf
        %435 = vst [vmem:[#allocation2 + $0x268] sm:$0xff] -inf
        %436 = vst [vmem:[#allocation2 + $0x270] sm:$0xff] -inf
        %437 = vst [vmem:[#allocation2 + $0x278] sm:$0xff] -inf
        %438 = vst [vmem:[#allocation2 + $0x280] sm:$0xff] -inf
        %439 = vst [vmem:[#allocation2 + $0x288] sm:$0xff] -inf
        %440 = vst [vmem:[#allocation2 + $0x290] sm:$0xff] -inf
        %441 = vst [vmem:[#allocation2 + $0x298] sm:$0xff] -inf
        %442 = vst [vmem:[#allocation2 + $0x2a0] sm:$0xff] -inf
        %443 = vst [vmem:[#allocation2 + $0x2a8] sm:$0xff] -inf
        %444 = vst [vmem:[#allocation2 + $0x2b0] sm:$0xff] -inf
        %445 = vst [vmem:[#allocation2 + $0x2b8] sm:$0xff] -inf
        %446 = vst [vmem:[#allocation2 + $0x2c0] sm:$0xff] -inf
        %447 = vst [vmem:[#allocation2 + $0x2c8] sm:$0xff] -inf
        %448 = vst [vmem:[#allocation2 + $0x2d0] sm:$0xff] -inf
        %449 = vst [vmem:[#allocation2 + $0x2d8] sm:$0xff] -inf
        %450 = vst [vmem:[#allocation2 + $0x2e0] sm:$0xff] -inf
        %451 = vst [vmem:[#allocation2 + $0x2e8] sm:$0xff] -inf
        %452 = vst [vmem:[#allocation2 + $0x2f0] sm:$0xff] -inf
        %453 = vst [vmem:[#allocation2 + $0x2f8] sm:$0xff] -inf
        %454 = vst [vmem:[#allocation2 + $0x300] sm:$0xff] -inf
        %455 = vst [vmem:[#allocation2 + $0x308] sm:$0xff] -inf
        %456 = vst [vmem:[#allocation2 + $0x310] sm:$0xff] -inf
        %457 = vst [vmem:[#allocation2 + $0x318] sm:$0xff] -inf
        %458 = vst [vmem:[#allocation2 + $0x320] sm:$0xff] -inf
        %459 = vst [vmem:[#allocation2 + $0x328] sm:$0xff] -inf
        %460 = vst [vmem:[#allocation2 + $0x330] sm:$0xff] -inf
        %461 = vst [vmem:[#allocation2 + $0x338] sm:$0xff] -inf
        %462 = vst [vmem:[#allocation2 + $0x340] sm:$0xff] -inf
        %463 = vst [vmem:[#allocation2 + $0x348] sm:$0xff] -inf
        %464 = vst [vmem:[#allocation2 + $0x350] sm:$0xff] -inf
        %465 = vst [vmem:[#allocation2 + $0x358] sm:$0xff] -inf
        %466 = vst [vmem:[#allocation2 + $0x360] sm:$0xff] -inf
        %467 = vst [vmem:[#allocation2 + $0x368] sm:$0xff] -inf
        %468 = vst [vmem:[#allocation2 + $0x370] sm:$0xff] -inf
        %469 = vst [vmem:[#allocation2 + $0x378] sm:$0xff] -inf
        %470 = vst [vmem:[#allocation2 + $0x380] sm:$0xff] -inf
        %471 = vst [vmem:[#allocation2 + $0x388] sm:$0xff] -inf
        %472 = vst [vmem:[#allocation2 + $0x390] sm:$0xff] -inf
        %473 = vst [vmem:[#allocation2 + $0x398] sm:$0xff] -inf
        %474 = vst [vmem:[#allocation2 + $0x3a0] sm:$0xff] -inf
        %475 = vst [vmem:[#allocation2 + $0x3a8] sm:$0xff] -inf
        %476 = vst [vmem:[#allocation2 + $0x3b0] sm:$0xff] -inf
        %477 = vst [vmem:[#allocation2 + $0x3b8] sm:$0xff] -inf
        %478 = vst [vmem:[#allocation2 + $0x3c0] sm:$0xff] -inf
        %479 = vst [vmem:[#allocation2 + $0x3c8] sm:$0xff] -inf
        %480 = vst [vmem:[#allocation2 + $0x3d0] sm:$0xff] -inf
        %481 = vst [vmem:[#allocation2 + $0x3d8] sm:$0xff] -inf
        %482 = vst [vmem:[#allocation2 + $0x3e0] sm:$0xff] -inf
        %483 = vst [vmem:[#allocation2 + $0x3e8] sm:$0xff] -inf
        %484 = vst [vmem:[#allocation2 + $0x3f0] sm:$0xff] -inf
        %485 = vst [vmem:[#allocation2 + $0x3f8] sm:$0xff] -inf
      $region60: #{t_net_forward.1} parent=55 // pred_fallthru
        _
      %v486 = vld [vmem:[%s347] sm:$0x7]
      %v487 = vld [vmem:[%s1] sm:$0xff]
      %v488 = vld [vmem:[%s1 + $0x8] sm:$0xff]
      %v489 = vld [vmem:[%s1 + $0x10] sm:$0xff]
      %v490 = vld [vmem:[%s1 + $0x18] sm:$0xff]
      %v491 = vld [vmem:[%s1 + $0x20] sm:$0xff]
      %v492 = vld [vmem:[%s1 + $0x28] sm:$0xff]
      %v493 = vld [vmem:[%s1 + $0x30] sm:$0xff]
      %v494 = vld [vmem:[%s1 + $0x38] sm:$0xff]
      %496 = vset.pattern.permute.xlu0 0
      %497 = vperm.xlu0 %496, %v487
      %v498 = vpop.permute.xlu0 %497
      %501 = vset.pattern.permute.xlu0 0
      %502 = vperm.xlu0 %501, %v488
      %v503 = vpop.permute.xlu0 %502
      %506 = vset.pattern.permute.xlu0 0
      %507 = vperm.xlu0 %506, %v489
      %v508 = vpop.permute.xlu0 %507
      %511 = vset.pattern.permute.xlu0 0
      %512 = vperm.xlu0 %511, %v490
      %v513 = vpop.permute.xlu0 %512
      %516 = vset.pattern.permute.xlu0 0
      %517 = vperm.xlu0 %516, %v491
      %v518 = vpop.permute.xlu0 %517
      %521 = vset.pattern.permute.xlu0 0
      %522 = vperm.xlu0 %521, %v492
      %v523 = vpop.permute.xlu0 %522
      %526 = vset.pattern.permute.xlu0 0
      %527 = vperm.xlu0 %526, %v493
      %v528 = vpop.permute.xlu0 %527
      %531 = vset.pattern.permute.xlu0 0
      %532 = vperm.xlu0 %531, %v494
      %v533 = vpop.permute.xlu0 %532
      %v535 = vlaneseq
      %v536 = vshrl.u32 %v535, 7
      %v537 = vsub.s32 0, %v536
      %v538 = vrot.slane %v486, %v537
      %v539 = vmul.f32 %v498, %v538
      %v540 = vmul.f32 %v503, %v538
      %v541 = vmul.f32 %v508, %v538
      %v542 = vmul.f32 %v513, %v538
      %v543 = vmul.f32 %v518, %v538
      %v544 = vmul.f32 %v523, %v538
      %v545 = vmul.f32 %v528, %v538
      %v546 = vmul.f32 %v533, %v538
      %547 = vset.pattern.permute.xlu0 1
      %548 = vperm.xlu0 %547, %v487
      %v549 = vpop.permute.xlu0 %548
      %551 = vset.pattern.permute.xlu0 1
      %552 = vperm.xlu0 %551, %v488
      %v553 = vpop.permute.xlu0 %552
      %555 = vset.pattern.permute.xlu0 1
      %556 = vperm.xlu0 %555, %v489
      %v557 = vpop.permute.xlu0 %556
      %559 = vset.pattern.permute.xlu0 1
      %560 = vperm.xlu0 %559, %v490
      %v561 = vpop.permute.xlu0 %560
      %563 = vset.pattern.permute.xlu0 1
      %564 = vperm.xlu0 %563, %v491
      %v565 = vpop.permute.xlu0 %564
      %567 = vset.pattern.permute.xlu0 1
      %568 = vperm.xlu0 %567, %v492
      %v569 = vpop.permute.xlu0 %568
      %571 = vset.pattern.permute.xlu0 1
      %572 = vperm.xlu0 %571, %v493
      %v573 = vpop.permute.xlu0 %572
      %575 = vset.pattern.permute.xlu0 1
      %576 = vperm.xlu0 %575, %v494
      %v577 = vpop.permute.xlu0 %576
      %v579 = vlaneseq
      %v580 = vshrl.u32 %v579, 7
      %v581 = vsub.s32 1, %v580
      %v582 = vrot.slane %v486, %v581
      %v583 = vmul.f32 %v549, %v582
      %v584 = vmul.f32 %v553, %v582
      %v585 = vmul.f32 %v557, %v582
      %v586 = vmul.f32 %v561, %v582
      %v587 = vmul.f32 %v565, %v582
      %v588 = vmul.f32 %v569, %v582
      %v589 = vmul.f32 %v573, %v582
      %v590 = vmul.f32 %v577, %v582
      %v591 = vadd.f32 %v539, %v583
      %v592 = vadd.f32 %v540, %v584
      %v593 = vadd.f32 %v541, %v585
      %v594 = vadd.f32 %v542, %v586
      %v595 = vadd.f32 %v543, %v587
      %v596 = vadd.f32 %v544, %v588
      %v597 = vadd.f32 %v545, %v589
      %v598 = vadd.f32 %v546, %v590
      %599 = vset.pattern.permute.xlu0 2
      %600 = vperm.xlu0 %599, %v487
      %v601 = vpop.permute.xlu0 %600
      %603 = vset.pattern.permute.xlu0 2
      %604 = vperm.xlu0 %603, %v488
      %v605 = vpop.permute.xlu0 %604
      %607 = vset.pattern.permute.xlu0 2
      %608 = vperm.xlu0 %607, %v489
      %v609 = vpop.permute.xlu0 %608
      %611 = vset.pattern.permute.xlu0 2
      %612 = vperm.xlu0 %611, %v490
      %v613 = vpop.permute.xlu0 %612
      %615 = vset.pattern.permute.xlu0 2
      %616 = vperm.xlu0 %615, %v491
      %v617 = vpop.permute.xlu0 %616
      %619 = vset.pattern.permute.xlu0 2
      %620 = vperm.xlu0 %619, %v492
      %v621 = vpop.permute.xlu0 %620
      %623 = vset.pattern.permute.xlu0 2
      %624 = vperm.xlu0 %623, %v493
      %v625 = vpop.permute.xlu0 %624
      %627 = vset.pattern.permute.xlu0 2
      %628 = vperm.xlu0 %627, %v494
      %v629 = vpop.permute.xlu0 %628
      %v631 = vlaneseq
      %v632 = vshrl.u32 %v631, 7
      %v633 = vsub.s32 2, %v632
      %v634 = vrot.slane %v486, %v633
      %v635 = vmul.f32 %v601, %v634
      %v636 = vmul.f32 %v605, %v634
      %v637 = vmul.f32 %v609, %v634
      %v638 = vmul.f32 %v613, %v634
      %v639 = vmul.f32 %v617, %v634
      %v640 = vmul.f32 %v621, %v634
      %v641 = vmul.f32 %v625, %v634
      %v642 = vmul.f32 %v629, %v634
      %v643 = vadd.f32 %v591, %v635
      %v644 = vadd.f32 %v592, %v636
      %v645 = vadd.f32 %v593, %v637
      %v646 = vadd.f32 %v594, %v638
      %v647 = vadd.f32 %v595, %v639
      %v648 = vadd.f32 %v596, %v640
      %v649 = vadd.f32 %v597, %v641
      %v650 = vadd.f32 %v598, %v642
      %v651 = vld [vmem:[%s2] sm:$0xff]
      %v652 = vld [vmem:[%s2 + $0x8] sm:$0xff]
      %v653 = vld [vmem:[%s2 + $0x10] sm:$0xff]
      %v654 = vld [vmem:[%s2 + $0x18] sm:$0xff]
      %v655 = vld [vmem:[%s2 + $0x20] sm:$0xff]
      %v656 = vld [vmem:[%s2 + $0x28] sm:$0xff]
      %v657 = vld [vmem:[%s2 + $0x30] sm:$0xff]
      %v658 = vld [vmem:[%s2 + $0x38] sm:$0xff]
      %660 = vset.pattern.permute.xlu0 0
      %661 = vperm.xlu0 %660, %v651
      %v662 = vpop.permute.xlu0 %661
      %665 = vset.pattern.permute.xlu0 0
      %666 = vperm.xlu0 %665, %v652
      %v667 = vpop.permute.xlu0 %666
      %670 = vset.pattern.permute.xlu0 0
      %671 = vperm.xlu0 %670, %v653
      %v672 = vpop.permute.xlu0 %671
      %675 = vset.pattern.permute.xlu0 0
      %676 = vperm.xlu0 %675, %v654
      %v677 = vpop.permute.xlu0 %676
      %680 = vset.pattern.permute.xlu0 0
      %681 = vperm.xlu0 %680, %v655
      %v682 = vpop.permute.xlu0 %681
      %685 = vset.pattern.permute.xlu0 0
      %686 = vperm.xlu0 %685, %v656
      %v687 = vpop.permute.xlu0 %686
      %690 = vset.pattern.permute.xlu0 0
      %691 = vperm.xlu0 %690, %v657
      %v692 = vpop.permute.xlu0 %691
      %695 = vset.pattern.permute.xlu0 0
      %696 = vperm.xlu0 %695, %v658
      %v697 = vpop.permute.xlu0 %696
      %v699 = vadd.f32 %v643, %v662
      %v700 = vadd.f32 %v644, %v667
      %v701 = vadd.f32 %v645, %v672
      %v702 = vadd.f32 %v646, %v677
      %v703 = vadd.f32 %v647, %v682
      %v704 = vadd.f32 %v648, %v687
      %v705 = vadd.f32 %v649, %v692
      %v706 = vadd.f32 %v650, %v697
      %v707 = vmax.f32 %v699, 0.0
      %v708 = vmax.f32 %v700, 0.0
      %v709 = vmax.f32 %v701, 0.0
      %v710 = vmax.f32 %v702, 0.0
      %v711 = vmax.f32 %v703, 0.0
      %v712 = vmax.f32 %v704, 0.0
      %v713 = vmax.f32 %v705, 0.0
      %v714 = vmax.f32 %v706, 0.0
      %v715 = vpack.c.bf16 %v708, %v707
      %v716 = vpack.c.bf16 %v710, %v709
      %v717 = vpack.c.bf16 %v712, %v711
      %v718 = vpack.c.bf16 %v714, %v713
      %v719 = vld [vmem:[%s3] sm:$0xf]
      %v720 = vld [vmem:[%s3 + $0x4] sm:$0xf]
      %v721 = vld [vmem:[%s3 + $0x8] sm:$0xf]
      %v722 = vld [vmem:[%s3 + $0xc] sm:$0xf]
      %v723 = vld [vmem:[%s3 + $0x10] sm:$0xf]
      %v724 = vld [vmem:[%s3 + $0x14] sm:$0xf]
      %v725 = vld [vmem:[%s3 + $0x18] sm:$0xf]
      %v726 = vld [vmem:[%s3 + $0x1c] sm:$0xf]
      %v727 = vld [vmem:[%s3 + $0x20] sm:$0xf]
      %v728 = vld [vmem:[%s3 + $0x24] sm:$0xf]
      %v729 = vld [vmem:[%s3 + $0x28] sm:$0xf]
      %v730 = vld [vmem:[%s3 + $0x2c] sm:$0xf]
      %v731 = vld [vmem:[%s3 + $0x30] sm:$0xf]
      %v732 = vld [vmem:[%s3 + $0x34] sm:$0xf]
      %v733 = vld [vmem:[%s3 + $0x38] sm:$0xf]
      %v734 = vld [vmem:[%s3 + $0x3c] sm:$0xf]
      %v735 = vld [vmem:[%s3 + $0x40] sm:$0xf]
      %v736 = vld [vmem:[%s3 + $0x44] sm:$0xf]
      %v737 = vld [vmem:[%s3 + $0x48] sm:$0xf]
      %v738 = vld [vmem:[%s3 + $0x4c] sm:$0xf]
      %v739 = vld [vmem:[%s3 + $0x50] sm:$0xf]
      %v740 = vld [vmem:[%s3 + $0x54] sm:$0xf]
      %v741 = vld [vmem:[%s3 + $0x58] sm:$0xf]
      %v742 = vld [vmem:[%s3 + $0x5c] sm:$0xf]
      %v743 = vld [vmem:[%s3 + $0x60] sm:$0xf]
      %v744 = vld [vmem:[%s3 + $0x64] sm:$0xf]
      %v745 = vld [vmem:[%s3 + $0x68] sm:$0xf]
      %v746 = vld [vmem:[%s3 + $0x6c] sm:$0xf]
      %v747 = vld [vmem:[%s3 + $0x70] sm:$0xf]
      %v748 = vld [vmem:[%s3 + $0x74] sm:$0xf]
      %v749 = vld [vmem:[%s3 + $0x78] sm:$0xf]
      %v750 = vld [vmem:[%s3 + $0x7c] sm:$0xf]
      %v783 = vunpack.c.l.b16 %v719
      %v784 = vunpack.c.l.b16 %v720
      %v785 = vunpack.c.l.b16 %v721
      %v786 = vunpack.c.l.b16 %v722
      %v787 = vunpack.c.l.b16 %v723
      %v788 = vunpack.c.l.b16 %v724
      %v789 = vunpack.c.l.b16 %v725
      %v790 = vunpack.c.l.b16 %v726
      %v791 = vunpack.c.l.b16 %v727
      %v792 = vunpack.c.l.b16 %v728
      %v793 = vunpack.c.l.b16 %v729
      %v794 = vunpack.c.l.b16 %v730
      %v795 = vunpack.c.l.b16 %v731
      %v796 = vunpack.c.l.b16 %v732
      %v797 = vunpack.c.l.b16 %v733
      %v798 = vunpack.c.l.b16 %v734
      %v799 = vunpack.c.l.b16 %v735
      %v800 = vunpack.c.l.b16 %v736
      %v801 = vunpack.c.l.b16 %v737
      %v802 = vunpack.c.l.b16 %v738
      %v803 = vunpack.c.l.b16 %v739
      %v804 = vunpack.c.l.b16 %v740
      %v805 = vunpack.c.l.b16 %v741
      %v806 = vunpack.c.l.b16 %v742
      %v807 = vunpack.c.l.b16 %v743
      %v808 = vunpack.c.l.b16 %v744
      %v809 = vunpack.c.l.b16 %v745
      %v810 = vunpack.c.l.b16 %v746
      %v811 = vunpack.c.l.b16 %v747
      %v812 = vunpack.c.l.b16 %v748
      %v813 = vunpack.c.l.b16 %v749
      %v814 = vunpack.c.l.b16 %v750
      %v815 = vpack.c.b16 %v784, %v783
      %v816 = vpack.c.b16 %v786, %v785
      %v817 = vpack.c.b16 %v788, %v787
      %v818 = vpack.c.b16 %v790, %v789
      %v819 = vpack.c.b16 %v792, %v791
      %v820 = vpack.c.b16 %v794, %v793
      %v821 = vpack.c.b16 %v796, %v795
      %v822 = vpack.c.b16 %v798, %v797
      %v823 = vpack.c.b16 %v800, %v799
      %v824 = vpack.c.b16 %v802, %v801
      %v825 = vpack.c.b16 %v804, %v803
      %v826 = vpack.c.b16 %v806, %v805
      %v827 = vpack.c.b16 %v808, %v807
      %v828 = vpack.c.b16 %v810, %v809
      %v829 = vpack.c.b16 %v812, %v811
      %v830 = vpack.c.b16 %v814, %v813
      %vm831 = vcmask 523264
      %v833 = vsel %vm831, %v815, 0
      %v836 = vsel %vm831, %v816, 0
      %v839 = vsel %vm831, %v817, 0
      %v842 = vsel %vm831, %v818, 0
      %v845 = vsel %vm831, %v819, 0
      %v848 = vsel %vm831, %v820, 0
      %v851 = vsel %vm831, %v821, 0
      %v854 = vsel %vm831, %v822, 0
      %v857 = vsel %vm831, %v823, 0
      %v860 = vsel %vm831, %v824, 0
      %v863 = vsel %vm831, %v825, 0
      %v866 = vsel %vm831, %v826, 0
      %v869 = vsel %vm831, %v827, 0
      %v872 = vsel %vm831, %v828, 0
      %v875 = vsel %vm831, %v829, 0
      %v878 = vsel %vm831, %v830, 0
      %880 = vmatprep.subr.bf16.mxu0 0
      %881 = vmatpush1.bf16.msra.mxu0 %v715
      %882 = vmatprep.subr.bf16.mxu0 0
      %883 = vmatpush1.bf16.msra.mxu0 %v716
      %884 = vmatprep.subr.bf16.mxu0 0
      %885 = vmatpush1.bf16.msra.mxu0 %v717
      %886 = vmatprep.subr.bf16.mxu0 0
      %887 = vmatpush1.bf16.msra.mxu0 %v718
      %888 = vmatprep.subr.bf16.mxu0 0
      %889 = vmatpush1.bf16.msra.mxu0 0
      %890 = vmatprep.subr.bf16.mxu0 0
      %891 = vmatpush1.bf16.msra.mxu0 0
      %892 = vmatprep.subr.bf16.mxu0 0
      %893 = vmatpush1.bf16.msra.mxu0 0
      %894 = vmatprep.subr.bf16.mxu0 0
      %895 = vmatpush1.bf16.msra.mxu0 0
      %896 = vmatprep.subr.bf16.mxu0 0
      %897 = vmatpush1.bf16.msra.mxu0 0
      %898 = vmatprep.subr.bf16.mxu0 0
      %899 = vmatpush1.bf16.msra.mxu0 0
      %900 = vmatprep.subr.bf16.mxu0 0
      %901 = vmatpush1.bf16.msra.mxu0 0
      %902 = vmatprep.subr.bf16.mxu0 0
      %903 = vmatpush1.bf16.msra.mxu0 0
      %904 = vmatprep.subr.bf16.mxu0 0
      %905 = vmatpush1.bf16.msra.mxu0 0
      %906 = vmatprep.subr.bf16.mxu0 0
      %907 = vmatpush1.bf16.msra.mxu0 0
      %908 = vmatprep.subr.bf16.mxu0 0
      %909 = vmatpush1.bf16.msra.mxu0 0
      %910 = vmatprep.subr.bf16.mxu0 0
      %911 = vmatpush1.bf16.msra.mxu0 0
      %912 = vmatprep.mubr.bf16.mxu0 0
      %913 = vmatmul.mubr.bf16.gmra.mrb[0].mxu0 %v833
      %v914 = vpop.f32.mrb[0].mxu0
      %v915 = vadd.f32 0.0, %v914
      %v916 = vpop.f32.mrb[0].mxu0
      %v917 = vpop.f32.mrb[0].mxu0
      %v918 = vadd.f32 0.0, %v917
      %v919 = vpop.f32.mrb[0].mxu0
      %920 = vmatprep.mubr.bf16.mxu0 0
      %921 = vmatmul.mubr.bf16.gmra.mrb[0].mxu0 %v836
      %v922 = vpop.f32.mrb[0].mxu0
      %v923 = vadd.f32 0.0, %v922
      %v924 = vpop.f32.mrb[0].mxu0
      %v925 = vpop.f32.mrb[0].mxu0
      %v926 = vadd.f32 0.0, %v925
      %v927 = vpop.f32.mrb[0].mxu0
      %928 = vmatprep.mubr.bf16.mxu0 0
      %929 = vmatmul.mubr.bf16.gmra.mrb[0].mxu0 %v839
      %v930 = vpop.f32.mrb[0].mxu0
      %v931 = vadd.f32 0.0, %v930
      %v932 = vpop.f32.mrb[0].mxu0
      %v933 = vpop.f32.mrb[0].mxu0
      %v934 = vadd.f32 0.0, %v933
      %v935 = vpop.f32.mrb[0].mxu0
      %936 = vmatprep.mubr.bf16.mxu0 0
      %937 = vmatmul.mubr.bf16.gmra.mrb[0].mxu0 %v842
      %v938 = vpop.f32.mrb[0].mxu0
      %v939 = vadd.f32 0.0, %v938
      %v940 = vpop.f32.mrb[0].mxu0
      %v941 = vpop.f32.mrb[0].mxu0
      %v942 = vadd.f32 0.0, %v941
      %v943 = vpop.f32.mrb[0].mxu0
      %944 = vmatprep.mubr.bf16.mxu0 0
      %945 = vmatmul.mubr.bf16.gmra.mrb[0].mxu0 %v845
      %v946 = vpop.f32.mrb[0].mxu0
      %v947 = vadd.f32 0.0, %v946
      %v948 = vpop.f32.mrb[0].mxu0
      %v949 = vpop.f32.mrb[0].mxu0
      %v950 = vadd.f32 0.0, %v949
      %v951 = vpop.f32.mrb[0].mxu0
      %952 = vmatprep.mubr.bf16.mxu0 0
      %953 = vmatmul.mubr.bf16.gmra.mrb[0].mxu0 %v848
      %v954 = vpop.f32.mrb[0].mxu0
      %v955 = vadd.f32 0.0, %v954
      %v956 = vpop.f32.mrb[0].mxu0
      %v957 = vpop.f32.mrb[0].mxu0
      %v958 = vadd.f32 0.0, %v957
      %v959 = vpop.f32.mrb[0].mxu0
      %960 = vmatprep.mubr.bf16.mxu0 0
      %961 = vmatmul.mubr.bf16.gmra.mrb[0].mxu0 %v851
      %v962 = vpop.f32.mrb[0].mxu0
      %v963 = vadd.f32 0.0, %v962
      %v964 = vpop.f32.mrb[0].mxu0
      %v965 = vpop.f32.mrb[0].mxu0
      %v966 = vadd.f32 0.0, %v965
      %v967 = vpop.f32.mrb[0].mxu0
      %968 = vmatprep.mubr.bf16.mxu0 0
      %969 = vmatmul.mubr.bf16.gmra.mrb[0].mxu0 %v854
      %v970 = vpop.f32.mrb[0].mxu0
      %v971 = vadd.f32 0.0, %v970
      %v972 = vpop.f32.mrb[0].mxu0
      %v973 = vpop.f32.mrb[0].mxu0
      %v974 = vadd.f32 0.0, %v973
      %v975 = vpop.f32.mrb[0].mxu0
      %976 = vmatprep.mubr.bf16.mxu0 0
      %977 = vmatmul.mubr.bf16.gmra.mrb[0].mxu0 %v857
      %v978 = vpop.f32.mrb[0].mxu0
      %v979 = vadd.f32 0.0, %v978
      %v980 = vpop.f32.mrb[0].mxu0
      %v981 = vpop.f32.mrb[0].mxu0
      %v982 = vadd.f32 0.0, %v981
      %v983 = vpop.f32.mrb[0].mxu0
      %984 = vmatprep.mubr.bf16.mxu0 0
      %985 = vmatmul.mubr.bf16.gmra.mrb[0].mxu0 %v860
      %v986 = vpop.f32.mrb[0].mxu0
      %v987 = vadd.f32 0.0, %v986
      %v988 = vpop.f32.mrb[0].mxu0
      %v989 = vpop.f32.mrb[0].mxu0
      %v990 = vadd.f32 0.0, %v989
      %v991 = vpop.f32.mrb[0].mxu0
      %992 = vmatprep.mubr.bf16.mxu0 0
      %993 = vmatmul.mubr.bf16.gmra.mrb[0].mxu0 %v863
      %v994 = vpop.f32.mrb[0].mxu0
      %v995 = vadd.f32 0.0, %v994
      %v996 = vpop.f32.mrb[0].mxu0
      %v997 = vpop.f32.mrb[0].mxu0
      %v998 = vadd.f32 0.0, %v997
      %v999 = vpop.f32.mrb[0].mxu0
      %1000 = vmatprep.mubr.bf16.mxu0 0
      %1001 = vmatmul.mubr.bf16.gmra.mrb[0].mxu0 %v866
      %v1002 = vpop.f32.mrb[0].mxu0
      %v1003 = vadd.f32 0.0, %v1002
      %v1004 = vpop.f32.mrb[0].mxu0
      %v1005 = vpop.f32.mrb[0].mxu0
      %v1006 = vadd.f32 0.0, %v1005
      %v1007 = vpop.f32.mrb[0].mxu0
      %1008 = vmatprep.mubr.bf16.mxu0 0
      %1009 = vmatmul.mubr.bf16.gmra.mrb[0].mxu0 %v869
      %v1010 = vpop.f32.mrb[0].mxu0
      %v1011 = vadd.f32 0.0, %v1010
      %v1012 = vpop.f32.mrb[0].mxu0
      %v1013 = vpop.f32.mrb[0].mxu0
      %v1014 = vadd.f32 0.0, %v1013
      %v1015 = vpop.f32.mrb[0].mxu0
      %1016 = vmatprep.mubr.bf16.mxu0 0
      %1017 = vmatmul.mubr.bf16.gmra.mrb[0].mxu0 %v872
      %v1018 = vpop.f32.mrb[0].mxu0
      %v1019 = vadd.f32 0.0, %v1018
      %v1020 = vpop.f32.mrb[0].mxu0
      %v1021 = vpop.f32.mrb[0].mxu0
      %v1022 = vadd.f32 0.0, %v1021
      %v1023 = vpop.f32.mrb[0].mxu0
      %1024 = vmatprep.mubr.bf16.mxu0 0
      %1025 = vmatmul.mubr.bf16.gmra.mrb[0].mxu0 %v875
      %v1026 = vpop.f32.mrb[0].mxu0
      %v1027 = vadd.f32 0.0, %v1026
      %v1028 = vpop.f32.mrb[0].mxu0
      %v1029 = vpop.f32.mrb[0].mxu0
      %v1030 = vadd.f32 0.0, %v1029
      %v1031 = vpop.f32.mrb[0].mxu0
      %1032 = vmatprep.mubr.bf16.mxu0 0
      %1033 = vmatmul.mubr.bf16.gmra.mrb[0].mxu0 %v878
      %v1034 = vpop.f32.mrb[0].mxu0
      %v1035 = vadd.f32 0.0, %v1034
      %v1036 = vpop.f32.mrb[0].mxu0
      %v1037 = vpop.f32.mrb[0].mxu0
      %v1038 = vadd.f32 0.0, %v1037
      %v1039 = vpop.f32.mrb[0].mxu0
      %1040 = vdwg.mxu0
      %v1041 = vld [vmem:[#allocation2] sm:$0xff]
      %v1042 = vld [vmem:[#allocation2 + $0x8] sm:$0xff]
      %v1043 = vld [vmem:[#allocation2 + $0x10] sm:$0xff]
      %v1044 = vld [vmem:[#allocation2 + $0x18] sm:$0xff]
      %v1045 = vld [vmem:[#allocation2 + $0x20] sm:$0xff]
      %v1046 = vld [vmem:[#allocation2 + $0x28] sm:$0xff]
      %v1047 = vld [vmem:[#allocation2 + $0x30] sm:$0xff]
      %v1048 = vld [vmem:[#allocation2 + $0x38] sm:$0xff]
      %v1049 = vld [vmem:[#allocation2 + $0x40] sm:$0xff]
      %v1050 = vld [vmem:[#allocation2 + $0x48] sm:$0xff]
      %v1051 = vld [vmem:[#allocation2 + $0x50] sm:$0xff]
      %v1052 = vld [vmem:[#allocation2 + $0x58] sm:$0xff]
      %v1053 = vld [vmem:[#allocation2 + $0x60] sm:$0xff]
      %v1054 = vld [vmem:[#allocation2 + $0x68] sm:$0xff]
      %v1055 = vld [vmem:[#allocation2 + $0x70] sm:$0xff]
      %v1056 = vld [vmem:[#allocation2 + $0x78] sm:$0xff]
      %v1057 = vld [vmem:[#allocation2 + $0x80] sm:$0xff]
      %v1058 = vld [vmem:[#allocation2 + $0x88] sm:$0xff]
      %v1059 = vld [vmem:[#allocation2 + $0x90] sm:$0xff]
      %v1060 = vld [vmem:[#allocation2 + $0x98] sm:$0xff]
      %v1061 = vld [vmem:[#allocation2 + $0xa0] sm:$0xff]
      %v1062 = vld [vmem:[#allocation2 + $0xa8] sm:$0xff]
      %v1063 = vld [vmem:[#allocation2 + $0xb0] sm:$0xff]
      %v1064 = vld [vmem:[#allocation2 + $0xb8] sm:$0xff]
      %v1065 = vld [vmem:[#allocation2 + $0xc0] sm:$0xff]
      %v1066 = vld [vmem:[#allocation2 + $0xc8] sm:$0xff]
      %v1067 = vld [vmem:[#allocation2 + $0xd0] sm:$0xff]
      %v1068 = vld [vmem:[#allocation2 + $0xd8] sm:$0xff]
      %v1069 = vld [vmem:[#allocation2 + $0xe0] sm:$0xff]
      %v1070 = vld [vmem:[#allocation2 + $0xe8] sm:$0xff]
      %v1071 = vld [vmem:[#allocation2 + $0xf0] sm:$0xff]
      %v1072 = vld [vmem:[#allocation2 + $0xf8] sm:$0xff]
      %v1073 = vmax.f32 %v1041, %v915
      %v1074 = vmax.f32 %v1042, %v918
      %v1075 = vmax.f32 %v1043, %v923
      %v1076 = vmax.f32 %v1044, %v926
      %v1077 = vmax.f32 %v1045, %v931
      %v1078 = vmax.f32 %v1046, %v934
      %v1079 = vmax.f32 %v1047, %v939
      %v1080 = vmax.f32 %v1048, %v942
      %v1081 = vmax.f32 %v1049, %v947
      %v1082 = vmax.f32 %v1050, %v950
      %v1083 = vmax.f32 %v1051, %v955
      %v1084 = vmax.f32 %v1052, %v958
      %v1085 = vmax.f32 %v1053, %v963
      %v1086 = vmax.f32 %v1054, %v966
      %v1087 = vmax.f32 %v1055, %v971
      %v1088 = vmax.f32 %v1056, %v974
      %v1089 = vmax.f32 %v1057, %v979
      %v1090 = vmax.f32 %v1058, %v982
      %v1091 = vmax.f32 %v1059, %v987
      %v1092 = vmax.f32 %v1060, %v990
      %v1093 = vmax.f32 %v1061, %v995
      %v1094 = vmax.f32 %v1062, %v998
      %v1095 = vmax.f32 %v1063, %v1003
      %v1096 = vmax.f32 %v1064, %v1006
      %v1097 = vmax.f32 %v1065, %v1011
      %v1098 = vmax.f32 %v1066, %v1014
      %v1099 = vmax.f32 %v1067, %v1019
      %v1100 = vmax.f32 %v1068, %v1022
      %v1101 = vmax.f32 %v1069, %v1027
      %v1102 = vmax.f32 %v1070, %v1030
      %v1103 = vmax.f32 %v1071, %v1035
      %v1104 = vmax.f32 %v1072, %v1038
      %1105 = vst [vmem:[#allocation2] sm:$0xff] %v1073
      %1106 = vst [vmem:[#allocation2 + $0x8] sm:$0xff] %v1074
      %1107 = vst [vmem:[#allocation2 + $0x10] sm:$0xff] %v1075
      %1108 = vst [vmem:[#allocation2 + $0x18] sm:$0xff] %v1076
      %1109 = vst [vmem:[#allocation2 + $0x20] sm:$0xff] %v1077
      %1110 = vst [vmem:[#allocation2 + $0x28] sm:$0xff] %v1078
      %1111 = vst [vmem:[#allocation2 + $0x30] sm:$0xff] %v1079
      %1112 = vst [vmem:[#allocation2 + $0x38] sm:$0xff] %v1080
      %1113 = vst [vmem:[#allocation2 + $0x40] sm:$0xff] %v1081
      %1114 = vst [vmem:[#allocation2 + $0x48] sm:$0xff] %v1082
      %1115 = vst [vmem:[#allocation2 + $0x50] sm:$0xff] %v1083
      %1116 = vst [vmem:[#allocation2 + $0x58] sm:$0xff] %v1084
      %1117 = vst [vmem:[#allocation2 + $0x60] sm:$0xff] %v1085
      %1118 = vst [vmem:[#allocation2 + $0x68] sm:$0xff] %v1086
      %1119 = vst [vmem:[#allocation2 + $0x70] sm:$0xff] %v1087
      %1120 = vst [vmem:[#allocation2 + $0x78] sm:$0xff] %v1088
      %1121 = vst [vmem:[#allocation2 + $0x80] sm:$0xff] %v1089
      %1122 = vst [vmem:[#allocation2 + $0x88] sm:$0xff] %v1090
      %1123 = vst [vmem:[#allocation2 + $0x90] sm:$0xff] %v1091
      %1124 = vst [vmem:[#allocation2 + $0x98] sm:$0xff] %v1092
      %1125 = vst [vmem:[#allocation2 + $0xa0] sm:$0xff] %v1093
      %1126 = vst [vmem:[#allocation2 + $0xa8] sm:$0xff] %v1094
      %1127 = vst [vmem:[#allocation2 + $0xb0] sm:$0xff] %v1095
      %1128 = vst [vmem:[#allocation2 + $0xb8] sm:$0xff] %v1096
      %1129 = vst [vmem:[#allocation2 + $0xc0] sm:$0xff] %v1097
      %1130 = vst [vmem:[#allocation2 + $0xc8] sm:$0xff] %v1098
      %1131 = vst [vmem:[#allocation2 + $0xd0] sm:$0xff] %v1099
      %1132 = vst [vmem:[#allocation2 + $0xd8] sm:$0xff] %v1100
      %1133 = vst [vmem:[#allocation2 + $0xe0] sm:$0xff] %v1101
      %1134 = vst [vmem:[#allocation2 + $0xe8] sm:$0xff] %v1102
      %1135 = vst [vmem:[#allocation2 + $0xf0] sm:$0xff] %v1103
      %1136 = vst [vmem:[#allocation2 + $0xf8] sm:$0xff] %v1104
      %v1137 = vld [vmem:[%s3 + $0x80] sm:$0xf]
      %v1138 = vld [vmem:[%s3 + $0x84] sm:$0xf]
      %v1139 = vld [vmem:[%s3 + $0x88] sm:$0xf]
      %v1140 = vld [vmem:[%s3 + $0x8c] sm:$0xf]
      %v1141 = vld [vmem:[%s3 + $0x90] sm:$0xf]
      %v1142 = vld [vmem:[%s3 + $0x94] sm:$0xf]
      %v1143 = vld [vmem:[%s3 + $0x98] sm:$0xf]
      %v1144 = vld [vmem:[%s3 + $0x9c] sm:$0xf]
      %v1145 = vld [vmem:[%s3 + $0xa0] sm:$0xf]
      %v1146 = vld [vmem:[%s3 + $0xa4] sm:$0xf]
      %v1147 = vld [vmem:[%s3 + $0xa8] sm:$0xf]
      %v1148 = vld [vmem:[%s3 + $0xac] sm:$0xf]
      %v1149 = vld [vmem:[%s3 + $0xb0] sm:$0xf]
      %v1150 = vld [vmem:[%s3 + $0xb4] sm:$0xf]
      %v1151 = vld [vmem:[%s3 + $0xb8] sm:$0xf]
      %v1152 = vld [vmem:[%s3 + $0xbc] sm:$0xf]
      %v1153 = vld [vmem:[%s3 + $0xc0] sm:$0xf]
      %v1154 = vld [vmem:[%s3 + $0xc4] sm:$0xf]
      %v1155 = vld [vmem:[%s3 + $0xc8] sm:$0xf]
      %v1156 = vld [vmem:[%s3 + $0xcc] sm:$0xf]
      %v1157 = vld [vmem:[%s3 + $0xd0] sm:$0xf]
      %v1158 = vld [vmem:[%s3 + $0xd4] sm:$0xf]
      %v1159 = vld [vmem:[%s3 + $0xd8] sm:$0xf]
      %v1160 = vld [vmem:[%s3 + $0xdc] sm:$0xf]
      %v1161 = vld [vmem:[%s3 + $0xe0] sm:$0xf]
      %v1162 = vld [vmem:[%s3 + $0xe4] sm:$0xf]
      %v1163 = vld [vmem:[%s3 + $0xe8] sm:$0xf]
      %v1164 = vld [vmem:[%s3 + $0xec] sm:$0xf]
      %v1165 = vld [vmem:[%s3 + $0xf0] sm:$0xf]
      %v1166 = vld [vmem:[%s3 + $0xf4] sm:$0xf]
      %v1167 = vld [vmem:[%s3 + $0xf8] sm:$0xf]
      %v1168 = vld [vmem:[%s3 + $0xfc] sm:$0xf]
      %v1201 = vunpack.c.l.b16 %v1137
      %v1202 = vunpack.c.l.b16 %v1138
      %v1203 = vunpack.c.l.b16 %v1139
      %v1204 = vunpack.c.l.b16 %v1140
      %v1205 = vunpack.c.l.b16 %v1141
      %v1206 = vunpack.c.l.b16 %v1142
      %v1207 = vunpack.c.l.b16 %v1143
      %v1208 = vunpack.c.l.b16 %v1144
      %v1209 = vunpack.c.l.b16 %v1145
      %v1210 = vunpack.c.l.b16 %v1146
      %v1211 = vunpack.c.l.b16 %v1147
      %v1212 = vunpack.c.l.b16 %v1148
      %v1213 = vunpack.c.l.b16 %v1149
      %v1214 = vunpack.c.l.b16 %v1150
      %v1215 = vunpack.c.l.b16 %v1151
      %v1216 = vunpack.c.l.b16 %v1152
      %v1217 = vunpack.c.l.b16 %v1153
      %v1218 = vunpack.c.l.b16 %v1154
      %v1219 = vunpack.c.l.b16 %v1155
      %v1220 = vunpack.c.l.b16 %v1156
      %v1221 = vunpack.c.l.b16 %v1157
      %v1222 = vunpack.c.l.b16 %v1158
      %v1223 = vunpack.c.l.b16 %v1159
      %v1224 = vunpack.c.l.b16 %v1160
      %v1225 = vunpack.c.l.b16 %v1161
      %v1226 = vunpack.c.l.b16 %v1162
      %v1227 = vunpack.c.l.b16 %v1163
      %v1228 = vunpack.c.l.b16 %v1164
      %v1229 = vunpack.c.l.b16 %v1165
      %v1230 = vunpack.c.l.b16 %v1166
      %v1231 = vunpack.c.l.b16 %v1167
      %v1232 = vunpack.c.l.b16 %v1168
      %v1233 = vpack.c.b16 %v1202, %v1201
      %v1234 = vpack.c.b16 %v1204, %v1203
      %v1235 = vpack.c.b16 %v1206, %v1205
      %v1236 = vpack.c.b16 %v1208, %v1207
      %v1237 = vpack.c.b16 %v1210, %v1209
      %v1238 = vpack.c.b16 %v1212, %v1211
      %v1239 = vpack.c.b16 %v1214, %v1213
      %v1240 = vpack.c.b16 %v1216, %v1215
      %v1241 = vpack.c.b16 %v1218, %v1217
      %v1242 = vpack.c.b16 %v1220, %v1219
      %v1243 = vpack.c.b16 %v1222, %v1221
      %v1244 = vpack.c.b16 %v1224, %v1223
      %v1245 = vpack.c.b16 %v1226, %v1225
      %v1246 = vpack.c.b16 %v1228, %v1227
      %v1247 = vpack.c.b16 %v1230, %v1229
      %v1248 = vpack.c.b16 %v1232, %v1231
      %v1250 = vsel %vm831, %v1233, 0
      %v1253 = vsel %vm831, %v1234, 0
      %v1256 = vsel %vm831, %v1235, 0
      %v1259 = vsel %vm831, %v1236, 0
      %v1262 = vsel %vm831, %v1237, 0
      %v1265 = vsel %vm831, %v1238, 0
      %v1268 = vsel %vm831, %v1239, 0
      %v1271 = vsel %vm831, %v1240, 0
      %v1274 = vsel %vm831, %v1241, 0
      %v1277 = vsel %vm831, %v1242, 0
      %v1280 = vsel %vm831, %v1243, 0
      %v1283 = vsel %vm831, %v1244, 0
      %v1286 = vsel %vm831, %v1245, 0
      %v1289 = vsel %vm831, %v1246, 0
      %v1292 = vsel %vm831, %v1247, 0
      %v1295 = vsel %vm831, %v1248, 0
      %1297 = vmatprep.subr.bf16.mxu0 0
      %1298 = vmatpush1.bf16.msra.mxu0 %v715
      %1299 = vmatprep.subr.bf16.mxu0 0
      %1300 = vmatpush1.bf16.msra.mxu0 %v716
      %1301 = vmatprep.subr.bf16.mxu0 0
      %1302 = vmatpush1.bf16.msra.mxu0 %v717
      %1303 = vmatprep.subr.bf16.mxu0 0
      %1304 = vmatpush1.bf16.msra.mxu0 %v718
      %1305 = vmatprep.subr.bf16.mxu0 0
      %1306 = vmatpush1.bf16.msra.mxu0 0
      %1307 = vmatprep.subr.bf16.mxu0 0
      %1308 = vmatpush1.bf16.msra.mxu0 0
      %1309 = vmatprep.subr.bf16.mxu0 0
      %1310 = vmatpush1.bf16.msra.mxu0 0
      %1311 = vmatprep.subr.bf16.mxu0 0
      %1312 = vmatpush1.bf16.msra.mxu0 0
      %1313 = vmatprep.subr.bf16.mxu0 0
      %1314 = vmatpush1.bf16.msra.mxu0 0
      %1315 = vmatprep.subr.bf16.mxu0 0
      %1316 = vmatpush1.bf16.msra.mxu0 0
      %1317 = vmatprep.subr.bf16.mxu0 0
      %1318 = vmatpush1.bf16.msra.mxu0 0
      %1319 = vmatprep.subr.bf16.mxu0 0
      %1320 = vmatpush1.bf16.msra.mxu0 0
      %1321 = vmatprep.subr.bf16.mxu0 0
      %1322 = vmatpush1.bf16.msra.mxu0 0
      %1323 = vmatprep.subr.bf16.mxu0 0
      %1324 = vmatpush1.bf16.msra.mxu0 0
      %1325 = vmatprep.subr.bf16.mxu0 0
      %1326 = vmatpush1.bf16.msra.mxu0 0
      %1327 = vmatprep.subr.bf16.mxu0 0
      %1328 = vmatpush1.bf16.msra.mxu0 0
      %1329 = vmatprep.mubr.bf16.mxu0 0
      %1330 = vmatmul.mubr.bf16.gmra.mrb[0].mxu0 %v1250
      %v1331 = vpop.f32.mrb[0].mxu0
      %v1332 = vadd.f32 0.0, %v1331
      %v1333 = vpop.f32.mrb[0].mxu0
      %v1334 = vpop.f32.mrb[0].mxu0
      %v1335 = vadd.f32 0.0, %v1334
      %v1336 = vpop.f32.mrb[0].mxu0
      %1337 = vmatprep.mubr.bf16.mxu0 0
      %1338 = vmatmul.mubr.bf16.gmra.mrb[0].mxu0 %v1253
      %v1339 = vpop.f32.mrb[0].mxu0
      %v1340 = vadd.f32 0.0, %v1339
      %v1341 = vpop.f32.mrb[0].mxu0
      %v1342 = vpop.f32.mrb[0].mxu0
      %v1343 = vadd.f32 0.0, %v1342
      %v1344 = vpop.f32.mrb[0].mxu0
      %1345 = vmatprep.mubr.bf16.mxu0 0
      %1346 = vmatmul.mubr.bf16.gmra.mrb[0].mxu0 %v1256
      %v1347 = vpop.f32.mrb[0].mxu0
      %v1348 = vadd.f32 0.0, %v1347
      %v1349 = vpop.f32.mrb[0].mxu0
      %v1350 = vpop.f32.mrb[0].mxu0
      %v1351 = vadd.f32 0.0, %v1350
      %v1352 = vpop.f32.mrb[0].mxu0
      %1353 = vmatprep.mubr.bf16.mxu0 0
      %1354 = vmatmul.mubr.bf16.gmra.mrb[0].mxu0 %v1259
      %v1355 = vpop.f32.mrb[0].mxu0
      %v1356 = vadd.f32 0.0, %v1355
      %v1357 = vpop.f32.mrb[0].mxu0
      %v1358 = vpop.f32.mrb[0].mxu0
      %v1359 = vadd.f32 0.0, %v1358
      %v1360 = vpop.f32.mrb[0].mxu0
      %1361 = vmatprep.mubr.bf16.mxu0 0
      %1362 = vmatmul.mubr.bf16.gmra.mrb[0].mxu0 %v1262
      %v1363 = vpop.f32.mrb[0].mxu0
      %v1364 = vadd.f32 0.0, %v1363
      %v1365 = vpop.f32.mrb[0].mxu0
      %v1366 = vpop.f32.mrb[0].mxu0
      %v1367 = vadd.f32 0.0, %v1366
      %v1368 = vpop.f32.mrb[0].mxu0
      %1369 = vmatprep.mubr.bf16.mxu0 0
      %1370 = vmatmul.mubr.bf16.gmra.mrb[0].mxu0 %v1265
      %v1371 = vpop.f32.mrb[0].mxu0
      %v1372 = vadd.f32 0.0, %v1371
      %v1373 = vpop.f32.mrb[0].mxu0
      %v1374 = vpop.f32.mrb[0].mxu0
      %v1375 = vadd.f32 0.0, %v1374
      %v1376 = vpop.f32.mrb[0].mxu0
      %1377 = vmatprep.mubr.bf16.mxu0 0
      %1378 = vmatmul.mubr.bf16.gmra.mrb[0].mxu0 %v1268
      %v1379 = vpop.f32.mrb[0].mxu0
      %v1380 = vadd.f32 0.0, %v1379
      %v1381 = vpop.f32.mrb[0].mxu0
      %v1382 = vpop.f32.mrb[0].mxu0
      %v1383 = vadd.f32 0.0, %v1382
      %v1384 = vpop.f32.mrb[0].mxu0
      %1385 = vmatprep.mubr.bf16.mxu0 0
      %1386 = vmatmul.mubr.bf16.gmra.mrb[0].mxu0 %v1271
      %v1387 = vpop.f32.mrb[0].mxu0
      %v1388 = vadd.f32 0.0, %v1387
      %v1389 = vpop.f32.mrb[0].mxu0
      %v1390 = vpop.f32.mrb[0].mxu0
      %v1391 = vadd.f32 0.0, %v1390
      %v1392 = vpop.f32.mrb[0].mxu0
      %1393 = vmatprep.mubr.bf16.mxu0 0
      %1394 = vmatmul.mubr.bf16.gmra.mrb[0].mxu0 %v1274
      %v1395 = vpop.f32.mrb[0].mxu0
      %v1396 = vadd.f32 0.0, %v1395
      %v1397 = vpop.f32.mrb[0].mxu0
      %v1398 = vpop.f32.mrb[0].mxu0
      %v1399 = vadd.f32 0.0, %v1398
      %v1400 = vpop.f32.mrb[0].mxu0
      %1401 = vmatprep.mubr.bf16.mxu0 0
      %1402 = vmatmul.mubr.bf16.gmra.mrb[0].mxu0 %v1277
      %v1403 = vpop.f32.mrb[0].mxu0
      %v1404 = vadd.f32 0.0, %v1403
      %v1405 = vpop.f32.mrb[0].mxu0
      %v1406 = vpop.f32.mrb[0].mxu0
      %v1407 = vadd.f32 0.0, %v1406
      %v1408 = vpop.f32.mrb[0].mxu0
      %1409 = vmatprep.mubr.bf16.mxu0 0
      %1410 = vmatmul.mubr.bf16.gmra.mrb[0].mxu0 %v1280
      %v1411 = vpop.f32.mrb[0].mxu0
      %v1412 = vadd.f32 0.0, %v1411
      %v1413 = vpop.f32.mrb[0].mxu0
      %v1414 = vpop.f32.mrb[0].mxu0
      %v1415 = vadd.f32 0.0, %v1414
      %v1416 = vpop.f32.mrb[0].mxu0
      %1417 = vmatprep.mubr.bf16.mxu0 0
      %1418 = vmatmul.mubr.bf16.gmra.mrb[0].mxu0 %v1283
      %v1419 = vpop.f32.mrb[0].mxu0
      %v1420 = vadd.f32 0.0, %v1419
      %v1421 = vpop.f32.mrb[0].mxu0
      %v1422 = vpop.f32.mrb[0].mxu0
      %v1423 = vadd.f32 0.0, %v1422
      %v1424 = vpop.f32.mrb[0].mxu0
      %1425 = vmatprep.mubr.bf16.mxu0 0
      %1426 = vmatmul.mubr.bf16.gmra.mrb[0].mxu0 %v1286
      %v1427 = vpop.f32.mrb[0].mxu0
      %v1428 = vadd.f32 0.0, %v1427
      %v1429 = vpop.f32.mrb[0].mxu0
      %v1430 = vpop.f32.mrb[0].mxu0
      %v1431 = vadd.f32 0.0, %v1430
      %v1432 = vpop.f32.mrb[0].mxu0
      %1433 = vmatprep.mubr.bf16.mxu0 0
      %1434 = vmatmul.mubr.bf16.gmra.mrb[0].mxu0 %v1289
      %v1435 = vpop.f32.mrb[0].mxu0
      %v1436 = vadd.f32 0.0, %v1435
      %v1437 = vpop.f32.mrb[0].mxu0
      %v1438 = vpop.f32.mrb[0].mxu0
      %v1439 = vadd.f32 0.0, %v1438
      %v1440 = vpop.f32.mrb[0].mxu0
      %1441 = vmatprep.mubr.bf16.mxu0 0
      %1442 = vmatmul.mubr.bf16.gmra.mrb[0].mxu0 %v1292
      %v1443 = vpop.f32.mrb[0].mxu0
      %v1444 = vadd.f32 0.0, %v1443
      %v1445 = vpop.f32.mrb[0].mxu0
      %v1446 = vpop.f32.mrb[0].mxu0
      %v1447 = vadd.f32 0.0, %v1446
      %v1448 = vpop.f32.mrb[0].mxu0
      %1449 = vmatprep.mubr.bf16.mxu0 0
      %1450 = vmatmul.mubr.bf16.gmra.mrb[0].mxu0 %v1295
      %v1451 = vpop.f32.mrb[0].mxu0
      %v1452 = vadd.f32 0.0, %v1451
      %v1453 = vpop.f32.mrb[0].mxu0
      %v1454 = vpop.f32.mrb[0].mxu0
      %v1455 = vadd.f32 0.0, %v1454
      %v1456 = vpop.f32.mrb[0].mxu0
      %1457 = vdwg.mxu0
      %v1458 = vld [vmem:[#allocation2 + $0x100] sm:$0xff]
      %v1459 = vld [vmem:[#allocation2 + $0x108] sm:$0xff]
      %v1460 = vld [vmem:[#allocation2 + $0x110] sm:$0xff]
      %v1461 = vld [vmem:[#allocation2 + $0x118] sm:$0xff]
      %v1462 = vld [vmem:[#allocation2 + $0x120] sm:$0xff]
      %v1463 = vld [vmem:[#allocation2 + $0x128] sm:$0xff]
      %v1464 = vld [vmem:[#allocation2 + $0x130] sm:$0xff]
      %v1465 = vld [vmem:[#allocation2 + $0x138] sm:$0xff]
      %v1466 = vld [vmem:[#allocation2 + $0x140] sm:$0xff]
      %v1467 = vld [vmem:[#allocation2 + $0x148] sm:$0xff]
      %v1468 = vld [vmem:[#allocation2 + $0x150] sm:$0xff]
      %v1469 = vld [vmem:[#allocation2 + $0x158] sm:$0xff]
      %v1470 = vld [vmem:[#allocation2 + $0x160] sm:$0xff]
      %v1471 = vld [vmem:[#allocation2 + $0x168] sm:$0xff]
      %v1472 = vld [vmem:[#allocation2 + $0x170] sm:$0xff]
      %v1473 = vld [vmem:[#allocation2 + $0x178] sm:$0xff]
      %v1474 = vld [vmem:[#allocation2 + $0x180] sm:$0xff]
      %v1475 = vld [vmem:[#allocation2 + $0x188] sm:$0xff]
      %v1476 = vld [vmem:[#allocation2 + $0x190] sm:$0xff]
      %v1477 = vld [vmem:[#allocation2 + $0x198] sm:$0xff]
      %v1478 = vld [vmem:[#allocation2 + $0x1a0] sm:$0xff]
      %v1479 = vld [vmem:[#allocation2 + $0x1a8] sm:$0xff]
      %v1480 = vld [vmem:[#allocation2 + $0x1b0] sm:$0xff]
      %v1481 = vld [vmem:[#allocation2 + $0x1b8] sm:$0xff]
      %v1482 = vld [vmem:[#allocation2 + $0x1c0] sm:$0xff]
      %v1483 = vld [vmem:[#allocation2 + $0x1c8] sm:$0xff]
      %v1484 = vld [vmem:[#allocation2 + $0x1d0] sm:$0xff]
      %v1485 = vld [vmem:[#allocation2 + $0x1d8] sm:$0xff]
      %v1486 = vld [vmem:[#allocation2 + $0x1e0] sm:$0xff]
      %v1487 = vld [vmem:[#allocation2 + $0x1e8] sm:$0xff]
      %v1488 = vld [vmem:[#allocation2 + $0x1f0] sm:$0xff]
      %v1489 = vld [vmem:[#allocation2 + $0x1f8] sm:$0xff]
      %v1490 = vmax.f32 %v1458, %v1332
      %v1491 = vmax.f32 %v1459, %v1335
      %v1492 = vmax.f32 %v1460, %v1340
      %v1493 = vmax.f32 %v1461, %v1343
      %v1494 = vmax.f32 %v1462, %v1348
      %v1495 = vmax.f32 %v1463, %v1351
      %v1496 = vmax.f32 %v1464, %v1356
      %v1497 = vmax.f32 %v1465, %v1359
      %v1498 = vmax.f32 %v1466, %v1364
      %v1499 = vmax.f32 %v1467, %v1367
      %v1500 = vmax.f32 %v1468, %v1372
      %v1501 = vmax.f32 %v1469, %v1375
      %v1502 = vmax.f32 %v1470, %v1380
      %v1503 = vmax.f32 %v1471, %v1383
      %v1504 = vmax.f32 %v1472, %v1388
      %v1505 = vmax.f32 %v1473, %v1391
      %v1506 = vmax.f32 %v1474, %v1396
      %v1507 = vmax.f32 %v1475, %v1399
      %v1508 = vmax.f32 %v1476, %v1404
      %v1509 = vmax.f32 %v1477, %v1407
      %v1510 = vmax.f32 %v1478, %v1412
      %v1511 = vmax.f32 %v1479, %v1415
      %v1512 = vmax.f32 %v1480, %v1420
      %v1513 = vmax.f32 %v1481, %v1423
      %v1514 = vmax.f32 %v1482, %v1428
      %v1515 = vmax.f32 %v1483, %v1431
      %v1516 = vmax.f32 %v1484, %v1436
      %v1517 = vmax.f32 %v1485, %v1439
      %v1518 = vmax.f32 %v1486, %v1444
      %v1519 = vmax.f32 %v1487, %v1447
      %v1520 = vmax.f32 %v1488, %v1452
      %v1521 = vmax.f32 %v1489, %v1455
      %1522 = vst [vmem:[#allocation2 + $0x100] sm:$0xff] %v1490
      %1523 = vst [vmem:[#allocation2 + $0x108] sm:$0xff] %v1491
      %1524 = vst [vmem:[#allocation2 + $0x110] sm:$0xff] %v1492
      %1525 = vst [vmem:[#allocation2 + $0x118] sm:$0xff] %v1493
      %1526 = vst [vmem:[#allocation2 + $0x120] sm:$0xff] %v1494
      %1527 = vst [vmem:[#allocation2 + $0x128] sm:$0xff] %v1495
      %1528 = vst [vmem:[#allocation2 + $0x130] sm:$0xff] %v1496
      %1529 = vst [vmem:[#allocation2 + $0x138] sm:$0xff] %v1497
      %1530 = vst [vmem:[#allocation2 + $0x140] sm:$0xff] %v1498
      %1531 = vst [vmem:[#allocation2 + $0x148] sm:$0xff] %v1499
      %1532 = vst [vmem:[#allocation2 + $0x150] sm:$0xff] %v1500
      %1533 = vst [vmem:[#allocation2 + $0x158] sm:$0xff] %v1501
      %1534 = vst [vmem:[#allocation2 + $0x160] sm:$0xff] %v1502
      %1535 = vst [vmem:[#allocation2 + $0x168] sm:$0xff] %v1503
      %1536 = vst [vmem:[#allocation2 + $0x170] sm:$0xff] %v1504
      %1537 = vst [vmem:[#allocation2 + $0x178] sm:$0xff] %v1505
      %1538 = vst [vmem:[#allocation2 + $0x180] sm:$0xff] %v1506
      %1539 = vst [vmem:[#allocation2 + $0x188] sm:$0xff] %v1507
      %1540 = vst [vmem:[#allocation2 + $0x190] sm:$0xff] %v1508
      %1541 = vst [vmem:[#allocation2 + $0x198] sm:$0xff] %v1509
      %1542 = vst [vmem:[#allocation2 + $0x1a0] sm:$0xff] %v1510
      %1543 = vst [vmem:[#allocation2 + $0x1a8] sm:$0xff] %v1511
      %1544 = vst [vmem:[#allocation2 + $0x1b0] sm:$0xff] %v1512
      %1545 = vst [vmem:[#allocation2 + $0x1b8] sm:$0xff] %v1513
      %1546 = vst [vmem:[#allocation2 + $0x1c0] sm:$0xff] %v1514
      %1547 = vst [vmem:[#allocation2 + $0x1c8] sm:$0xff] %v1515
      %1548 = vst [vmem:[#allocation2 + $0x1d0] sm:$0xff] %v1516
      %1549 = vst [vmem:[#allocation2 + $0x1d8] sm:$0xff] %v1517
      %1550 = vst [vmem:[#allocation2 + $0x1e0] sm:$0xff] %v1518
      %1551 = vst [vmem:[#allocation2 + $0x1e8] sm:$0xff] %v1519
      %1552 = vst [vmem:[#allocation2 + $0x1f0] sm:$0xff] %v1520
      %1553 = vst [vmem:[#allocation2 + $0x1f8] sm:$0xff] %v1521
      %v1554 = vld [vmem:[%s3 + $0x100] sm:$0xf]
      %v1555 = vld [vmem:[%s3 + $0x104] sm:$0xf]
      %v1556 = vld [vmem:[%s3 + $0x108] sm:$0xf]
      %v1557 = vld [vmem:[%s3 + $0x10c] sm:$0xf]
      %v1558 = vld [vmem:[%s3 + $0x110] sm:$0xf]
      %v1559 = vld [vmem:[%s3 + $0x114] sm:$0xf]
      %v1560 = vld [vmem:[%s3 + $0x118] sm:$0xf]
      %v1561 = vld [vmem:[%s3 + $0x11c] sm:$0xf]
      %v1562 = vld [vmem:[%s3 + $0x120] sm:$0xf]
      %v1563 = vld [vmem:[%s3 + $0x124] sm:$0xf]
      %v1564 = vld [vmem:[%s3 + $0x128] sm:$0xf]
      %v1565 = vld [vmem:[%s3 + $0x12c] sm:$0xf]
      %v1566 = vld [vmem:[%s3 + $0x130] sm:$0xf]
      %v1567 = vld [vmem:[%s3 + $0x134] sm:$0xf]
      %v1568 = vld [vmem:[%s3 + $0x138] sm:$0xf]
      %v1569 = vld [vmem:[%s3 + $0x13c] sm:$0xf]
      %v1570 = vld [vmem:[%s3 + $0x140] sm:$0xf]
      %v1571 = vld [vmem:[%s3 + $0x144] sm:$0xf]
      %v1572 = vld [vmem:[%s3 + $0x148] sm:$0xf]
      %v1573 = vld [vmem:[%s3 + $0x14c] sm:$0xf]
      %v1574 = vld [vmem:[%s3 + $0x150] sm:$0xf]
      %v1575 = vld [vmem:[%s3 + $0x154] sm:$0xf]
      %v1576 = vld [vmem:[%s3 + $0x158] sm:$0xf]
      %v1577 = vld [vmem:[%s3 + $0x15c] sm:$0xf]
      %v1578 = vld [vmem:[%s3 + $0x160] sm:$0xf]
      %v1579 = vld [vmem:[%s3 + $0x164] sm:$0xf]
      %v1580 = vld [vmem:[%s3 + $0x168] sm:$0xf]
      %v1581 = vld [vmem:[%s3 + $0x16c] sm:$0xf]
      %v1582 = vld [vmem:[%s3 + $0x170] sm:$0xf]
      %v1583 = vld [vmem:[%s3 + $0x174] sm:$0xf]
      %v1584 = vld [vmem:[%s3 + $0x178] sm:$0xf]
      %v1585 = vld [vmem:[%s3 + $0x17c] sm:$0xf]
      %v1618 = vunpack.c.l.b16 %v1554
      %v1619 = vunpack.c.l.b16 %v1555
      %v1620 = vunpack.c.l.b16 %v1556
      %v1621 = vunpack.c.l.b16 %v1557
      %v1622 = vunpack.c.l.b16 %v1558
      %v1623 = vunpack.c.l.b16 %v1559
      %v1624 = vunpack.c.l.b16 %v1560
      %v1625 = vunpack.c.l.b16 %v1561
      %v1626 = vunpack.c.l.b16 %v1562
      %v1627 = vunpack.c.l.b16 %v1563
      %v1628 = vunpack.c.l.b16 %v1564
      %v1629 = vunpack.c.l.b16 %v1565
      %v1630 = vunpack.c.l.b16 %v1566
      %v1631 = vunpack.c.l.b16 %v1567
      %v1632 = vunpack.c.l.b16 %v1568
      %v1633 = vunpack.c.l.b16 %v1569
      %v1634 = vunpack.c.l.b16 %v1570
      %v1635 = vunpack.c.l.b16 %v1571
      %v1636 = vunpack.c.l.b16 %v1572
      %v1637 = vunpack.c.l.b16 %v1573
      %v1638 = vunpack.c.l.b16 %v1574
      %v1639 = vunpack.c.l.b16 %v1575
      %v1640 = vunpack.c.l.b16 %v1576
      %v1641 = vunpack.c.l.b16 %v1577
      %v1642 = vunpack.c.l.b16 %v1578
      %v1643 = vunpack.c.l.b16 %v1579
      %v1644 = vunpack.c.l.b16 %v1580
      %v1645 = vunpack.c.l.b16 %v1581
      %v1646 = vunpack.c.l.b16 %v1582
      %v1647 = vunpack.c.l.b16 %v1583
      %v1648 = vunpack.c.l.b16 %v1584
      %v1649 = vunpack.c.l.b16 %v1585
      %v1650 = vpack.c.b16 %v1619, %v1618
      %v1651 = vpack.c.b16 %v1621, %v1620
      %v1652 = vpack.c.b16 %v1623, %v1622
      %v1653 = vpack.c.b16 %v1625, %v1624
      %v1654 = vpack.c.b16 %v1627, %v1626
      %v1655 = vpack.c.b16 %v1629, %v1628
      %v1656 = vpack.c.b16 %v1631, %v1630
      %v1657 = vpack.c.b16 %v1633, %v1632
      %v1658 = vpack.c.b16 %v1635, %v1634
      %v1659 = vpack.c.b16 %v1637, %v1636
      %v1660 = vpack.c.b16 %v1639, %v1638
      %v1661 = vpack.c.b16 %v1641, %v1640
      %v1662 = vpack.c.b16 %v1643, %v1642
      %v1663 = vpack.c.b16 %v1645, %v1644
      %v1664 = vpack.c.b16 %v1647, %v1646
      %v1665 = vpack.c.b16 %v1649, %v1648
      %v1667 = vsel %vm831, %v1650, 0
      %v1670 = vsel %vm831, %v1651, 0
      %v1673 = vsel %vm831, %v1652, 0
      %v1676 = vsel %vm831, %v1653, 0
      %v1679 = vsel %vm831, %v1654, 0
      %v1682 = vsel %vm831, %v1655, 0
      %v1685 = vsel %vm831, %v1656, 0
      %v1688 = vsel %vm831, %v1657, 0
      %v1691 = vsel %vm831, %v1658, 0
      %v1694 = vsel %vm831, %v1659, 0
      %v1697 = vsel %vm831, %v1660, 0
      %v1700 = vsel %vm831, %v1661, 0
      %v1703 = vsel %vm831, %v1662, 0
      %v1706 = vsel %vm831, %v1663, 0
      %v1709 = vsel %vm831, %v1664, 0
      %v1712 = vsel %vm831, %v1665, 0
      %1714 = vmatprep.subr.bf16.mxu0 0
      %1715 = vmatpush1.bf16.msra.mxu0 %v715
      %1716 = vmatprep.subr.bf16.mxu0 0
      %1717 = vmatpush1.bf16.msra.mxu0 %v716
      %1718 = vmatprep.subr.bf16.mxu0 0
      %1719 = vmatpush1.bf16.msra.mxu0 %v717
      %1720 = vmatprep.subr.bf16.mxu0 0
      %1721 = vmatpush1.bf16.msra.mxu0 %v718
      %1722 = vmatprep.subr.bf16.mxu0 0
      %1723 = vmatpush1.bf16.msra.mxu0 0
      %1724 = vmatprep.subr.bf16.mxu0 0
      %1725 = vmatpush1.bf16.msra.mxu0 0
      %1726 = vmatprep.subr.bf16.mxu0 0
      %1727 = vmatpush1.bf16.msra.mxu0 0
      %1728 = vmatprep.subr.bf16.mxu0 0
      %1729 = vmatpush1.bf16.msra.mxu0 0
      %1730 = vmatprep.subr.bf16.mxu0 0
      %1731 = vmatpush1.bf16.msra.mxu0 0
      %1732 = vmatprep.subr.bf16.mxu0 0
      %1733 = vmatpush1.bf16.msra.mxu0 0
      %1734 = vmatprep.subr.bf16.mxu0 0
      %1735 = vmatpush1.bf16.msra.mxu0 0
      %1736 = vmatprep.subr.bf16.mxu0 0
      %1737 = vmatpush1.bf16.msra.mxu0 0
      %1738 = vmatprep.subr.bf16.mxu0 0
      %1739 = vmatpush1.bf16.msra.mxu0 0
      %1740 = vmatprep.subr.bf16.mxu0 0
      %1741 = vmatpush1.bf16.msra.mxu0 0
      %1742 = vmatprep.subr.bf16.mxu0 0
      %1743 = vmatpush1.bf16.msra.mxu0 0
      %1744 = vmatprep.subr.bf16.mxu0 0
      %1745 = vmatpush1.bf16.msra.mxu0 0
      %1746 = vmatprep.mubr.bf16.mxu0 0
      %1747 = vmatmul.mubr.bf16.gmra.mrb[0].mxu0 %v1667
      %v1748 = vpop.f32.mrb[0].mxu0
      %v1749 = vadd.f32 0.0, %v1748
      %v1750 = vpop.f32.mrb[0].mxu0
      %v1751 = vpop.f32.mrb[0].mxu0
      %v1752 = vadd.f32 0.0, %v1751
      %v1753 = vpop.f32.mrb[0].mxu0
      %1754 = vmatprep.mubr.bf16.mxu0 0
      %1755 = vmatmul.mubr.bf16.gmra.mrb[0].mxu0 %v1670
      %v1756 = vpop.f32.mrb[0].mxu0
      %v1757 = vadd.f32 0.0, %v1756
      %v1758 = vpop.f32.mrb[0].mxu0
      %v1759 = vpop.f32.mrb[0].mxu0
      %v1760 = vadd.f32 0.0, %v1759
      %v1761 = vpop.f32.mrb[0].mxu0
      %1762 = vmatprep.mubr.bf16.mxu0 0
      %1763 = vmatmul.mubr.bf16.gmra.mrb[0].mxu0 %v1673
      %v1764 = vpop.f32.mrb[0].mxu0
      %v1765 = vadd.f32 0.0, %v1764
      %v1766 = vpop.f32.mrb[0].mxu0
      %v1767 = vpop.f32.mrb[0].mxu0
      %v1768 = vadd.f32 0.0, %v1767
      %v1769 = vpop.f32.mrb[0].mxu0
      %1770 = vmatprep.mubr.bf16.mxu0 0
      %1771 = vmatmul.mubr.bf16.gmra.mrb[0].mxu0 %v1676
      %v1772 = vpop.f32.mrb[0].mxu0
      %v1773 = vadd.f32 0.0, %v1772
      %v1774 = vpop.f32.mrb[0].mxu0
      %v1775 = vpop.f32.mrb[0].mxu0
      %v1776 = vadd.f32 0.0, %v1775
      %v1777 = vpop.f32.mrb[0].mxu0
      %1778 = vmatprep.mubr.bf16.mxu0 0
      %1779 = vmatmul.mubr.bf16.gmra.mrb[0].mxu0 %v1679
      %v1780 = vpop.f32.mrb[0].mxu0
      %v1781 = vadd.f32 0.0, %v1780
      %v1782 = vpop.f32.mrb[0].mxu0
      %v1783 = vpop.f32.mrb[0].mxu0
      %v1784 = vadd.f32 0.0, %v1783
      %v1785 = vpop.f32.mrb[0].mxu0
      %1786 = vmatprep.mubr.bf16.mxu0 0
      %1787 = vmatmul.mubr.bf16.gmra.mrb[0].mxu0 %v1682
      %v1788 = vpop.f32.mrb[0].mxu0
      %v1789 = vadd.f32 0.0, %v1788
      %v1790 = vpop.f32.mrb[0].mxu0
      %v1791 = vpop.f32.mrb[0].mxu0
      %v1792 = vadd.f32 0.0, %v1791
      %v1793 = vpop.f32.mrb[0].mxu0
      %1794 = vmatprep.mubr.bf16.mxu0 0
      %1795 = vmatmul.mubr.bf16.gmra.mrb[0].mxu0 %v1685
      %v1796 = vpop.f32.mrb[0].mxu0
      %v1797 = vadd.f32 0.0, %v1796
      %v1798 = vpop.f32.mrb[0].mxu0
      %v1799 = vpop.f32.mrb[0].mxu0
      %v1800 = vadd.f32 0.0, %v1799
      %v1801 = vpop.f32.mrb[0].mxu0
      %1802 = vmatprep.mubr.bf16.mxu0 0
      %1803 = vmatmul.mubr.bf16.gmra.mrb[0].mxu0 %v1688
      %v1804 = vpop.f32.mrb[0].mxu0
      %v1805 = vadd.f32 0.0, %v1804
      %v1806 = vpop.f32.mrb[0].mxu0
      %v1807 = vpop.f32.mrb[0].mxu0
      %v1808 = vadd.f32 0.0, %v1807
      %v1809 = vpop.f32.mrb[0].mxu0
      %1810 = vmatprep.mubr.bf16.mxu0 0
      %1811 = vmatmul.mubr.bf16.gmra.mrb[0].mxu0 %v1691
      %v1812 = vpop.f32.mrb[0].mxu0
      %v1813 = vadd.f32 0.0, %v1812
      %v1814 = vpop.f32.mrb[0].mxu0
      %v1815 = vpop.f32.mrb[0].mxu0
      %v1816 = vadd.f32 0.0, %v1815
      %v1817 = vpop.f32.mrb[0].mxu0
      %1818 = vmatprep.mubr.bf16.mxu0 0
      %1819 = vmatmul.mubr.bf16.gmra.mrb[0].mxu0 %v1694
      %v1820 = vpop.f32.mrb[0].mxu0
      %v1821 = vadd.f32 0.0, %v1820
      %v1822 = vpop.f32.mrb[0].mxu0
      %v1823 = vpop.f32.mrb[0].mxu0
      %v1824 = vadd.f32 0.0, %v1823
      %v1825 = vpop.f32.mrb[0].mxu0
      %1826 = vmatprep.mubr.bf16.mxu0 0
      %1827 = vmatmul.mubr.bf16.gmra.mrb[0].mxu0 %v1697
      %v1828 = vpop.f32.mrb[0].mxu0
      %v1829 = vadd.f32 0.0, %v1828
      %v1830 = vpop.f32.mrb[0].mxu0
      %v1831 = vpop.f32.mrb[0].mxu0
      %v1832 = vadd.f32 0.0, %v1831
      %v1833 = vpop.f32.mrb[0].mxu0
      %1834 = vmatprep.mubr.bf16.mxu0 0
      %1835 = vmatmul.mubr.bf16.gmra.mrb[0].mxu0 %v1700
      %v1836 = vpop.f32.mrb[0].mxu0
      %v1837 = vadd.f32 0.0, %v1836
      %v1838 = vpop.f32.mrb[0].mxu0
      %v1839 = vpop.f32.mrb[0].mxu0
      %v1840 = vadd.f32 0.0, %v1839
      %v1841 = vpop.f32.mrb[0].mxu0
      %1842 = vmatprep.mubr.bf16.mxu0 0
      %1843 = vmatmul.mubr.bf16.gmra.mrb[0].mxu0 %v1703
      %v1844 = vpop.f32.mrb[0].mxu0
      %v1845 = vadd.f32 0.0, %v1844
      %v1846 = vpop.f32.mrb[0].mxu0
      %v1847 = vpop.f32.mrb[0].mxu0
      %v1848 = vadd.f32 0.0, %v1847
      %v1849 = vpop.f32.mrb[0].mxu0
      %1850 = vmatprep.mubr.bf16.mxu0 0
      %1851 = vmatmul.mubr.bf16.gmra.mrb[0].mxu0 %v1706
      %v1852 = vpop.f32.mrb[0].mxu0
      %v1853 = vadd.f32 0.0, %v1852
      %v1854 = vpop.f32.mrb[0].mxu0
      %v1855 = vpop.f32.mrb[0].mxu0
      %v1856 = vadd.f32 0.0, %v1855
      %v1857 = vpop.f32.mrb[0].mxu0
      %1858 = vmatprep.mubr.bf16.mxu0 0
      %1859 = vmatmul.mubr.bf16.gmra.mrb[0].mxu0 %v1709
      %v1860 = vpop.f32.mrb[0].mxu0
      %v1861 = vadd.f32 0.0, %v1860
      %v1862 = vpop.f32.mrb[0].mxu0
      %v1863 = vpop.f32.mrb[0].mxu0
      %v1864 = vadd.f32 0.0, %v1863
      %v1865 = vpop.f32.mrb[0].mxu0
      %1866 = vmatprep.mubr.bf16.mxu0 0
      %1867 = vmatmul.mubr.bf16.gmra.mrb[0].mxu0 %v1712
      %v1868 = vpop.f32.mrb[0].mxu0
      %v1869 = vadd.f32 0.0, %v1868
      %v1870 = vpop.f32.mrb[0].mxu0
      %v1871 = vpop.f32.mrb[0].mxu0
      %v1872 = vadd.f32 0.0, %v1871
      %v1873 = vpop.f32.mrb[0].mxu0
      %1874 = vdwg.mxu0
      %v1875 = vld [vmem:[#allocation2 + $0x200] sm:$0xff]
      %v1876 = vld [vmem:[#allocation2 + $0x208] sm:$0xff]
      %v1877 = vld [vmem:[#allocation2 + $0x210] sm:$0xff]
      %v1878 = vld [vmem:[#allocation2 + $0x218] sm:$0xff]
      %v1879 = vld [vmem:[#allocation2 + $0x220] sm:$0xff]
      %v1880 = vld [vmem:[#allocation2 + $0x228] sm:$0xff]
      %v1881 = vld [vmem:[#allocation2 + $0x230] sm:$0xff]
      %v1882 = vld [vmem:[#allocation2 + $0x238] sm:$0xff]
      %v1883 = vld [vmem:[#allocation2 + $0x240] sm:$0xff]
      %v1884 = vld [vmem:[#allocation2 + $0x248] sm:$0xff]
      %v1885 = vld [vmem:[#allocation2 + $0x250] sm:$0xff]
      %v1886 = vld [vmem:[#allocation2 + $0x258] sm:$0xff]
      %v1887 = vld [vmem:[#allocation2 + $0x260] sm:$0xff]
      %v1888 = vld [vmem:[#allocation2 + $0x268] sm:$0xff]
      %v1889 = vld [vmem:[#allocation2 + $0x270] sm:$0xff]
      %v1890 = vld [vmem:[#allocation2 + $0x278] sm:$0xff]
      %v1891 = vld [vmem:[#allocation2 + $0x280] sm:$0xff]
      %v1892 = vld [vmem:[#allocation2 + $0x288] sm:$0xff]
      %v1893 = vld [vmem:[#allocation2 + $0x290] sm:$0xff]
      %v1894 = vld [vmem:[#allocation2 + $0x298] sm:$0xff]
      %v1895 = vld [vmem:[#allocation2 + $0x2a0] sm:$0xff]
      %v1896 = vld [vmem:[#allocation2 + $0x2a8] sm:$0xff]
      %v1897 = vld [vmem:[#allocation2 + $0x2b0] sm:$0xff]
      %v1898 = vld [vmem:[#allocation2 + $0x2b8] sm:$0xff]
      %v1899 = vld [vmem:[#allocation2 + $0x2c0] sm:$0xff]
      %v1900 = vld [vmem:[#allocation2 + $0x2c8] sm:$0xff]
      %v1901 = vld [vmem:[#allocation2 + $0x2d0] sm:$0xff]
      %v1902 = vld [vmem:[#allocation2 + $0x2d8] sm:$0xff]
      %v1903 = vld [vmem:[#allocation2 + $0x2e0] sm:$0xff]
      %v1904 = vld [vmem:[#allocation2 + $0x2e8] sm:$0xff]
      %v1905 = vld [vmem:[#allocation2 + $0x2f0] sm:$0xff]
      %v1906 = vld [vmem:[#allocation2 + $0x2f8] sm:$0xff]
      %v1907 = vmax.f32 %v1875, %v1749
      %v1908 = vmax.f32 %v1876, %v1752
      %v1909 = vmax.f32 %v1877, %v1757
      %v1910 = vmax.f32 %v1878, %v1760
      %v1911 = vmax.f32 %v1879, %v1765
      %v1912 = vmax.f32 %v1880, %v1768
      %v1913 = vmax.f32 %v1881, %v1773
      %v1914 = vmax.f32 %v1882, %v1776
      %v1915 = vmax.f32 %v1883, %v1781
      %v1916 = vmax.f32 %v1884, %v1784
      %v1917 = vmax.f32 %v1885, %v1789
      %v1918 = vmax.f32 %v1886, %v1792
      %v1919 = vmax.f32 %v1887, %v1797
      %v1920 = vmax.f32 %v1888, %v1800
      %v1921 = vmax.f32 %v1889, %v1805
      %v1922 = vmax.f32 %v1890, %v1808
      %v1923 = vmax.f32 %v1891, %v1813
      %v1924 = vmax.f32 %v1892, %v1816
      %v1925 = vmax.f32 %v1893, %v1821
      %v1926 = vmax.f32 %v1894, %v1824
      %v1927 = vmax.f32 %v1895, %v1829
      %v1928 = vmax.f32 %v1896, %v1832
      %v1929 = vmax.f32 %v1897, %v1837
      %v1930 = vmax.f32 %v1898, %v1840
      %v1931 = vmax.f32 %v1899, %v1845
      %v1932 = vmax.f32 %v1900, %v1848
      %v1933 = vmax.f32 %v1901, %v1853
      %v1934 = vmax.f32 %v1902, %v1856
      %v1935 = vmax.f32 %v1903, %v1861
      %v1936 = vmax.f32 %v1904, %v1864
      %v1937 = vmax.f32 %v1905, %v1869
      %v1938 = vmax.f32 %v1906, %v1872
      %1939 = vst [vmem:[#allocation2 + $0x200] sm:$0xff] %v1907
      %1940 = vst [vmem:[#allocation2 + $0x208] sm:$0xff] %v1908
      %1941 = vst [vmem:[#allocation2 + $0x210] sm:$0xff] %v1909
      %1942 = vst [vmem:[#allocation2 + $0x218] sm:$0xff] %v1910
      %1943 = vst [vmem:[#allocation2 + $0x220] sm:$0xff] %v1911
      %1944 = vst [vmem:[#allocation2 + $0x228] sm:$0xff] %v1912
      %1945 = vst [vmem:[#allocation2 + $0x230] sm:$0xff] %v1913
      %1946 = vst [vmem:[#allocation2 + $0x238] sm:$0xff] %v1914
      %1947 = vst [vmem:[#allocation2 + $0x240] sm:$0xff] %v1915
      %1948 = vst [vmem:[#allocation2 + $0x248] sm:$0xff] %v1916
      %1949 = vst [vmem:[#allocation2 + $0x250] sm:$0xff] %v1917
      %1950 = vst [vmem:[#allocation2 + $0x258] sm:$0xff] %v1918
      %1951 = vst [vmem:[#allocation2 + $0x260] sm:$0xff] %v1919
      %1952 = vst [vmem:[#allocation2 + $0x268] sm:$0xff] %v1920
      %1953 = vst [vmem:[#allocation2 + $0x270] sm:$0xff] %v1921
      %1954 = vst [vmem:[#allocation2 + $0x278] sm:$0xff] %v1922
      %1955 = vst [vmem:[#allocation2 + $0x280] sm:$0xff] %v1923
      %1956 = vst [vmem:[#allocation2 + $0x288] sm:$0xff] %v1924
      %1957 = vst [vmem:[#allocation2 + $0x290] sm:$0xff] %v1925
      %1958 = vst [vmem:[#allocation2 + $0x298] sm:$0xff] %v1926
      %1959 = vst [vmem:[#allocation2 + $0x2a0] sm:$0xff] %v1927
      %1960 = vst [vmem:[#allocation2 + $0x2a8] sm:$0xff] %v1928
      %1961 = vst [vmem:[#allocation2 + $0x2b0] sm:$0xff] %v1929
      %1962 = vst [vmem:[#allocation2 + $0x2b8] sm:$0xff] %v1930
      %1963 = vst [vmem:[#allocation2 + $0x2c0] sm:$0xff] %v1931
      %1964 = vst [vmem:[#allocation2 + $0x2c8] sm:$0xff] %v1932
      %1965 = vst [vmem:[#allocation2 + $0x2d0] sm:$0xff] %v1933
      %1966 = vst [vmem:[#allocation2 + $0x2d8] sm:$0xff] %v1934
      %1967 = vst [vmem:[#allocation2 + $0x2e0] sm:$0xff] %v1935
      %1968 = vst [vmem:[#allocation2 + $0x2e8] sm:$0xff] %v1936
      %1969 = vst [vmem:[#allocation2 + $0x2f0] sm:$0xff] %v1937
      %1970 = vst [vmem:[#allocation2 + $0x2f8] sm:$0xff] %v1938
      %v1971 = vld [vmem:[%s3 + $0x180] sm:$0xf]
      %v1972 = vld [vmem:[%s3 + $0x184] sm:$0xf]
      %v1973 = vld [vmem:[%s3 + $0x188] sm:$0xf]
      %v1974 = vld [vmem:[%s3 + $0x18c] sm:$0xf]
      %v1975 = vld [vmem:[%s3 + $0x190] sm:$0xf]
      %v1976 = vld [vmem:[%s3 + $0x194] sm:$0xf]
      %v1977 = vld [vmem:[%s3 + $0x198] sm:$0xf]
      %v1978 = vld [vmem:[%s3 + $0x19c] sm:$0xf]
      %v1979 = vld [vmem:[%s3 + $0x1a0] sm:$0xf]
      %v1980 = vld [vmem:[%s3 + $0x1a4] sm:$0xf]
      %v1981 = vld [vmem:[%s3 + $0x1a8] sm:$0xf]
      %v1982 = vld [vmem:[%s3 + $0x1ac] sm:$0xf]
      %v1983 = vld [vmem:[%s3 + $0x1b0] sm:$0xf]
      %v1984 = vld [vmem:[%s3 + $0x1b4] sm:$0xf]
      %v1985 = vld [vmem:[%s3 + $0x1b8] sm:$0xf]
      %v1986 = vld [vmem:[%s3 + $0x1bc] sm:$0xf]
      %v1987 = vld [vmem:[%s3 + $0x1c0] sm:$0xf]
      %v1988 = vld [vmem:[%s3 + $0x1c4] sm:$0xf]
      %v1989 = vld [vmem:[%s3 + $0x1c8] sm:$0xf]
      %v1990 = vld [vmem:[%s3 + $0x1cc] sm:$0xf]
      %v1991 = vld [vmem:[%s3 + $0x1d0] sm:$0xf]
      %v1992 = vld [vmem:[%s3 + $0x1d4] sm:$0xf]
      %v1993 = vld [vmem:[%s3 + $0x1d8] sm:$0xf]
      %v1994 = vld [vmem:[%s3 + $0x1dc] sm:$0xf]
      %v1995 = vld [vmem:[%s3 + $0x1e0] sm:$0xf]
      %v1996 = vld [vmem:[%s3 + $0x1e4] sm:$0xf]
      %v1997 = vld [vmem:[%s3 + $0x1e8] sm:$0xf]
      %v1998 = vld [vmem:[%s3 + $0x1ec] sm:$0xf]
      %v1999 = vld [vmem:[%s3 + $0x1f0] sm:$0xf]
      %v2000 = vld [vmem:[%s3 + $0x1f4] sm:$0xf]
      %v2001 = vld [vmem:[%s3 + $0x1f8] sm:$0xf]
      %v2002 = vld [vmem:[%s3 + $0x1fc] sm:$0xf]
      %v2035 = vunpack.c.l.b16 %v1971
      %v2036 = vunpack.c.l.b16 %v1972
      %v2037 = vunpack.c.l.b16 %v1973
      %v2038 = vunpack.c.l.b16 %v1974
      %v2039 = vunpack.c.l.b16 %v1975
      %v2040 = vunpack.c.l.b16 %v1976
      %v2041 = vunpack.c.l.b16 %v1977
      %v2042 = vunpack.c.l.b16 %v1978
      %v2043 = vunpack.c.l.b16 %v1979
      %v2044 = vunpack.c.l.b16 %v1980
      %v2045 = vunpack.c.l.b16 %v1981
      %v2046 = vunpack.c.l.b16 %v1982
      %v2047 = vunpack.c.l.b16 %v1983
      %v2048 = vunpack.c.l.b16 %v1984
      %v2049 = vunpack.c.l.b16 %v1985
      %v2050 = vunpack.c.l.b16 %v1986
      %v2051 = vunpack.c.l.b16 %v1987
      %v2052 = vunpack.c.l.b16 %v1988
      %v2053 = vunpack.c.l.b16 %v1989
      %v2054 = vunpack.c.l.b16 %v1990
      %v2055 = vunpack.c.l.b16 %v1991
      %v2056 = vunpack.c.l.b16 %v1992
      %v2057 = vunpack.c.l.b16 %v1993
      %v2058 = vunpack.c.l.b16 %v1994
      %v2059 = vunpack.c.l.b16 %v1995
      %v2060 = vunpack.c.l.b16 %v1996
      %v2061 = vunpack.c.l.b16 %v1997
      %v2062 = vunpack.c.l.b16 %v1998
      %v2063 = vunpack.c.l.b16 %v1999
      %v2064 = vunpack.c.l.b16 %v2000
      %v2065 = vunpack.c.l.b16 %v2001
      %v2066 = vunpack.c.l.b16 %v2002
      %v2067 = vpack.c.b16 %v2036, %v2035
      %v2068 = vpack.c.b16 %v2038, %v2037
      %v2069 = vpack.c.b16 %v2040, %v2039
      %v2070 = vpack.c.b16 %v2042, %v2041
      %v2071 = vpack.c.b16 %v2044, %v2043
      %v2072 = vpack.c.b16 %v2046, %v2045
      %v2073 = vpack.c.b16 %v2048, %v2047
      %v2074 = vpack.c.b16 %v2050, %v2049
      %v2075 = vpack.c.b16 %v2052, %v2051
      %v2076 = vpack.c.b16 %v2054, %v2053
      %v2077 = vpack.c.b16 %v2056, %v2055
      %v2078 = vpack.c.b16 %v2058, %v2057
      %v2079 = vpack.c.b16 %v2060, %v2059
      %v2080 = vpack.c.b16 %v2062, %v2061
      %v2081 = vpack.c.b16 %v2064, %v2063
      %v2082 = vpack.c.b16 %v2066, %v2065
      %v2084 = vsel %vm831, %v2067, 0
      %v2087 = vsel %vm831, %v2068, 0
      %v2090 = vsel %vm831, %v2069, 0
      %v2093 = vsel %vm831, %v2070, 0
      %v2096 = vsel %vm831, %v2071, 0
      %v2099 = vsel %vm831, %v2072, 0
      %v2102 = vsel %vm831, %v2073, 0
      %v2105 = vsel %vm831, %v2074, 0
      %v2108 = vsel %vm831, %v2075, 0
      %v2111 = vsel %vm831, %v2076, 0
      %v2114 = vsel %vm831, %v2077, 0
      %v2117 = vsel %vm831, %v2078, 0
      %v2120 = vsel %vm831, %v2079, 0
      %v2123 = vsel %vm831, %v2080, 0
      %v2126 = vsel %vm831, %v2081, 0
      %v2129 = vsel %vm831, %v2082, 0
      %2131 = vmatprep.subr.bf16.mxu0 0
      %2132 = vmatpush1.bf16.msra.mxu0 %v715
      %2133 = vmatprep.subr.bf16.mxu0 0
      %2134 = vmatpush1.bf16.msra.mxu0 %v716
      %2135 = vmatprep.subr.bf16.mxu0 0
      %2136 = vmatpush1.bf16.msra.mxu0 %v717
      %2137 = vmatprep.subr.bf16.mxu0 0
      %2138 = vmatpush1.bf16.msra.mxu0 %v718
      %2139 = vmatprep.subr.bf16.mxu0 0
      %2140 = vmatpush1.bf16.msra.mxu0 0
      %2141 = vmatprep.subr.bf16.mxu0 0
      %2142 = vmatpush1.bf16.msra.mxu0 0
      %2143 = vmatprep.subr.bf16.mxu0 0
      %2144 = vmatpush1.bf16.msra.mxu0 0
      %2145 = vmatprep.subr.bf16.mxu0 0
      %2146 = vmatpush1.bf16.msra.mxu0 0
      %2147 = vmatprep.subr.bf16.mxu0 0
      %2148 = vmatpush1.bf16.msra.mxu0 0
      %2149 = vmatprep.subr.bf16.mxu0 0
      %2150 = vmatpush1.bf16.msra.mxu0 0
      %2151 = vmatprep.subr.bf16.mxu0 0
      %2152 = vmatpush1.bf16.msra.mxu0 0
      %2153 = vmatprep.subr.bf16.mxu0 0
      %2154 = vmatpush1.bf16.msra.mxu0 0
      %2155 = vmatprep.subr.bf16.mxu0 0
      %2156 = vmatpush1.bf16.msra.mxu0 0
      %2157 = vmatprep.subr.bf16.mxu0 0
      %2158 = vmatpush1.bf16.msra.mxu0 0
      %2159 = vmatprep.subr.bf16.mxu0 0
      %2160 = vmatpush1.bf16.msra.mxu0 0
      %2161 = vmatprep.subr.bf16.mxu0 0
      %2162 = vmatpush1.bf16.msra.mxu0 0
      %2163 = vmatprep.mubr.bf16.mxu0 0
      %2164 = vmatmul.mubr.bf16.gmra.mrb[0].mxu0 %v2084
      %v2165 = vpop.f32.mrb[0].mxu0
      %v2166 = vadd.f32 0.0, %v2165
      %v2167 = vpop.f32.mrb[0].mxu0
      %v2168 = vpop.f32.mrb[0].mxu0
      %v2169 = vadd.f32 0.0, %v2168
      %v2170 = vpop.f32.mrb[0].mxu0
      %2171 = vmatprep.mubr.bf16.mxu0 0
      %2172 = vmatmul.mubr.bf16.gmra.mrb[0].mxu0 %v2087
      %v2173 = vpop.f32.mrb[0].mxu0
      %v2174 = vadd.f32 0.0, %v2173
      %v2175 = vpop.f32.mrb[0].mxu0
      %v2176 = vpop.f32.mrb[0].mxu0
      %v2177 = vadd.f32 0.0, %v2176
      %v2178 = vpop.f32.mrb[0].mxu0
      %2179 = vmatprep.mubr.bf16.mxu0 0
      %2180 = vmatmul.mubr.bf16.gmra.mrb[0].mxu0 %v2090
      %v2181 = vpop.f32.mrb[0].mxu0
      %v2182 = vadd.f32 0.0, %v2181
      %v2183 = vpop.f32.mrb[0].mxu0
      %v2184 = vpop.f32.mrb[0].mxu0
      %v2185 = vadd.f32 0.0, %v2184
      %v2186 = vpop.f32.mrb[0].mxu0
      %2187 = vmatprep.mubr.bf16.mxu0 0
      %2188 = vmatmul.mubr.bf16.gmra.mrb[0].mxu0 %v2093
      %v2189 = vpop.f32.mrb[0].mxu0
      %v2190 = vadd.f32 0.0, %v2189
      %v2191 = vpop.f32.mrb[0].mxu0
      %v2192 = vpop.f32.mrb[0].mxu0
      %v2193 = vadd.f32 0.0, %v2192
      %v2194 = vpop.f32.mrb[0].mxu0
      %2195 = vmatprep.mubr.bf16.mxu0 0
      %2196 = vmatmul.mubr.bf16.gmra.mrb[0].mxu0 %v2096
      %v2197 = vpop.f32.mrb[0].mxu0
      %v2198 = vadd.f32 0.0, %v2197
      %v2199 = vpop.f32.mrb[0].mxu0
      %v2200 = vpop.f32.mrb[0].mxu0
      %v2201 = vadd.f32 0.0, %v2200
      %v2202 = vpop.f32.mrb[0].mxu0
      %2203 = vmatprep.mubr.bf16.mxu0 0
      %2204 = vmatmul.mubr.bf16.gmra.mrb[0].mxu0 %v2099
      %v2205 = vpop.f32.mrb[0].mxu0
      %v2206 = vadd.f32 0.0, %v2205
      %v2207 = vpop.f32.mrb[0].mxu0
      %v2208 = vpop.f32.mrb[0].mxu0
      %v2209 = vadd.f32 0.0, %v2208
      %v2210 = vpop.f32.mrb[0].mxu0
      %2211 = vmatprep.mubr.bf16.mxu0 0
      %2212 = vmatmul.mubr.bf16.gmra.mrb[0].mxu0 %v2102
      %v2213 = vpop.f32.mrb[0].mxu0
      %v2214 = vadd.f32 0.0, %v2213
      %v2215 = vpop.f32.mrb[0].mxu0
      %v2216 = vpop.f32.mrb[0].mxu0
      %v2217 = vadd.f32 0.0, %v2216
      %v2218 = vpop.f32.mrb[0].mxu0
      %2219 = vmatprep.mubr.bf16.mxu0 0
      %2220 = vmatmul.mubr.bf16.gmra.mrb[0].mxu0 %v2105
      %v2221 = vpop.f32.mrb[0].mxu0
      %v2222 = vadd.f32 0.0, %v2221
      %v2223 = vpop.f32.mrb[0].mxu0
      %v2224 = vpop.f32.mrb[0].mxu0
      %v2225 = vadd.f32 0.0, %v2224
      %v2226 = vpop.f32.mrb[0].mxu0
      %2227 = vmatprep.mubr.bf16.mxu0 0
      %2228 = vmatmul.mubr.bf16.gmra.mrb[0].mxu0 %v2108
      %v2229 = vpop.f32.mrb[0].mxu0
      %v2230 = vadd.f32 0.0, %v2229
      %v2231 = vpop.f32.mrb[0].mxu0
      %v2232 = vpop.f32.mrb[0].mxu0
      %v2233 = vadd.f32 0.0, %v2232
      %v2234 = vpop.f32.mrb[0].mxu0
      %2235 = vmatprep.mubr.bf16.mxu0 0
      %2236 = vmatmul.mubr.bf16.gmra.mrb[0].mxu0 %v2111
      %v2237 = vpop.f32.mrb[0].mxu0
      %v2238 = vadd.f32 0.0, %v2237
      %v2239 = vpop.f32.mrb[0].mxu0
      %v2240 = vpop.f32.mrb[0].mxu0
      %v2241 = vadd.f32 0.0, %v2240
      %v2242 = vpop.f32.mrb[0].mxu0
      %2243 = vmatprep.mubr.bf16.mxu0 0
      %2244 = vmatmul.mubr.bf16.gmra.mrb[0].mxu0 %v2114
      %v2245 = vpop.f32.mrb[0].mxu0
      %v2246 = vadd.f32 0.0, %v2245
      %v2247 = vpop.f32.mrb[0].mxu0
      %v2248 = vpop.f32.mrb[0].mxu0
      %v2249 = vadd.f32 0.0, %v2248
      %v2250 = vpop.f32.mrb[0].mxu0
      %2251 = vmatprep.mubr.bf16.mxu0 0
      %2252 = vmatmul.mubr.bf16.gmra.mrb[0].mxu0 %v2117
      %v2253 = vpop.f32.mrb[0].mxu0
      %v2254 = vadd.f32 0.0, %v2253
      %v2255 = vpop.f32.mrb[0].mxu0
      %v2256 = vpop.f32.mrb[0].mxu0
      %v2257 = vadd.f32 0.0, %v2256
      %v2258 = vpop.f32.mrb[0].mxu0
      %2259 = vmatprep.mubr.bf16.mxu0 0
      %2260 = vmatmul.mubr.bf16.gmra.mrb[0].mxu0 %v2120
      %v2261 = vpop.f32.mrb[0].mxu0
      %v2262 = vadd.f32 0.0, %v2261
      %v2263 = vpop.f32.mrb[0].mxu0
      %v2264 = vpop.f32.mrb[0].mxu0
      %v2265 = vadd.f32 0.0, %v2264
      %v2266 = vpop.f32.mrb[0].mxu0
      %2267 = vmatprep.mubr.bf16.mxu0 0
      %2268 = vmatmul.mubr.bf16.gmra.mrb[0].mxu0 %v2123
      %v2269 = vpop.f32.mrb[0].mxu0
      %v2270 = vadd.f32 0.0, %v2269
      %v2271 = vpop.f32.mrb[0].mxu0
      %v2272 = vpop.f32.mrb[0].mxu0
      %v2273 = vadd.f32 0.0, %v2272
      %v2274 = vpop.f32.mrb[0].mxu0
      %2275 = vmatprep.mubr.bf16.mxu0 0
      %2276 = vmatmul.mubr.bf16.gmra.mrb[0].mxu0 %v2126
      %v2277 = vpop.f32.mrb[0].mxu0
      %v2278 = vadd.f32 0.0, %v2277
      %v2279 = vpop.f32.mrb[0].mxu0
      %v2280 = vpop.f32.mrb[0].mxu0
      %v2281 = vadd.f32 0.0, %v2280
      %v2282 = vpop.f32.mrb[0].mxu0
      %2283 = vmatprep.mubr.bf16.mxu0 0
      %2284 = vmatmul.mubr.bf16.gmra.mrb[0].mxu0 %v2129
      %v2285 = vpop.f32.mrb[0].mxu0
      %v2286 = vadd.f32 0.0, %v2285
      %v2287 = vpop.f32.mrb[0].mxu0
      %v2288 = vpop.f32.mrb[0].mxu0
      %v2289 = vadd.f32 0.0, %v2288
      %v2290 = vpop.f32.mrb[0].mxu0
      %2291 = vdwg.mxu0
      %v2292 = vld [vmem:[#allocation2 + $0x300] sm:$0xff]
      %v2293 = vld [vmem:[#allocation2 + $0x308] sm:$0xff]
      %v2294 = vld [vmem:[#allocation2 + $0x310] sm:$0xff]
      %v2295 = vld [vmem:[#allocation2 + $0x318] sm:$0xff]
      %v2296 = vld [vmem:[#allocation2 + $0x320] sm:$0xff]
      %v2297 = vld [vmem:[#allocation2 + $0x328] sm:$0xff]
      %v2298 = vld [vmem:[#allocation2 + $0x330] sm:$0xff]
      %v2299 = vld [vmem:[#allocation2 + $0x338] sm:$0xff]
      %v2300 = vld [vmem:[#allocation2 + $0x340] sm:$0xff]
      %v2301 = vld [vmem:[#allocation2 + $0x348] sm:$0xff]
      %v2302 = vld [vmem:[#allocation2 + $0x350] sm:$0xff]
      %v2303 = vld [vmem:[#allocation2 + $0x358] sm:$0xff]
      %v2304 = vld [vmem:[#allocation2 + $0x360] sm:$0xff]
      %v2305 = vld [vmem:[#allocation2 + $0x368] sm:$0xff]
      %v2306 = vld [vmem:[#allocation2 + $0x370] sm:$0xff]
      %v2307 = vld [vmem:[#allocation2 + $0x378] sm:$0xff]
      %v2308 = vld [vmem:[#allocation2 + $0x380] sm:$0xff]
      %v2309 = vld [vmem:[#allocation2 + $0x388] sm:$0xff]
      %v2310 = vld [vmem:[#allocation2 + $0x390] sm:$0xff]
      %v2311 = vld [vmem:[#allocation2 + $0x398] sm:$0xff]
      %v2312 = vld [vmem:[#allocation2 + $0x3a0] sm:$0xff]
      %v2313 = vld [vmem:[#allocation2 + $0x3a8] sm:$0xff]
      %v2314 = vld [vmem:[#allocation2 + $0x3b0] sm:$0xff]
      %v2315 = vld [vmem:[#allocation2 + $0x3b8] sm:$0xff]
      %v2316 = vld [vmem:[#allocation2 + $0x3c0] sm:$0xff]
      %v2317 = vld [vmem:[#allocation2 + $0x3c8] sm:$0xff]
      %v2318 = vld [vmem:[#allocation2 + $0x3d0] sm:$0xff]
      %v2319 = vld [vmem:[#allocation2 + $0x3d8] sm:$0xff]
      %v2320 = vld [vmem:[#allocation2 + $0x3e0] sm:$0xff]
      %v2321 = vld [vmem:[#allocation2 + $0x3e8] sm:$0xff]
      %v2322 = vld [vmem:[#allocation2 + $0x3f0] sm:$0xff]
      %v2323 = vld [vmem:[#allocation2 + $0x3f8] sm:$0xff]
      %v2324 = vmax.f32 %v2292, %v2166
      %v2325 = vmax.f32 %v2293, %v2169
      %v2326 = vmax.f32 %v2294, %v2174
      %v2327 = vmax.f32 %v2295, %v2177
      %v2328 = vmax.f32 %v2296, %v2182
      %v2329 = vmax.f32 %v2297, %v2185
      %v2330 = vmax.f32 %v2298, %v2190
      %v2331 = vmax.f32 %v2299, %v2193
      %v2332 = vmax.f32 %v2300, %v2198
      %v2333 = vmax.f32 %v2301, %v2201
      %v2334 = vmax.f32 %v2302, %v2206
      %v2335 = vmax.f32 %v2303, %v2209
      %v2336 = vmax.f32 %v2304, %v2214
      %v2337 = vmax.f32 %v2305, %v2217
      %v2338 = vmax.f32 %v2306, %v2222
      %v2339 = vmax.f32 %v2307, %v2225
      %v2340 = vmax.f32 %v2308, %v2230
      %v2341 = vmax.f32 %v2309, %v2233
      %v2342 = vmax.f32 %v2310, %v2238
      %v2343 = vmax.f32 %v2311, %v2241
      %v2344 = vmax.f32 %v2312, %v2246
      %v2345 = vmax.f32 %v2313, %v2249
      %v2346 = vmax.f32 %v2314, %v2254
      %v2347 = vmax.f32 %v2315, %v2257
      %v2348 = vmax.f32 %v2316, %v2262
      %v2349 = vmax.f32 %v2317, %v2265
      %v2350 = vmax.f32 %v2318, %v2270
      %v2351 = vmax.f32 %v2319, %v2273
      %v2352 = vmax.f32 %v2320, %v2278
      %v2353 = vmax.f32 %v2321, %v2281
      %v2354 = vmax.f32 %v2322, %v2286
      %v2355 = vmax.f32 %v2323, %v2289
      %2356 = vst [vmem:[#allocation2 + $0x300] sm:$0xff] %v2324
      %2357 = vst [vmem:[#allocation2 + $0x308] sm:$0xff] %v2325
      %2358 = vst [vmem:[#allocation2 + $0x310] sm:$0xff] %v2326
      %2359 = vst [vmem:[#allocation2 + $0x318] sm:$0xff] %v2327
      %2360 = vst [vmem:[#allocation2 + $0x320] sm:$0xff] %v2328
      %2361 = vst [vmem:[#allocation2 + $0x328] sm:$0xff] %v2329
      %2362 = vst [vmem:[#allocation2 + $0x330] sm:$0xff] %v2330
      %2363 = vst [vmem:[#allocation2 + $0x338] sm:$0xff] %v2331
      %2364 = vst [vmem:[#allocation2 + $0x340] sm:$0xff] %v2332
      %2365 = vst [vmem:[#allocation2 + $0x348] sm:$0xff] %v2333
      %2366 = vst [vmem:[#allocation2 + $0x350] sm:$0xff] %v2334
      %2367 = vst [vmem:[#allocation2 + $0x358] sm:$0xff] %v2335
      %2368 = vst [vmem:[#allocation2 + $0x360] sm:$0xff] %v2336
      %2369 = vst [vmem:[#allocation2 + $0x368] sm:$0xff] %v2337
      %2370 = vst [vmem:[#allocation2 + $0x370] sm:$0xff] %v2338
      %2371 = vst [vmem:[#allocation2 + $0x378] sm:$0xff] %v2339
      %2372 = vst [vmem:[#allocation2 + $0x380] sm:$0xff] %v2340
      %2373 = vst [vmem:[#allocation2 + $0x388] sm:$0xff] %v2341
      %2374 = vst [vmem:[#allocation2 + $0x390] sm:$0xff] %v2342
      %2375 = vst [vmem:[#allocation2 + $0x398] sm:$0xff] %v2343
      %2376 = vst [vmem:[#allocation2 + $0x3a0] sm:$0xff] %v2344
      %2377 = vst [vmem:[#allocation2 + $0x3a8] sm:$0xff] %v2345
      %2378 = vst [vmem:[#allocation2 + $0x3b0] sm:$0xff] %v2346
      %2379 = vst [vmem:[#allocation2 + $0x3b8] sm:$0xff] %v2347
      %2380 = vst [vmem:[#allocation2 + $0x3c0] sm:$0xff] %v2348
      %2381 = vst [vmem:[#allocation2 + $0x3c8] sm:$0xff] %v2349
      %2382 = vst [vmem:[#allocation2 + $0x3d0] sm:$0xff] %v2350
      %2383 = vst [vmem:[#allocation2 + $0x3d8] sm:$0xff] %v2351
      %2384 = vst [vmem:[#allocation2 + $0x3e0] sm:$0xff] %v2352
      %2385 = vst [vmem:[#allocation2 + $0x3e8] sm:$0xff] %v2353
      %2386 = vst [vmem:[#allocation2 + $0x3f0] sm:$0xff] %v2354
      %2387 = vst [vmem:[#allocation2 + $0x3f8] sm:$0xff] %v2355
      // Predicated region
      $region61: #{t_net_forward.1} parent=55 // pred_check
        %p2388 = pneg %p354
      $region62: #{t_net_forward.1} parent=55 // pred_check_branch
        %2390 = sbr.rel (%p2388) target = $region64
      $region63: #{t_net_forward.1} parent=55 // pred_region
        %v2391 = vld [vmem:[#allocation2] sm:$0xff]
        %v2392 = vld [vmem:[#allocation2 + $0x8] sm:$0xff]
        %v2393 = vld [vmem:[#allocation2 + $0x10] sm:$0xff]
        %v2394 = vld [vmem:[#allocation2 + $0x18] sm:$0xff]
        %v2395 = vld [vmem:[#allocation2 + $0x20] sm:$0xff]
        %v2396 = vld [vmem:[#allocation2 + $0x28] sm:$0xff]
        %v2397 = vld [vmem:[#allocation2 + $0x30] sm:$0xff]
        %v2398 = vld [vmem:[#allocation2 + $0x38] sm:$0xff]
        %v2399 = vld [vmem:[#allocation2 + $0x40] sm:$0xff]
        %v2400 = vld [vmem:[#allocation2 + $0x48] sm:$0xff]
        %v2401 = vld [vmem:[#allocation2 + $0x50] sm:$0xff]
        %v2402 = vld [vmem:[#allocation2 + $0x58] sm:$0xff]
        %v2403 = vld [vmem:[#allocation2 + $0x60] sm:$0xff]
        %v2404 = vld [vmem:[#allocation2 + $0x68] sm:$0xff]
        %v2405 = vld [vmem:[#allocation2 + $0x70] sm:$0xff]
        %v2406 = vld [vmem:[#allocation2 + $0x78] sm:$0xff]
        %v2407 = vld [vmem:[#allocation2 + $0x80] sm:$0xff]
        %v2408 = vld [vmem:[#allocation2 + $0x88] sm:$0xff]
        %v2409 = vld [vmem:[#allocation2 + $0x90] sm:$0xff]
        %v2410 = vld [vmem:[#allocation2 + $0x98] sm:$0xff]
        %v2411 = vld [vmem:[#allocation2 + $0xa0] sm:$0xff]
        %v2412 = vld [vmem:[#allocation2 + $0xa8] sm:$0xff]
        %v2413 = vld [vmem:[#allocation2 + $0xb0] sm:$0xff]
        %v2414 = vld [vmem:[#allocation2 + $0xb8] sm:$0xff]
        %v2415 = vld [vmem:[#allocation2 + $0xc0] sm:$0xff]
        %v2416 = vld [vmem:[#allocation2 + $0xc8] sm:$0xff]
        %v2417 = vld [vmem:[#allocation2 + $0xd0] sm:$0xff]
        %v2418 = vld [vmem:[#allocation2 + $0xd8] sm:$0xff]
        %v2419 = vld [vmem:[#allocation2 + $0xe0] sm:$0xff]
        %v2420 = vld [vmem:[#allocation2 + $0xe8] sm:$0xff]
        %v2421 = vld [vmem:[#allocation2 + $0xf0] sm:$0xff]
        %v2422 = vld [vmem:[#allocation2 + $0xf8] sm:$0xff]
        %v2423 = vld [vmem:[#allocation2 + $0x100] sm:$0xff]
        %v2424 = vld [vmem:[#allocation2 + $0x108] sm:$0xff]
        %v2425 = vld [vmem:[#allocation2 + $0x110] sm:$0xff]
        %v2426 = vld [vmem:[#allocation2 + $0x118] sm:$0xff]
        %v2427 = vld [vmem:[#allocation2 + $0x120] sm:$0xff]
        %v2428 = vld [vmem:[#allocation2 + $0x128] sm:$0xff]
        %v2429 = vld [vmem:[#allocation2 + $0x130] sm:$0xff]
        %v2430 = vld [vmem:[#allocation2 + $0x138] sm:$0xff]
        %v2431 = vld [vmem:[#allocation2 + $0x140] sm:$0xff]
        %v2432 = vld [vmem:[#allocation2 + $0x148] sm:$0xff]
        %v2433 = vld [vmem:[#allocation2 + $0x150] sm:$0xff]
        %v2434 = vld [vmem:[#allocation2 + $0x158] sm:$0xff]
        %v2435 = vld [vmem:[#allocation2 + $0x160] sm:$0xff]
        %v2436 = vld [vmem:[#allocation2 + $0x168] sm:$0xff]
        %v2437 = vld [vmem:[#allocation2 + $0x170] sm:$0xff]
        %v2438 = vld [vmem:[#allocation2 + $0x178] sm:$0xff]
        %v2439 = vld [vmem:[#allocation2 + $0x180] sm:$0xff]
        %v2440 = vld [vmem:[#allocation2 + $0x188] sm:$0xff]
        %v2441 = vld [vmem:[#allocation2 + $0x190] sm:$0xff]
        %v2442 = vld [vmem:[#allocation2 + $0x198] sm:$0xff]
        %v2443 = vld [vmem:[#allocation2 + $0x1a0] sm:$0xff]
        %v2444 = vld [vmem:[#allocation2 + $0x1a8] sm:$0xff]
        %v2445 = vld [vmem:[#allocation2 + $0x1b0] sm:$0xff]
        %v2446 = vld [vmem:[#allocation2 + $0x1b8] sm:$0xff]
        %v2447 = vld [vmem:[#allocation2 + $0x1c0] sm:$0xff]
        %v2448 = vld [vmem:[#allocation2 + $0x1c8] sm:$0xff]
        %v2449 = vld [vmem:[#allocation2 + $0x1d0] sm:$0xff]
        %v2450 = vld [vmem:[#allocation2 + $0x1d8] sm:$0xff]
        %v2451 = vld [vmem:[#allocation2 + $0x1e0] sm:$0xff]
        %v2452 = vld [vmem:[#allocation2 + $0x1e8] sm:$0xff]
        %v2453 = vld [vmem:[#allocation2 + $0x1f0] sm:$0xff]
        %v2454 = vld [vmem:[#allocation2 + $0x1f8] sm:$0xff]
        %v2455 = vld [vmem:[#allocation2 + $0x200] sm:$0xff]
        %v2456 = vld [vmem:[#allocation2 + $0x208] sm:$0xff]
        %v2457 = vld [vmem:[#allocation2 + $0x210] sm:$0xff]
        %v2458 = vld [vmem:[#allocation2 + $0x218] sm:$0xff]
        %v2459 = vld [vmem:[#allocation2 + $0x220] sm:$0xff]
        %v2460 = vld [vmem:[#allocation2 + $0x228] sm:$0xff]
        %v2461 = vld [vmem:[#allocation2 + $0x230] sm:$0xff]
        %v2462 = vld [vmem:[#allocation2 + $0x238] sm:$0xff]
        %v2463 = vld [vmem:[#allocation2 + $0x240] sm:$0xff]
        %v2464 = vld [vmem:[#allocation2 + $0x248] sm:$0xff]
        %v2465 = vld [vmem:[#allocation2 + $0x250] sm:$0xff]
        %v2466 = vld [vmem:[#allocation2 + $0x258] sm:$0xff]
        %v2467 = vld [vmem:[#allocation2 + $0x260] sm:$0xff]
        %v2468 = vld [vmem:[#allocation2 + $0x268] sm:$0xff]
        %v2469 = vld [vmem:[#allocation2 + $0x270] sm:$0xff]
        %v2470 = vld [vmem:[#allocation2 + $0x278] sm:$0xff]
        %v2471 = vld [vmem:[#allocation2 + $0x280] sm:$0xff]
        %v2472 = vld [vmem:[#allocation2 + $0x288] sm:$0xff]
        %v2473 = vld [vmem:[#allocation2 + $0x290] sm:$0xff]
        %v2474 = vld [vmem:[#allocation2 + $0x298] sm:$0xff]
        %v2475 = vld [vmem:[#allocation2 + $0x2a0] sm:$0xff]
        %v2476 = vld [vmem:[#allocation2 + $0x2a8] sm:$0xff]
        %v2477 = vld [vmem:[#allocation2 + $0x2b0] sm:$0xff]
        %v2478 = vld [vmem:[#allocation2 + $0x2b8] sm:$0xff]
        %v2479 = vld [vmem:[#allocation2 + $0x2c0] sm:$0xff]
        %v2480 = vld [vmem:[#allocation2 + $0x2c8] sm:$0xff]
        %v2481 = vld [vmem:[#allocation2 + $0x2d0] sm:$0xff]
        %v2482 = vld [vmem:[#allocation2 + $0x2d8] sm:$0xff]
        %v2483 = vld [vmem:[#allocation2 + $0x2e0] sm:$0xff]
        %v2484 = vld [vmem:[#allocation2 + $0x2e8] sm:$0xff]
        %v2485 = vld [vmem:[#allocation2 + $0x2f0] sm:$0xff]
        %v2486 = vld [vmem:[#allocation2 + $0x2f8] sm:$0xff]
        %v2487 = vld [vmem:[#allocation2 + $0x300] sm:$0xff]
        %v2488 = vld [vmem:[#allocation2 + $0x308] sm:$0xff]
        %v2489 = vld [vmem:[#allocation2 + $0x310] sm:$0xff]
        %v2490 = vld [vmem:[#allocation2 + $0x318] sm:$0xff]
        %v2491 = vld [vmem:[#allocation2 + $0x320] sm:$0xff]
        %v2492 = vld [vmem:[#allocation2 + $0x328] sm:$0xff]
        %v2493 = vld [vmem:[#allocation2 + $0x330] sm:$0xff]
        %v2494 = vld [vmem:[#allocation2 + $0x338] sm:$0xff]
        %v2495 = vld [vmem:[#allocation2 + $0x340] sm:$0xff]
        %v2496 = vld [vmem:[#allocation2 + $0x348] sm:$0xff]
        %v2497 = vld [vmem:[#allocation2 + $0x350] sm:$0xff]
        %v2498 = vld [vmem:[#allocation2 + $0x358] sm:$0xff]
        %v2499 = vld [vmem:[#allocation2 + $0x360] sm:$0xff]
        %v2500 = vld [vmem:[#allocation2 + $0x368] sm:$0xff]
        %v2501 = vld [vmem:[#allocation2 + $0x370] sm:$0xff]
        %v2502 = vld [vmem:[#allocation2 + $0x378] sm:$0xff]
        %v2503 = vld [vmem:[#allocation2 + $0x380] sm:$0xff]
        %v2504 = vld [vmem:[#allocation2 + $0x388] sm:$0xff]
        %v2505 = vld [vmem:[#allocation2 + $0x390] sm:$0xff]
        %v2506 = vld [vmem:[#allocation2 + $0x398] sm:$0xff]
        %v2507 = vld [vmem:[#allocation2 + $0x3a0] sm:$0xff]
        %v2508 = vld [vmem:[#allocation2 + $0x3a8] sm:$0xff]
        %v2509 = vld [vmem:[#allocation2 + $0x3b0] sm:$0xff]
        %v2510 = vld [vmem:[#allocation2 + $0x3b8] sm:$0xff]
        %v2511 = vld [vmem:[#allocation2 + $0x3c0] sm:$0xff]
        %v2512 = vld [vmem:[#allocation2 + $0x3c8] sm:$0xff]
        %v2513 = vld [vmem:[#allocation2 + $0x3d0] sm:$0xff]
        %v2514 = vld [vmem:[#allocation2 + $0x3d8] sm:$0xff]
        %v2515 = vld [vmem:[#allocation2 + $0x3e0] sm:$0xff]
        %v2516 = vld [vmem:[#allocation2 + $0x3e8] sm:$0xff]
        %v2517 = vld [vmem:[#allocation2 + $0x3f0] sm:$0xff]
        %v2518 = vld [vmem:[#allocation2 + $0x3f8] sm:$0xff]
        %2519 = vmax.xlane.f32.xlu0 %v2391
        %v2520 = vpop.xlane.xlu0 %2519
        %2521 = vmax.xlane.f32.xlu0 %v2392
        %v2522 = vpop.xlane.xlu0 %2521
        %2523 = vmax.xlane.f32.xlu0 %v2393
        %v2524 = vpop.xlane.xlu0 %2523
        %2525 = vmax.xlane.f32.xlu0 %v2394
        %v2526 = vpop.xlane.xlu0 %2525
        %2527 = vmax.xlane.f32.xlu0 %v2395
        %v2528 = vpop.xlane.xlu0 %2527
        %2529 = vmax.xlane.f32.xlu0 %v2396
        %v2530 = vpop.xlane.xlu0 %2529
        %2531 = vmax.xlane.f32.xlu0 %v2397
        %v2532 = vpop.xlane.xlu0 %2531
        %2533 = vmax.xlane.f32.xlu0 %v2398
        %v2534 = vpop.xlane.xlu0 %2533
        %2535 = vmax.xlane.f32.xlu0 %v2399
        %v2536 = vpop.xlane.xlu0 %2535
        %2537 = vmax.xlane.f32.xlu0 %v2400
        %v2538 = vpop.xlane.xlu0 %2537
        %2539 = vmax.xlane.f32.xlu0 %v2401
        %v2540 = vpop.xlane.xlu0 %2539
        %2541 = vmax.xlane.f32.xlu0 %v2402
        %v2542 = vpop.xlane.xlu0 %2541
        %2543 = vmax.xlane.f32.xlu0 %v2403
        %v2544 = vpop.xlane.xlu0 %2543
        %2545 = vmax.xlane.f32.xlu0 %v2404
        %v2546 = vpop.xlane.xlu0 %2545
        %2547 = vmax.xlane.f32.xlu0 %v2405
        %v2548 = vpop.xlane.xlu0 %2547
        %2549 = vmax.xlane.f32.xlu0 %v2406
        %v2550 = vpop.xlane.xlu0 %2549
        %2551 = vmax.xlane.f32.xlu0 %v2407
        %v2552 = vpop.xlane.xlu0 %2551
        %2553 = vmax.xlane.f32.xlu0 %v2408
        %v2554 = vpop.xlane.xlu0 %2553
        %2555 = vmax.xlane.f32.xlu0 %v2409
        %v2556 = vpop.xlane.xlu0 %2555
        %2557 = vmax.xlane.f32.xlu0 %v2410
        %v2558 = vpop.xlane.xlu0 %2557
        %2559 = vmax.xlane.f32.xlu0 %v2411
        %v2560 = vpop.xlane.xlu0 %2559
        %2561 = vmax.xlane.f32.xlu0 %v2412
        %v2562 = vpop.xlane.xlu0 %2561
        %2563 = vmax.xlane.f32.xlu0 %v2413
        %v2564 = vpop.xlane.xlu0 %2563
        %2565 = vmax.xlane.f32.xlu0 %v2414
        %v2566 = vpop.xlane.xlu0 %2565
        %2567 = vmax.xlane.f32.xlu0 %v2415
        %v2568 = vpop.xlane.xlu0 %2567
        %2569 = vmax.xlane.f32.xlu0 %v2416
        %v2570 = vpop.xlane.xlu0 %2569
        %2571 = vmax.xlane.f32.xlu0 %v2417
        %v2572 = vpop.xlane.xlu0 %2571
        %2573 = vmax.xlane.f32.xlu0 %v2418
        %v2574 = vpop.xlane.xlu0 %2573
        %2575 = vmax.xlane.f32.xlu0 %v2419
        %v2576 = vpop.xlane.xlu0 %2575
        %2577 = vmax.xlane.f32.xlu0 %v2420
        %v2578 = vpop.xlane.xlu0 %2577
        %2579 = vmax.xlane.f32.xlu0 %v2421
        %v2580 = vpop.xlane.xlu0 %2579
        %2581 = vmax.xlane.f32.xlu0 %v2422
        %v2582 = vpop.xlane.xlu0 %2581
        %2583 = vmax.xlane.f32.xlu0 %v2423
        %v2584 = vpop.xlane.xlu0 %2583
        %2585 = vmax.xlane.f32.xlu0 %v2424
        %v2586 = vpop.xlane.xlu0 %2585
        %2587 = vmax.xlane.f32.xlu0 %v2425
        %v2588 = vpop.xlane.xlu0 %2587
        %2589 = vmax.xlane.f32.xlu0 %v2426
        %v2590 = vpop.xlane.xlu0 %2589
        %2591 = vmax.xlane.f32.xlu0 %v2427
        %v2592 = vpop.xlane.xlu0 %2591
        %2593 = vmax.xlane.f32.xlu0 %v2428
        %v2594 = vpop.xlane.xlu0 %2593
        %2595 = vmax.xlane.f32.xlu0 %v2429
        %v2596 = vpop.xlane.xlu0 %2595
        %2597 = vmax.xlane.f32.xlu0 %v2430
        %v2598 = vpop.xlane.xlu0 %2597
        %2599 = vmax.xlane.f32.xlu0 %v2431
        %v2600 = vpop.xlane.xlu0 %2599
        %2601 = vmax.xlane.f32.xlu0 %v2432
        %v2602 = vpop.xlane.xlu0 %2601
        %2603 = vmax.xlane.f32.xlu0 %v2433
        %v2604 = vpop.xlane.xlu0 %2603
        %2605 = vmax.xlane.f32.xlu0 %v2434
        %v2606 = vpop.xlane.xlu0 %2605
        %2607 = vmax.xlane.f32.xlu0 %v2435
        %v2608 = vpop.xlane.xlu0 %2607
        %2609 = vmax.xlane.f32.xlu0 %v2436
        %v2610 = vpop.xlane.xlu0 %2609
        %2611 = vmax.xlane.f32.xlu0 %v2437
        %v2612 = vpop.xlane.xlu0 %2611
        %2613 = vmax.xlane.f32.xlu0 %v2438
        %v2614 = vpop.xlane.xlu0 %2613
        %2615 = vmax.xlane.f32.xlu0 %v2439
        %v2616 = vpop.xlane.xlu0 %2615
        %2617 = vmax.xlane.f32.xlu0 %v2440
        %v2618 = vpop.xlane.xlu0 %2617
        %2619 = vmax.xlane.f32.xlu0 %v2441
        %v2620 = vpop.xlane.xlu0 %2619
        %2621 = vmax.xlane.f32.xlu0 %v2442
        %v2622 = vpop.xlane.xlu0 %2621
        %2623 = vmax.xlane.f32.xlu0 %v2443
        %v2624 = vpop.xlane.xlu0 %2623
        %2625 = vmax.xlane.f32.xlu0 %v2444
        %v2626 = vpop.xlane.xlu0 %2625
        %2627 = vmax.xlane.f32.xlu0 %v2445
        %v2628 = vpop.xlane.xlu0 %2627
        %2629 = vmax.xlane.f32.xlu0 %v2446
        %v2630 = vpop.xlane.xlu0 %2629
        %2631 = vmax.xlane.f32.xlu0 %v2447
        %v2632 = vpop.xlane.xlu0 %2631
        %2633 = vmax.xlane.f32.xlu0 %v2448
        %v2634 = vpop.xlane.xlu0 %2633
        %2635 = vmax.xlane.f32.xlu0 %v2449
        %v2636 = vpop.xlane.xlu0 %2635
        %2637 = vmax.xlane.f32.xlu0 %v2450
        %v2638 = vpop.xlane.xlu0 %2637
        %2639 = vmax.xlane.f32.xlu0 %v2451
        %v2640 = vpop.xlane.xlu0 %2639
        %2641 = vmax.xlane.f32.xlu0 %v2452
        %v2642 = vpop.xlane.xlu0 %2641
        %2643 = vmax.xlane.f32.xlu0 %v2453
        %v2644 = vpop.xlane.xlu0 %2643
        %2645 = vmax.xlane.f32.xlu0 %v2454
        %v2646 = vpop.xlane.xlu0 %2645
        %2647 = vmax.xlane.f32.xlu0 %v2455
        %v2648 = vpop.xlane.xlu0 %2647
        %2649 = vmax.xlane.f32.xlu0 %v2456
        %v2650 = vpop.xlane.xlu0 %2649
        %2651 = vmax.xlane.f32.xlu0 %v2457
        %v2652 = vpop.xlane.xlu0 %2651
        %2653 = vmax.xlane.f32.xlu0 %v2458
        %v2654 = vpop.xlane.xlu0 %2653
        %2655 = vmax.xlane.f32.xlu0 %v2459
        %v2656 = vpop.xlane.xlu0 %2655
        %2657 = vmax.xlane.f32.xlu0 %v2460
        %v2658 = vpop.xlane.xlu0 %2657
        %2659 = vmax.xlane.f32.xlu0 %v2461
        %v2660 = vpop.xlane.xlu0 %2659
        %2661 = vmax.xlane.f32.xlu0 %v2462
        %v2662 = vpop.xlane.xlu0 %2661
        %2663 = vmax.xlane.f32.xlu0 %v2463
        %v2664 = vpop.xlane.xlu0 %2663
        %2665 = vmax.xlane.f32.xlu0 %v2464
        %v2666 = vpop.xlane.xlu0 %2665
        %2667 = vmax.xlane.f32.xlu0 %v2465
        %v2668 = vpop.xlane.xlu0 %2667
        %2669 = vmax.xlane.f32.xlu0 %v2466
        %v2670 = vpop.xlane.xlu0 %2669
        %2671 = vmax.xlane.f32.xlu0 %v2467
        %v2672 = vpop.xlane.xlu0 %2671
        %2673 = vmax.xlane.f32.xlu0 %v2468
        %v2674 = vpop.xlane.xlu0 %2673
        %2675 = vmax.xlane.f32.xlu0 %v2469
        %v2676 = vpop.xlane.xlu0 %2675
        %2677 = vmax.xlane.f32.xlu0 %v2470
        %v2678 = vpop.xlane.xlu0 %2677
        %2679 = vmax.xlane.f32.xlu0 %v2471
        %v2680 = vpop.xlane.xlu0 %2679
        %2681 = vmax.xlane.f32.xlu0 %v2472
        %v2682 = vpop.xlane.xlu0 %2681
        %2683 = vmax.xlane.f32.xlu0 %v2473
        %v2684 = vpop.xlane.xlu0 %2683
        %2685 = vmax.xlane.f32.xlu0 %v2474
        %v2686 = vpop.xlane.xlu0 %2685
        %2687 = vmax.xlane.f32.xlu0 %v2475
        %v2688 = vpop.xlane.xlu0 %2687
        %2689 = vmax.xlane.f32.xlu0 %v2476
        %v2690 = vpop.xlane.xlu0 %2689
        %2691 = vmax.xlane.f32.xlu0 %v2477
        %v2692 = vpop.xlane.xlu0 %2691
        %2693 = vmax.xlane.f32.xlu0 %v2478
        %v2694 = vpop.xlane.xlu0 %2693
        %2695 = vmax.xlane.f32.xlu0 %v2479
        %v2696 = vpop.xlane.xlu0 %2695
        %2697 = vmax.xlane.f32.xlu0 %v2480
        %v2698 = vpop.xlane.xlu0 %2697
        %2699 = vmax.xlane.f32.xlu0 %v2481
        %v2700 = vpop.xlane.xlu0 %2699
        %2701 = vmax.xlane.f32.xlu0 %v2482
        %v2702 = vpop.xlane.xlu0 %2701
        %2703 = vmax.xlane.f32.xlu0 %v2483
        %v2704 = vpop.xlane.xlu0 %2703
        %2705 = vmax.xlane.f32.xlu0 %v2484
        %v2706 = vpop.xlane.xlu0 %2705
        %2707 = vmax.xlane.f32.xlu0 %v2485
        %v2708 = vpop.xlane.xlu0 %2707
        %2709 = vmax.xlane.f32.xlu0 %v2486
        %v2710 = vpop.xlane.xlu0 %2709
        %2711 = vmax.xlane.f32.xlu0 %v2487
        %v2712 = vpop.xlane.xlu0 %2711
        %2713 = vmax.xlane.f32.xlu0 %v2488
        %v2714 = vpop.xlane.xlu0 %2713
        %2715 = vmax.xlane.f32.xlu0 %v2489
        %v2716 = vpop.xlane.xlu0 %2715
        %2717 = vmax.xlane.f32.xlu0 %v2490
        %v2718 = vpop.xlane.xlu0 %2717
        %2719 = vmax.xlane.f32.xlu0 %v2491
        %v2720 = vpop.xlane.xlu0 %2719
        %2721 = vmax.xlane.f32.xlu0 %v2492
        %v2722 = vpop.xlane.xlu0 %2721
        %2723 = vmax.xlane.f32.xlu0 %v2493
        %v2724 = vpop.xlane.xlu0 %2723
        %2725 = vmax.xlane.f32.xlu0 %v2494
        %v2726 = vpop.xlane.xlu0 %2725
        %2727 = vmax.xlane.f32.xlu0 %v2495
        %v2728 = vpop.xlane.xlu0 %2727
        %2729 = vmax.xlane.f32.xlu0 %v2496
        %v2730 = vpop.xlane.xlu0 %2729
        %2731 = vmax.xlane.f32.xlu0 %v2497
        %v2732 = vpop.xlane.xlu0 %2731
        %2733 = vmax.xlane.f32.xlu0 %v2498
        %v2734 = vpop.xlane.xlu0 %2733
        %2735 = vmax.xlane.f32.xlu0 %v2499
        %v2736 = vpop.xlane.xlu0 %2735
        %2737 = vmax.xlane.f32.xlu0 %v2500
        %v2738 = vpop.xlane.xlu0 %2737
        %2739 = vmax.xlane.f32.xlu0 %v2501
        %v2740 = vpop.xlane.xlu0 %2739
        %2741 = vmax.xlane.f32.xlu0 %v2502
        %v2742 = vpop.xlane.xlu0 %2741
        %2743 = vmax.xlane.f32.xlu0 %v2503
        %v2744 = vpop.xlane.xlu0 %2743
        %2745 = vmax.xlane.f32.xlu0 %v2504
        %v2746 = vpop.xlane.xlu0 %2745
        %2747 = vmax.xlane.f32.xlu0 %v2505
        %v2748 = vpop.xlane.xlu0 %2747
        %2749 = vmax.xlane.f32.xlu0 %v2506
        %v2750 = vpop.xlane.xlu0 %2749
        %2751 = vmax.xlane.f32.xlu0 %v2507
        %v2752 = vpop.xlane.xlu0 %2751
        %2753 = vmax.xlane.f32.xlu0 %v2508
        %v2754 = vpop.xlane.xlu0 %2753
        %2755 = vmax.xlane.f32.xlu0 %v2509
        %v2756 = vpop.xlane.xlu0 %2755
        %2757 = vmax.xlane.f32.xlu0 %v2510
        %v2758 = vpop.xlane.xlu0 %2757
        %2759 = vmax.xlane.f32.xlu0 %v2511
        %v2760 = vpop.xlane.xlu0 %2759
        %2761 = vmax.xlane.f32.xlu0 %v2512
        %v2762 = vpop.xlane.xlu0 %2761
        %2763 = vmax.xlane.f32.xlu0 %v2513
        %v2764 = vpop.xlane.xlu0 %2763
        %2765 = vmax.xlane.f32.xlu0 %v2514
        %v2766 = vpop.xlane.xlu0 %2765
        %2767 = vmax.xlane.f32.xlu0 %v2515
        %v2768 = vpop.xlane.xlu0 %2767
        %2769 = vmax.xlane.f32.xlu0 %v2516
        %v2770 = vpop.xlane.xlu0 %2769
        %2771 = vmax.xlane.f32.xlu0 %v2517
        %v2772 = vpop.xlane.xlu0 %2771
        %2773 = vmax.xlane.f32.xlu0 %v2518
        %v2774 = vpop.xlane.xlu0 %2773
        %v2775 = vld [vmem:[%s4] sm:$0xff]
        %v2776 = vld [vmem:[%s4 + $0x8] sm:$0xff]
        %v2777 = vld [vmem:[%s4 + $0x10] sm:$0xff]
        %v2778 = vld [vmem:[%s4 + $0x18] sm:$0xff]
        %v2779 = vld [vmem:[%s4 + $0x20] sm:$0xff]
        %v2780 = vld [vmem:[%s4 + $0x28] sm:$0xff]
        %v2781 = vld [vmem:[%s4 + $0x30] sm:$0xff]
        %v2782 = vld [vmem:[%s4 + $0x38] sm:$0xff]
        %v2783 = vld [vmem:[%s4 + $0x40] sm:$0xff]
        %v2784 = vld [vmem:[%s4 + $0x48] sm:$0xff]
        %v2785 = vld [vmem:[%s4 + $0x50] sm:$0xff]
        %v2786 = vld [vmem:[%s4 + $0x58] sm:$0xff]
        %v2787 = vld [vmem:[%s4 + $0x60] sm:$0xff]
        %v2788 = vld [vmem:[%s4 + $0x68] sm:$0xff]
        %v2789 = vld [vmem:[%s4 + $0x70] sm:$0xff]
        %v2790 = vld [vmem:[%s4 + $0x78] sm:$0xff]
        %v2791 = vld [vmem:[%s4 + $0x80] sm:$0xff]
        %v2792 = vld [vmem:[%s4 + $0x88] sm:$0xff]
        %v2793 = vld [vmem:[%s4 + $0x90] sm:$0xff]
        %v2794 = vld [vmem:[%s4 + $0x98] sm:$0xff]
        %v2795 = vld [vmem:[%s4 + $0xa0] sm:$0xff]
        %v2796 = vld [vmem:[%s4 + $0xa8] sm:$0xff]
        %v2797 = vld [vmem:[%s4 + $0xb0] sm:$0xff]
        %v2798 = vld [vmem:[%s4 + $0xb8] sm:$0xff]
        %v2799 = vld [vmem:[%s4 + $0xc0] sm:$0xff]
        %v2800 = vld [vmem:[%s4 + $0xc8] sm:$0xff]
        %v2801 = vld [vmem:[%s4 + $0xd0] sm:$0xff]
        %v2802 = vld [vmem:[%s4 + $0xd8] sm:$0xff]
        %v2803 = vld [vmem:[%s4 + $0xe0] sm:$0xff]
        %v2804 = vld [vmem:[%s4 + $0xe8] sm:$0xff]
        %v2805 = vld [vmem:[%s4 + $0xf0] sm:$0xff]
        %v2806 = vld [vmem:[%s4 + $0xf8] sm:$0xff]
        %v2807 = vld [vmem:[%s4 + $0x100] sm:$0xff]
        %v2808 = vld [vmem:[%s4 + $0x108] sm:$0xff]
        %v2809 = vld [vmem:[%s4 + $0x110] sm:$0xff]
        %v2810 = vld [vmem:[%s4 + $0x118] sm:$0xff]
        %v2811 = vld [vmem:[%s4 + $0x120] sm:$0xff]
        %v2812 = vld [vmem:[%s4 + $0x128] sm:$0xff]
        %v2813 = vld [vmem:[%s4 + $0x130] sm:$0xff]
        %v2814 = vld [vmem:[%s4 + $0x138] sm:$0xff]
        %v2815 = vld [vmem:[%s4 + $0x140] sm:$0xff]
        %v2816 = vld [vmem:[%s4 + $0x148] sm:$0xff]
        %v2817 = vld [vmem:[%s4 + $0x150] sm:$0xff]
        %v2818 = vld [vmem:[%s4 + $0x158] sm:$0xff]
        %v2819 = vld [vmem:[%s4 + $0x160] sm:$0xff]
        %v2820 = vld [vmem:[%s4 + $0x168] sm:$0xff]
        %v2821 = vld [vmem:[%s4 + $0x170] sm:$0xff]
        %v2822 = vld [vmem:[%s4 + $0x178] sm:$0xff]
        %v2823 = vld [vmem:[%s4 + $0x180] sm:$0xff]
        %v2824 = vld [vmem:[%s4 + $0x188] sm:$0xff]
        %v2825 = vld [vmem:[%s4 + $0x190] sm:$0xff]
        %v2826 = vld [vmem:[%s4 + $0x198] sm:$0xff]
        %v2827 = vld [vmem:[%s4 + $0x1a0] sm:$0xff]
        %v2828 = vld [vmem:[%s4 + $0x1a8] sm:$0xff]
        %v2829 = vld [vmem:[%s4 + $0x1b0] sm:$0xff]
        %v2830 = vld [vmem:[%s4 + $0x1b8] sm:$0xff]
        %v2831 = vld [vmem:[%s4 + $0x1c0] sm:$0xff]
        %v2832 = vld [vmem:[%s4 + $0x1c8] sm:$0xff]
        %v2833 = vld [vmem:[%s4 + $0x1d0] sm:$0xff]
        %v2834 = vld [vmem:[%s4 + $0x1d8] sm:$0xff]
        %v2835 = vld [vmem:[%s4 + $0x1e0] sm:$0xff]
        %v2836 = vld [vmem:[%s4 + $0x1e8] sm:$0xff]
        %v2837 = vld [vmem:[%s4 + $0x1f0] sm:$0xff]
        %v2838 = vld [vmem:[%s4 + $0x1f8] sm:$0xff]
        %v2839 = vld [vmem:[%s4 + $0x200] sm:$0xff]
        %v2840 = vld [vmem:[%s4 + $0x208] sm:$0xff]
        %v2841 = vld [vmem:[%s4 + $0x210] sm:$0xff]
        %v2842 = vld [vmem:[%s4 + $0x218] sm:$0xff]
        %v2843 = vld [vmem:[%s4 + $0x220] sm:$0xff]
        %v2844 = vld [vmem:[%s4 + $0x228] sm:$0xff]
        %v2845 = vld [vmem:[%s4 + $0x230] sm:$0xff]
        %v2846 = vld [vmem:[%s4 + $0x238] sm:$0xff]
        %v2847 = vld [vmem:[%s4 + $0x240] sm:$0xff]
        %v2848 = vld [vmem:[%s4 + $0x248] sm:$0xff]
        %v2849 = vld [vmem:[%s4 + $0x250] sm:$0xff]
        %v2850 = vld [vmem:[%s4 + $0x258] sm:$0xff]
        %v2851 = vld [vmem:[%s4 + $0x260] sm:$0xff]
        %v2852 = vld [vmem:[%s4 + $0x268] sm:$0xff]
        %v2853 = vld [vmem:[%s4 + $0x270] sm:$0xff]
        %v2854 = vld [vmem:[%s4 + $0x278] sm:$0xff]
        %v2855 = vld [vmem:[%s4 + $0x280] sm:$0xff]
        %v2856 = vld [vmem:[%s4 + $0x288] sm:$0xff]
        %v2857 = vld [vmem:[%s4 + $0x290] sm:$0xff]
        %v2858 = vld [vmem:[%s4 + $0x298] sm:$0xff]
        %v2859 = vld [vmem:[%s4 + $0x2a0] sm:$0xff]
        %v2860 = vld [vmem:[%s4 + $0x2a8] sm:$0xff]
        %v2861 = vld [vmem:[%s4 + $0x2b0] sm:$0xff]
        %v2862 = vld [vmem:[%s4 + $0x2b8] sm:$0xff]
        %v2863 = vld [vmem:[%s4 + $0x2c0] sm:$0xff]
        %v2864 = vld [vmem:[%s4 + $0x2c8] sm:$0xff]
        %v2865 = vld [vmem:[%s4 + $0x2d0] sm:$0xff]
        %v2866 = vld [vmem:[%s4 + $0x2d8] sm:$0xff]
        %v2867 = vld [vmem:[%s4 + $0x2e0] sm:$0xff]
        %v2868 = vld [vmem:[%s4 + $0x2e8] sm:$0xff]
        %v2869 = vld [vmem:[%s4 + $0x2f0] sm:$0xff]
        %v2870 = vld [vmem:[%s4 + $0x2f8] sm:$0xff]
        %v2871 = vld [vmem:[%s4 + $0x300] sm:$0xff]
        %v2872 = vld [vmem:[%s4 + $0x308] sm:$0xff]
        %v2873 = vld [vmem:[%s4 + $0x310] sm:$0xff]
        %v2874 = vld [vmem:[%s4 + $0x318] sm:$0xff]
        %v2875 = vld [vmem:[%s4 + $0x320] sm:$0xff]
        %v2876 = vld [vmem:[%s4 + $0x328] sm:$0xff]
        %v2877 = vld [vmem:[%s4 + $0x330] sm:$0xff]
        %v2878 = vld [vmem:[%s4 + $0x338] sm:$0xff]
        %v2879 = vld [vmem:[%s4 + $0x340] sm:$0xff]
        %v2880 = vld [vmem:[%s4 + $0x348] sm:$0xff]
        %v2881 = vld [vmem:[%s4 + $0x350] sm:$0xff]
        %v2882 = vld [vmem:[%s4 + $0x358] sm:$0xff]
        %v2883 = vld [vmem:[%s4 + $0x360] sm:$0xff]
        %v2884 = vld [vmem:[%s4 + $0x368] sm:$0xff]
        %v2885 = vld [vmem:[%s4 + $0x370] sm:$0xff]
        %v2886 = vld [vmem:[%s4 + $0x378] sm:$0xff]
        %v2887 = vld [vmem:[%s4 + $0x380] sm:$0xff]
        %v2888 = vld [vmem:[%s4 + $0x388] sm:$0xff]
        %v2889 = vld [vmem:[%s4 + $0x390] sm:$0xff]
        %v2890 = vld [vmem:[%s4 + $0x398] sm:$0xff]
        %v2891 = vld [vmem:[%s4 + $0x3a0] sm:$0xff]
        %v2892 = vld [vmem:[%s4 + $0x3a8] sm:$0xff]
        %v2893 = vld [vmem:[%s4 + $0x3b0] sm:$0xff]
        %v2894 = vld [vmem:[%s4 + $0x3b8] sm:$0xff]
        %v2895 = vld [vmem:[%s4 + $0x3c0] sm:$0xff]
        %v2896 = vld [vmem:[%s4 + $0x3c8] sm:$0xff]
        %v2897 = vld [vmem:[%s4 + $0x3d0] sm:$0xff]
        %v2898 = vld [vmem:[%s4 + $0x3d8] sm:$0xff]
        %v2899 = vld [vmem:[%s4 + $0x3e0] sm:$0xff]
        %v2900 = vld [vmem:[%s4 + $0x3e8] sm:$0xff]
        %v2901 = vld [vmem:[%s4 + $0x3f0] sm:$0xff]
        %v2902 = vld [vmem:[%s4 + $0x3f8] sm:$0xff]
        %v2903 = vadd.f32 %v2520, %v2775
        %v2904 = vadd.f32 %v2522, %v2776
        %v2905 = vadd.f32 %v2524, %v2777
        %v2906 = vadd.f32 %v2526, %v2778
        %v2907 = vadd.f32 %v2528, %v2779
        %v2908 = vadd.f32 %v2530, %v2780
        %v2909 = vadd.f32 %v2532, %v2781
        %v2910 = vadd.f32 %v2534, %v2782
        %v2911 = vadd.f32 %v2536, %v2783
        %v2912 = vadd.f32 %v2538, %v2784
        %v2913 = vadd.f32 %v2540, %v2785
        %v2914 = vadd.f32 %v2542, %v2786
        %v2915 = vadd.f32 %v2544, %v2787
        %v2916 = vadd.f32 %v2546, %v2788
        %v2917 = vadd.f32 %v2548, %v2789
        %v2918 = vadd.f32 %v2550, %v2790
        %v2919 = vadd.f32 %v2552, %v2791
        %v2920 = vadd.f32 %v2554, %v2792
        %v2921 = vadd.f32 %v2556, %v2793
        %v2922 = vadd.f32 %v2558, %v2794
        %v2923 = vadd.f32 %v2560, %v2795
        %v2924 = vadd.f32 %v2562, %v2796
        %v2925 = vadd.f32 %v2564, %v2797
        %v2926 = vadd.f32 %v2566, %v2798
        %v2927 = vadd.f32 %v2568, %v2799
        %v2928 = vadd.f32 %v2570, %v2800
        %v2929 = vadd.f32 %v2572, %v2801
        %v2930 = vadd.f32 %v2574, %v2802
        %v2931 = vadd.f32 %v2576, %v2803
        %v2932 = vadd.f32 %v2578, %v2804
        %v2933 = vadd.f32 %v2580, %v2805
        %v2934 = vadd.f32 %v2582, %v2806
        %v2935 = vadd.f32 %v2584, %v2807
        %v2936 = vadd.f32 %v2586, %v2808
        %v2937 = vadd.f32 %v2588, %v2809
        %v2938 = vadd.f32 %v2590, %v2810
        %v2939 = vadd.f32 %v2592, %v2811
        %v2940 = vadd.f32 %v2594, %v2812
        %v2941 = vadd.f32 %v2596, %v2813
        %v2942 = vadd.f32 %v2598, %v2814
        %v2943 = vadd.f32 %v2600, %v2815
        %v2944 = vadd.f32 %v2602, %v2816
        %v2945 = vadd.f32 %v2604, %v2817
        %v2946 = vadd.f32 %v2606, %v2818
        %v2947 = vadd.f32 %v2608, %v2819
        %v2948 = vadd.f32 %v2610, %v2820
        %v2949 = vadd.f32 %v2612, %v2821
        %v2950 = vadd.f32 %v2614, %v2822
        %v2951 = vadd.f32 %v2616, %v2823
        %v2952 = vadd.f32 %v2618, %v2824
        %v2953 = vadd.f32 %v2620, %v2825
        %v2954 = vadd.f32 %v2622, %v2826
        %v2955 = vadd.f32 %v2624, %v2827
        %v2956 = vadd.f32 %v2626, %v2828
        %v2957 = vadd.f32 %v2628, %v2829
        %v2958 = vadd.f32 %v2630, %v2830
        %v2959 = vadd.f32 %v2632, %v2831
        %v2960 = vadd.f32 %v2634, %v2832
        %v2961 = vadd.f32 %v2636, %v2833
        %v2962 = vadd.f32 %v2638, %v2834
        %v2963 = vadd.f32 %v2640, %v2835
        %v2964 = vadd.f32 %v2642, %v2836
        %v2965 = vadd.f32 %v2644, %v2837
        %v2966 = vadd.f32 %v2646, %v2838
        %v2967 = vadd.f32 %v2648, %v2839
        %v2968 = vadd.f32 %v2650, %v2840
        %v2969 = vadd.f32 %v2652, %v2841
        %v2970 = vadd.f32 %v2654, %v2842
        %v2971 = vadd.f32 %v2656, %v2843
        %v2972 = vadd.f32 %v2658, %v2844
        %v2973 = vadd.f32 %v2660, %v2845
        %v2974 = vadd.f32 %v2662, %v2846
        %v2975 = vadd.f32 %v2664, %v2847
        %v2976 = vadd.f32 %v2666, %v2848
        %v2977 = vadd.f32 %v2668, %v2849
        %v2978 = vadd.f32 %v2670, %v2850
        %v2979 = vadd.f32 %v2672, %v2851
        %v2980 = vadd.f32 %v2674, %v2852
        %v2981 = vadd.f32 %v2676, %v2853
        %v2982 = vadd.f32 %v2678, %v2854
        %v2983 = vadd.f32 %v2680, %v2855
        %v2984 = vadd.f32 %v2682, %v2856
        %v2985 = vadd.f32 %v2684, %v2857
        %v2986 = vadd.f32 %v2686, %v2858
        %v2987 = vadd.f32 %v2688, %v2859
        %v2988 = vadd.f32 %v2690, %v2860
        %v2989 = vadd.f32 %v2692, %v2861
        %v2990 = vadd.f32 %v2694, %v2862
        %v2991 = vadd.f32 %v2696, %v2863
        %v2992 = vadd.f32 %v2698, %v2864
        %v2993 = vadd.f32 %v2700, %v2865
        %v2994 = vadd.f32 %v2702, %v2866
        %v2995 = vadd.f32 %v2704, %v2867
        %v2996 = vadd.f32 %v2706, %v2868
        %v2997 = vadd.f32 %v2708, %v2869
        %v2998 = vadd.f32 %v2710, %v2870
        %v2999 = vadd.f32 %v2712, %v2871
        %v3000 = vadd.f32 %v2714, %v2872
        %v3001 = vadd.f32 %v2716, %v2873
        %v3002 = vadd.f32 %v2718, %v2874
        %v3003 = vadd.f32 %v2720, %v2875
        %v3004 = vadd.f32 %v2722, %v2876
        %v3005 = vadd.f32 %v2724, %v2877
        %v3006 = vadd.f32 %v2726, %v2878
        %v3007 = vadd.f32 %v2728, %v2879
        %v3008 = vadd.f32 %v2730, %v2880
        %v3009 = vadd.f32 %v2732, %v2881
        %v3010 = vadd.f32 %v2734, %v2882
        %v3011 = vadd.f32 %v2736, %v2883
        %v3012 = vadd.f32 %v2738, %v2884
        %v3013 = vadd.f32 %v2740, %v2885
        %v3014 = vadd.f32 %v2742, %v2886
        %v3015 = vadd.f32 %v2744, %v2887
        %v3016 = vadd.f32 %v2746, %v2888
        %v3017 = vadd.f32 %v2748, %v2889
        %v3018 = vadd.f32 %v2750, %v2890
        %v3019 = vadd.f32 %v2752, %v2891
        %v3020 = vadd.f32 %v2754, %v2892
        %v3021 = vadd.f32 %v2756, %v2893
        %v3022 = vadd.f32 %v2758, %v2894
        %v3023 = vadd.f32 %v2760, %v2895
        %v3024 = vadd.f32 %v2762, %v2896
        %v3025 = vadd.f32 %v2764, %v2897
        %v3026 = vadd.f32 %v2766, %v2898
        %v3027 = vadd.f32 %v2768, %v2899
        %v3028 = vadd.f32 %v2770, %v2900
        %v3029 = vadd.f32 %v2772, %v2901
        %v3030 = vadd.f32 %v2774, %v2902
        %v3031 = vld [vmem:[%s5] sm:$0xff]
        %v3032 = vld [vmem:[%s5 + $0x8] sm:$0xff]
        %v3033 = vld [vmem:[%s5 + $0x10] sm:$0xff]
        %v3034 = vld [vmem:[%s5 + $0x18] sm:$0xff]
        %v3035 = vld [vmem:[%s5 + $0x20] sm:$0xff]
        %v3036 = vld [vmem:[%s5 + $0x28] sm:$0xff]
        %v3037 = vld [vmem:[%s5 + $0x30] sm:$0xff]
        %v3038 = vld [vmem:[%s5 + $0x38] sm:$0xff]
        %v3039 = vld [vmem:[%s5 + $0x40] sm:$0xff]
        %v3040 = vld [vmem:[%s5 + $0x48] sm:$0xff]
        %v3041 = vld [vmem:[%s5 + $0x50] sm:$0xff]
        %v3042 = vld [vmem:[%s5 + $0x58] sm:$0xff]
        %v3043 = vld [vmem:[%s5 + $0x60] sm:$0xff]
        %v3044 = vld [vmem:[%s5 + $0x68] sm:$0xff]
        %v3045 = vld [vmem:[%s5 + $0x70] sm:$0xff]
        %v3046 = vld [vmem:[%s5 + $0x78] sm:$0xff]
        %v3047 = vld [vmem:[%s5 + $0x80] sm:$0xff]
        %v3048 = vld [vmem:[%s5 + $0x88] sm:$0xff]
        %v3049 = vld [vmem:[%s5 + $0x90] sm:$0xff]
        %v3050 = vld [vmem:[%s5 + $0x98] sm:$0xff]
        %v3051 = vld [vmem:[%s5 + $0xa0] sm:$0xff]
        %v3052 = vld [vmem:[%s5 + $0xa8] sm:$0xff]
        %v3053 = vld [vmem:[%s5 + $0xb0] sm:$0xff]
        %v3054 = vld [vmem:[%s5 + $0xb8] sm:$0xff]
        %v3055 = vld [vmem:[%s5 + $0xc0] sm:$0xff]
        %v3056 = vld [vmem:[%s5 + $0xc8] sm:$0xff]
        %v3057 = vld [vmem:[%s5 + $0xd0] sm:$0xff]
        %v3058 = vld [vmem:[%s5 + $0xd8] sm:$0xff]
        %v3059 = vld [vmem:[%s5 + $0xe0] sm:$0xff]
        %v3060 = vld [vmem:[%s5 + $0xe8] sm:$0xff]
        %v3061 = vld [vmem:[%s5 + $0xf0] sm:$0xff]
        %v3062 = vld [vmem:[%s5 + $0xf8] sm:$0xff]
        %v3063 = vld [vmem:[%s5 + $0x100] sm:$0xff]
        %v3064 = vld [vmem:[%s5 + $0x108] sm:$0xff]
        %v3065 = vld [vmem:[%s5 + $0x110] sm:$0xff]
        %v3066 = vld [vmem:[%s5 + $0x118] sm:$0xff]
        %v3067 = vld [vmem:[%s5 + $0x120] sm:$0xff]
        %v3068 = vld [vmem:[%s5 + $0x128] sm:$0xff]
        %v3069 = vld [vmem:[%s5 + $0x130] sm:$0xff]
        %v3070 = vld [vmem:[%s5 + $0x138] sm:$0xff]
        %v3071 = vld [vmem:[%s5 + $0x140] sm:$0xff]
        %v3072 = vld [vmem:[%s5 + $0x148] sm:$0xff]
        %v3073 = vld [vmem:[%s5 + $0x150] sm:$0xff]
        %v3074 = vld [vmem:[%s5 + $0x158] sm:$0xff]
        %v3075 = vld [vmem:[%s5 + $0x160] sm:$0xff]
        %v3076 = vld [vmem:[%s5 + $0x168] sm:$0xff]
        %v3077 = vld [vmem:[%s5 + $0x170] sm:$0xff]
        %v3078 = vld [vmem:[%s5 + $0x178] sm:$0xff]
        %v3079 = vld [vmem:[%s5 + $0x180] sm:$0xff]
        %v3080 = vld [vmem:[%s5 + $0x188] sm:$0xff]
        %v3081 = vld [vmem:[%s5 + $0x190] sm:$0xff]
        %v3082 = vld [vmem:[%s5 + $0x198] sm:$0xff]
        %v3083 = vld [vmem:[%s5 + $0x1a0] sm:$0xff]
        %v3084 = vld [vmem:[%s5 + $0x1a8] sm:$0xff]
        %v3085 = vld [vmem:[%s5 + $0x1b0] sm:$0xff]
        %v3086 = vld [vmem:[%s5 + $0x1b8] sm:$0xff]
        %v3087 = vld [vmem:[%s5 + $0x1c0] sm:$0xff]
        %v3088 = vld [vmem:[%s5 + $0x1c8] sm:$0xff]
        %v3089 = vld [vmem:[%s5 + $0x1d0] sm:$0xff]
        %v3090 = vld [vmem:[%s5 + $0x1d8] sm:$0xff]
        %v3091 = vld [vmem:[%s5 + $0x1e0] sm:$0xff]
        %v3092 = vld [vmem:[%s5 + $0x1e8] sm:$0xff]
        %v3093 = vld [vmem:[%s5 + $0x1f0] sm:$0xff]
        %v3094 = vld [vmem:[%s5 + $0x1f8] sm:$0xff]
        %v3095 = vld [vmem:[%s5 + $0x200] sm:$0xff]
        %v3096 = vld [vmem:[%s5 + $0x208] sm:$0xff]
        %v3097 = vld [vmem:[%s5 + $0x210] sm:$0xff]
        %v3098 = vld [vmem:[%s5 + $0x218] sm:$0xff]
        %v3099 = vld [vmem:[%s5 + $0x220] sm:$0xff]
        %v3100 = vld [vmem:[%s5 + $0x228] sm:$0xff]
        %v3101 = vld [vmem:[%s5 + $0x230] sm:$0xff]
        %v3102 = vld [vmem:[%s5 + $0x238] sm:$0xff]
        %v3103 = vld [vmem:[%s5 + $0x240] sm:$0xff]
        %v3104 = vld [vmem:[%s5 + $0x248] sm:$0xff]
        %v3105 = vld [vmem:[%s5 + $0x250] sm:$0xff]
        %v3106 = vld [vmem:[%s5 + $0x258] sm:$0xff]
        %v3107 = vld [vmem:[%s5 + $0x260] sm:$0xff]
        %v3108 = vld [vmem:[%s5 + $0x268] sm:$0xff]
        %v3109 = vld [vmem:[%s5 + $0x270] sm:$0xff]
        %v3110 = vld [vmem:[%s5 + $0x278] sm:$0xff]
        %v3111 = vld [vmem:[%s5 + $0x280] sm:$0xff]
        %v3112 = vld [vmem:[%s5 + $0x288] sm:$0xff]
        %v3113 = vld [vmem:[%s5 + $0x290] sm:$0xff]
        %v3114 = vld [vmem:[%s5 + $0x298] sm:$0xff]
        %v3115 = vld [vmem:[%s5 + $0x2a0] sm:$0xff]
        %v3116 = vld [vmem:[%s5 + $0x2a8] sm:$0xff]
        %v3117 = vld [vmem:[%s5 + $0x2b0] sm:$0xff]
        %v3118 = vld [vmem:[%s5 + $0x2b8] sm:$0xff]
        %v3119 = vld [vmem:[%s5 + $0x2c0] sm:$0xff]
        %v3120 = vld [vmem:[%s5 + $0x2c8] sm:$0xff]
        %v3121 = vld [vmem:[%s5 + $0x2d0] sm:$0xff]
        %v3122 = vld [vmem:[%s5 + $0x2d8] sm:$0xff]
        %v3123 = vld [vmem:[%s5 + $0x2e0] sm:$0xff]
        %v3124 = vld [vmem:[%s5 + $0x2e8] sm:$0xff]
        %v3125 = vld [vmem:[%s5 + $0x2f0] sm:$0xff]
        %v3126 = vld [vmem:[%s5 + $0x2f8] sm:$0xff]
        %v3127 = vld [vmem:[%s5 + $0x300] sm:$0xff]
        %v3128 = vld [vmem:[%s5 + $0x308] sm:$0xff]
        %v3129 = vld [vmem:[%s5 + $0x310] sm:$0xff]
        %v3130 = vld [vmem:[%s5 + $0x318] sm:$0xff]
        %v3131 = vld [vmem:[%s5 + $0x320] sm:$0xff]
        %v3132 = vld [vmem:[%s5 + $0x328] sm:$0xff]
        %v3133 = vld [vmem:[%s5 + $0x330] sm:$0xff]
        %v3134 = vld [vmem:[%s5 + $0x338] sm:$0xff]
        %v3135 = vld [vmem:[%s5 + $0x340] sm:$0xff]
        %v3136 = vld [vmem:[%s5 + $0x348] sm:$0xff]
        %v3137 = vld [vmem:[%s5 + $0x350] sm:$0xff]
        %v3138 = vld [vmem:[%s5 + $0x358] sm:$0xff]
        %v3139 = vld [vmem:[%s5 + $0x360] sm:$0xff]
        %v3140 = vld [vmem:[%s5 + $0x368] sm:$0xff]
        %v3141 = vld [vmem:[%s5 + $0x370] sm:$0xff]
        %v3142 = vld [vmem:[%s5 + $0x378] sm:$0xff]
        %v3143 = vld [vmem:[%s5 + $0x380] sm:$0xff]
        %v3144 = vld [vmem:[%s5 + $0x388] sm:$0xff]
        %v3145 = vld [vmem:[%s5 + $0x390] sm:$0xff]
        %v3146 = vld [vmem:[%s5 + $0x398] sm:$0xff]
        %v3147 = vld [vmem:[%s5 + $0x3a0] sm:$0xff]
        %v3148 = vld [vmem:[%s5 + $0x3a8] sm:$0xff]
        %v3149 = vld [vmem:[%s5 + $0x3b0] sm:$0xff]
        %v3150 = vld [vmem:[%s5 + $0x3b8] sm:$0xff]
        %v3151 = vld [vmem:[%s5 + $0x3c0] sm:$0xff]
        %v3152 = vld [vmem:[%s5 + $0x3c8] sm:$0xff]
        %v3153 = vld [vmem:[%s5 + $0x3d0] sm:$0xff]
        %v3154 = vld [vmem:[%s5 + $0x3d8] sm:$0xff]
        %v3155 = vld [vmem:[%s5 + $0x3e0] sm:$0xff]
        %v3156 = vld [vmem:[%s5 + $0x3e8] sm:$0xff]
        %v3157 = vld [vmem:[%s5 + $0x3f0] sm:$0xff]
        %v3158 = vld [vmem:[%s5 + $0x3f8] sm:$0xff]
        %v3159 = vpack.c.bf16 %v2904, %v2903
        %v3160 = vpack.c.bf16 %v2906, %v2905
        %v3161 = vpack.c.bf16 %v2908, %v2907
        %v3162 = vpack.c.bf16 %v2910, %v2909
        %v3163 = vpack.c.bf16 %v2912, %v2911
        %v3164 = vpack.c.bf16 %v2914, %v2913
        %v3165 = vpack.c.bf16 %v2916, %v2915
        %v3166 = vpack.c.bf16 %v2918, %v2917
        %v3167 = vpack.c.bf16 %v2920, %v2919
        %v3168 = vpack.c.bf16 %v2922, %v2921
        %v3169 = vpack.c.bf16 %v2924, %v2923
        %v3170 = vpack.c.bf16 %v2926, %v2925
        %v3171 = vpack.c.bf16 %v2928, %v2927
        %v3172 = vpack.c.bf16 %v2930, %v2929
        %v3173 = vpack.c.bf16 %v2932, %v2931
        %v3174 = vpack.c.bf16 %v2934, %v2933
        %v3175 = vpack.c.bf16 %v2936, %v2935
        %v3176 = vpack.c.bf16 %v2938, %v2937
        %v3177 = vpack.c.bf16 %v2940, %v2939
        %v3178 = vpack.c.bf16 %v2942, %v2941
        %v3179 = vpack.c.bf16 %v2944, %v2943
        %v3180 = vpack.c.bf16 %v2946, %v2945
        %v3181 = vpack.c.bf16 %v2948, %v2947
        %v3182 = vpack.c.bf16 %v2950, %v2949
        %v3183 = vpack.c.bf16 %v2952, %v2951
        %v3184 = vpack.c.bf16 %v2954, %v2953
        %v3185 = vpack.c.bf16 %v2956, %v2955
        %v3186 = vpack.c.bf16 %v2958, %v2957
        %v3187 = vpack.c.bf16 %v2960, %v2959
        %v3188 = vpack.c.bf16 %v2962, %v2961
        %v3189 = vpack.c.bf16 %v2964, %v2963
        %v3190 = vpack.c.bf16 %v2966, %v2965
        %v3191 = vpack.c.bf16 %v2968, %v2967
        %v3192 = vpack.c.bf16 %v2970, %v2969
        %v3193 = vpack.c.bf16 %v2972, %v2971
        %v3194 = vpack.c.bf16 %v2974, %v2973
        %v3195 = vpack.c.bf16 %v2976, %v2975
        %v3196 = vpack.c.bf16 %v2978, %v2977
        %v3197 = vpack.c.bf16 %v2980, %v2979
        %v3198 = vpack.c.bf16 %v2982, %v2981
        %v3199 = vpack.c.bf16 %v2984, %v2983
        %v3200 = vpack.c.bf16 %v2986, %v2985
        %v3201 = vpack.c.bf16 %v2988, %v2987
        %v3202 = vpack.c.bf16 %v2990, %v2989
        %v3203 = vpack.c.bf16 %v2992, %v2991
        %v3204 = vpack.c.bf16 %v2994, %v2993
        %v3205 = vpack.c.bf16 %v2996, %v2995
        %v3206 = vpack.c.bf16 %v2998, %v2997
        %v3207 = vpack.c.bf16 %v3000, %v2999
        %v3208 = vpack.c.bf16 %v3002, %v3001
        %v3209 = vpack.c.bf16 %v3004, %v3003
        %v3210 = vpack.c.bf16 %v3006, %v3005
        %v3211 = vpack.c.bf16 %v3008, %v3007
        %v3212 = vpack.c.bf16 %v3010, %v3009
        %v3213 = vpack.c.bf16 %v3012, %v3011
        %v3214 = vpack.c.bf16 %v3014, %v3013
        %v3215 = vpack.c.bf16 %v3016, %v3015
        %v3216 = vpack.c.bf16 %v3018, %v3017
        %v3217 = vpack.c.bf16 %v3020, %v3019
        %v3218 = vpack.c.bf16 %v3022, %v3021
        %v3219 = vpack.c.bf16 %v3024, %v3023
        %v3220 = vpack.c.bf16 %v3026, %v3025
        %v3221 = vpack.c.bf16 %v3028, %v3027
        %v3222 = vpack.c.bf16 %v3030, %v3029
        %v3223 = vld [vmem:[%s6] sm:$0xff]
        %v3224 = vld [vmem:[%s6 + $0x8] sm:$0xff]
        %v3225 = vld [vmem:[%s6 + $0x10] sm:$0xff]
        %v3226 = vld [vmem:[%s6 + $0x18] sm:$0xff]
        %v3227 = vld [vmem:[%s6 + $0x20] sm:$0xff]
        %v3228 = vld [vmem:[%s6 + $0x28] sm:$0xff]
        %v3229 = vld [vmem:[%s6 + $0x30] sm:$0xff]
        %v3230 = vld [vmem:[%s6 + $0x38] sm:$0xff]
        %v3231 = vld [vmem:[%s6 + $0x40] sm:$0xff]
        %v3232 = vld [vmem:[%s6 + $0x48] sm:$0xff]
        %v3233 = vld [vmem:[%s6 + $0x50] sm:$0xff]
        %v3234 = vld [vmem:[%s6 + $0x58] sm:$0xff]
        %v3235 = vld [vmem:[%s6 + $0x60] sm:$0xff]
        %v3236 = vld [vmem:[%s6 + $0x68] sm:$0xff]
        %v3237 = vld [vmem:[%s6 + $0x70] sm:$0xff]
        %v3238 = vld [vmem:[%s6 + $0x78] sm:$0xff]
        %v3239 = vld [vmem:[%s6 + $0x80] sm:$0xff]
        %v3240 = vld [vmem:[%s6 + $0x88] sm:$0xff]
        %v3241 = vld [vmem:[%s6 + $0x90] sm:$0xff]
        %v3242 = vld [vmem:[%s6 + $0x98] sm:$0xff]
        %v3243 = vld [vmem:[%s6 + $0xa0] sm:$0xff]
        %v3244 = vld [vmem:[%s6 + $0xa8] sm:$0xff]
        %v3245 = vld [vmem:[%s6 + $0xb0] sm:$0xff]
        %v3246 = vld [vmem:[%s6 + $0xb8] sm:$0xff]
        %v3247 = vld [vmem:[%s6 + $0xc0] sm:$0xff]
        %v3248 = vld [vmem:[%s6 + $0xc8] sm:$0xff]
        %v3249 = vld [vmem:[%s6 + $0xd0] sm:$0xff]
        %v3250 = vld [vmem:[%s6 + $0xd8] sm:$0xff]
        %v3251 = vld [vmem:[%s6 + $0xe0] sm:$0xff]
        %v3252 = vld [vmem:[%s6 + $0xe8] sm:$0xff]
        %v3253 = vld [vmem:[%s6 + $0xf0] sm:$0xff]
        %v3254 = vld [vmem:[%s6 + $0xf8] sm:$0xff]
        %v3383 = vunpack.c.l.b16 %v3031
        %v3384 = vunpack.c.h.b16 %v3031
        %v3385 = vunpack.c.l.b16 %v3032
        %v3386 = vunpack.c.h.b16 %v3032
        %v3387 = vunpack.c.l.b16 %v3033
        %v3388 = vunpack.c.h.b16 %v3033
        %v3389 = vunpack.c.l.b16 %v3034
        %v3390 = vunpack.c.h.b16 %v3034
        %v3391 = vunpack.c.l.b16 %v3035
        %v3392 = vunpack.c.h.b16 %v3035
        %v3393 = vunpack.c.l.b16 %v3036
        %v3394 = vunpack.c.h.b16 %v3036
        %v3395 = vunpack.c.l.b16 %v3037
        %v3396 = vunpack.c.h.b16 %v3037
        %v3397 = vunpack.c.l.b16 %v3038
        %v3398 = vunpack.c.h.b16 %v3038
        %v3399 = vunpack.c.l.b16 %v3039
        %v3400 = vunpack.c.h.b16 %v3039
        %v3401 = vunpack.c.l.b16 %v3040
        %v3402 = vunpack.c.h.b16 %v3040
        %v3403 = vunpack.c.l.b16 %v3041
        %v3404 = vunpack.c.h.b16 %v3041
        %v3405 = vunpack.c.l.b16 %v3042
        %v3406 = vunpack.c.h.b16 %v3042
        %v3407 = vunpack.c.l.b16 %v3043
        %v3408 = vunpack.c.h.b16 %v3043
        %v3409 = vunpack.c.l.b16 %v3044
        %v3410 = vunpack.c.h.b16 %v3044
        %v3411 = vunpack.c.l.b16 %v3045
        %v3412 = vunpack.c.h.b16 %v3045
        %v3413 = vunpack.c.l.b16 %v3046
        %v3414 = vunpack.c.h.b16 %v3046
        %v3415 = vunpack.c.l.b16 %v3047
        %v3416 = vunpack.c.h.b16 %v3047
        %v3417 = vunpack.c.l.b16 %v3048
        %v3418 = vunpack.c.h.b16 %v3048
        %v3419 = vunpack.c.l.b16 %v3049
        %v3420 = vunpack.c.h.b16 %v3049
        %v3421 = vunpack.c.l.b16 %v3050
        %v3422 = vunpack.c.h.b16 %v3050
        %v3423 = vunpack.c.l.b16 %v3051
        %v3424 = vunpack.c.h.b16 %v3051
        %v3425 = vunpack.c.l.b16 %v3052
        %v3426 = vunpack.c.h.b16 %v3052
        %v3427 = vunpack.c.l.b16 %v3053
        %v3428 = vunpack.c.h.b16 %v3053
        %v3429 = vunpack.c.l.b16 %v3054
        %v3430 = vunpack.c.h.b16 %v3054
        %v3431 = vunpack.c.l.b16 %v3055
        %v3432 = vunpack.c.h.b16 %v3055
        %v3433 = vunpack.c.l.b16 %v3056
        %v3434 = vunpack.c.h.b16 %v3056
        %v3435 = vunpack.c.l.b16 %v3057
        %v3436 = vunpack.c.h.b16 %v3057
        %v3437 = vunpack.c.l.b16 %v3058
        %v3438 = vunpack.c.h.b16 %v3058
        %v3439 = vunpack.c.l.b16 %v3059
        %v3440 = vunpack.c.h.b16 %v3059
        %v3441 = vunpack.c.l.b16 %v3060
        %v3442 = vunpack.c.h.b16 %v3060
        %v3443 = vunpack.c.l.b16 %v3061
        %v3444 = vunpack.c.h.b16 %v3061
        %v3445 = vunpack.c.l.b16 %v3062
        %v3446 = vunpack.c.h.b16 %v3062
        %v3447 = vunpack.c.l.b16 %v3063
        %v3448 = vunpack.c.h.b16 %v3063
        %v3449 = vunpack.c.l.b16 %v3064
        %v3450 = vunpack.c.h.b16 %v3064
        %v3451 = vunpack.c.l.b16 %v3065
        %v3452 = vunpack.c.h.b16 %v3065
        %v3453 = vunpack.c.l.b16 %v3066
        %v3454 = vunpack.c.h.b16 %v3066
        %v3455 = vunpack.c.l.b16 %v3067
        %v3456 = vunpack.c.h.b16 %v3067
        %v3457 = vunpack.c.l.b16 %v3068
        %v3458 = vunpack.c.h.b16 %v3068
        %v3459 = vunpack.c.l.b16 %v3069
        %v3460 = vunpack.c.h.b16 %v3069
        %v3461 = vunpack.c.l.b16 %v3070
        %v3462 = vunpack.c.h.b16 %v3070
        %v3463 = vunpack.c.l.b16 %v3071
        %v3464 = vunpack.c.h.b16 %v3071
        %v3465 = vunpack.c.l.b16 %v3072
        %v3466 = vunpack.c.h.b16 %v3072
        %v3467 = vunpack.c.l.b16 %v3073
        %v3468 = vunpack.c.h.b16 %v3073
        %v3469 = vunpack.c.l.b16 %v3074
        %v3470 = vunpack.c.h.b16 %v3074
        %v3471 = vunpack.c.l.b16 %v3075
        %v3472 = vunpack.c.h.b16 %v3075
        %v3473 = vunpack.c.l.b16 %v3076
        %v3474 = vunpack.c.h.b16 %v3076
        %v3475 = vunpack.c.l.b16 %v3077
        %v3476 = vunpack.c.h.b16 %v3077
        %v3477 = vunpack.c.l.b16 %v3078
        %v3478 = vunpack.c.h.b16 %v3078
        %v3479 = vunpack.c.l.b16 %v3079
        %v3480 = vunpack.c.h.b16 %v3079
        %v3481 = vunpack.c.l.b16 %v3080
        %v3482 = vunpack.c.h.b16 %v3080
        %v3483 = vunpack.c.l.b16 %v3081
        %v3484 = vunpack.c.h.b16 %v3081
        %v3485 = vunpack.c.l.b16 %v3082
        %v3486 = vunpack.c.h.b16 %v3082
        %v3487 = vunpack.c.l.b16 %v3083
        %v3488 = vunpack.c.h.b16 %v3083
        %v3489 = vunpack.c.l.b16 %v3084
        %v3490 = vunpack.c.h.b16 %v3084
        %v3491 = vunpack.c.l.b16 %v3085
        %v3492 = vunpack.c.h.b16 %v3085
        %v3493 = vunpack.c.l.b16 %v3086
        %v3494 = vunpack.c.h.b16 %v3086
        %v3495 = vunpack.c.l.b16 %v3087
        %v3496 = vunpack.c.h.b16 %v3087
        %v3497 = vunpack.c.l.b16 %v3088
        %v3498 = vunpack.c.h.b16 %v3088
        %v3499 = vunpack.c.l.b16 %v3089
        %v3500 = vunpack.c.h.b16 %v3089
        %v3501 = vunpack.c.l.b16 %v3090
        %v3502 = vunpack.c.h.b16 %v3090
        %v3503 = vunpack.c.l.b16 %v3091
        %v3504 = vunpack.c.h.b16 %v3091
        %v3505 = vunpack.c.l.b16 %v3092
        %v3506 = vunpack.c.h.b16 %v3092
        %v3507 = vunpack.c.l.b16 %v3093
        %v3508 = vunpack.c.h.b16 %v3093
        %v3509 = vunpack.c.l.b16 %v3094
        %v3510 = vunpack.c.h.b16 %v3094
        %v3511 = vunpack.c.l.b16 %v3095
        %v3512 = vunpack.c.h.b16 %v3095
        %v3513 = vunpack.c.l.b16 %v3096
        %v3514 = vunpack.c.h.b16 %v3096
        %v3515 = vunpack.c.l.b16 %v3097
        %v3516 = vunpack.c.h.b16 %v3097
        %v3517 = vunpack.c.l.b16 %v3098
        %v3518 = vunpack.c.h.b16 %v3098
        %v3519 = vunpack.c.l.b16 %v3099
        %v3520 = vunpack.c.h.b16 %v3099
        %v3521 = vunpack.c.l.b16 %v3100
        %v3522 = vunpack.c.h.b16 %v3100
        %v3523 = vunpack.c.l.b16 %v3101
        %v3524 = vunpack.c.h.b16 %v3101
        %v3525 = vunpack.c.l.b16 %v3102
        %v3526 = vunpack.c.h.b16 %v3102
        %v3527 = vunpack.c.l.b16 %v3103
        %v3528 = vunpack.c.h.b16 %v3103
        %v3529 = vunpack.c.l.b16 %v3104
        %v3530 = vunpack.c.h.b16 %v3104
        %v3531 = vunpack.c.l.b16 %v3105
        %v3532 = vunpack.c.h.b16 %v3105
        %v3533 = vunpack.c.l.b16 %v3106
        %v3534 = vunpack.c.h.b16 %v3106
        %v3535 = vunpack.c.l.b16 %v3107
        %v3536 = vunpack.c.h.b16 %v3107
        %v3537 = vunpack.c.l.b16 %v3108
        %v3538 = vunpack.c.h.b16 %v3108
        %v3539 = vunpack.c.l.b16 %v3109
        %v3540 = vunpack.c.h.b16 %v3109
        %v3541 = vunpack.c.l.b16 %v3110
        %v3542 = vunpack.c.h.b16 %v3110
        %v3543 = vunpack.c.l.b16 %v3111
        %v3544 = vunpack.c.h.b16 %v3111
        %v3545 = vunpack.c.l.b16 %v3112
        %v3546 = vunpack.c.h.b16 %v3112
        %v3547 = vunpack.c.l.b16 %v3113
        %v3548 = vunpack.c.h.b16 %v3113
        %v3549 = vunpack.c.l.b16 %v3114
        %v3550 = vunpack.c.h.b16 %v3114
        %v3551 = vunpack.c.l.b16 %v3115
        %v3552 = vunpack.c.h.b16 %v3115
        %v3553 = vunpack.c.l.b16 %v3116
        %v3554 = vunpack.c.h.b16 %v3116
        %v3555 = vunpack.c.l.b16 %v3117
        %v3556 = vunpack.c.h.b16 %v3117
        %v3557 = vunpack.c.l.b16 %v3118
        %v3558 = vunpack.c.h.b16 %v3118
        %v3559 = vunpack.c.l.b16 %v3119
        %v3560 = vunpack.c.h.b16 %v3119
        %v3561 = vunpack.c.l.b16 %v3120
        %v3562 = vunpack.c.h.b16 %v3120
        %v3563 = vunpack.c.l.b16 %v3121
        %v3564 = vunpack.c.h.b16 %v3121
        %v3565 = vunpack.c.l.b16 %v3122
        %v3566 = vunpack.c.h.b16 %v3122
        %v3567 = vunpack.c.l.b16 %v3123
        %v3568 = vunpack.c.h.b16 %v3123
        %v3569 = vunpack.c.l.b16 %v3124
        %v3570 = vunpack.c.h.b16 %v3124
        %v3571 = vunpack.c.l.b16 %v3125
        %v3572 = vunpack.c.h.b16 %v3125
        %v3573 = vunpack.c.l.b16 %v3126
        %v3574 = vunpack.c.h.b16 %v3126
        %v3575 = vunpack.c.l.b16 %v3127
        %v3576 = vunpack.c.h.b16 %v3127
        %v3577 = vunpack.c.l.b16 %v3128
        %v3578 = vunpack.c.h.b16 %v3128
        %v3579 = vunpack.c.l.b16 %v3129
        %v3580 = vunpack.c.h.b16 %v3129
        %v3581 = vunpack.c.l.b16 %v3130
        %v3582 = vunpack.c.h.b16 %v3130
        %v3583 = vunpack.c.l.b16 %v3131
        %v3584 = vunpack.c.h.b16 %v3131
        %v3585 = vunpack.c.l.b16 %v3132
        %v3586 = vunpack.c.h.b16 %v3132
        %v3587 = vunpack.c.l.b16 %v3133
        %v3588 = vunpack.c.h.b16 %v3133
        %v3589 = vunpack.c.l.b16 %v3134
        %v3590 = vunpack.c.h.b16 %v3134
        %v3591 = vunpack.c.l.b16 %v3135
        %v3592 = vunpack.c.h.b16 %v3135
        %v3593 = vunpack.c.l.b16 %v3136
        %v3594 = vunpack.c.h.b16 %v3136
        %v3595 = vunpack.c.l.b16 %v3137
        %v3596 = vunpack.c.h.b16 %v3137
        %v3597 = vunpack.c.l.b16 %v3138
        %v3598 = vunpack.c.h.b16 %v3138
        %v3599 = vunpack.c.l.b16 %v3139
        %v3600 = vunpack.c.h.b16 %v3139
        %v3601 = vunpack.c.l.b16 %v3140
        %v3602 = vunpack.c.h.b16 %v3140
        %v3603 = vunpack.c.l.b16 %v3141
        %v3604 = vunpack.c.h.b16 %v3141
        %v3605 = vunpack.c.l.b16 %v3142
        %v3606 = vunpack.c.h.b16 %v3142
        %v3607 = vunpack.c.l.b16 %v3143
        %v3608 = vunpack.c.h.b16 %v3143
        %v3609 = vunpack.c.l.b16 %v3144
        %v3610 = vunpack.c.h.b16 %v3144
        %v3611 = vunpack.c.l.b16 %v3145
        %v3612 = vunpack.c.h.b16 %v3145
        %v3613 = vunpack.c.l.b16 %v3146
        %v3614 = vunpack.c.h.b16 %v3146
        %v3615 = vunpack.c.l.b16 %v3147
        %v3616 = vunpack.c.h.b16 %v3147
        %v3617 = vunpack.c.l.b16 %v3148
        %v3618 = vunpack.c.h.b16 %v3148
        %v3619 = vunpack.c.l.b16 %v3149
        %v3620 = vunpack.c.h.b16 %v3149
        %v3621 = vunpack.c.l.b16 %v3150
        %v3622 = vunpack.c.h.b16 %v3150
        %v3623 = vunpack.c.l.b16 %v3151
        %v3624 = vunpack.c.h.b16 %v3151
        %v3625 = vunpack.c.l.b16 %v3152
        %v3626 = vunpack.c.h.b16 %v3152
        %v3627 = vunpack.c.l.b16 %v3153
        %v3628 = vunpack.c.h.b16 %v3153
        %v3629 = vunpack.c.l.b16 %v3154
        %v3630 = vunpack.c.h.b16 %v3154
        %v3631 = vunpack.c.l.b16 %v3155
        %v3632 = vunpack.c.h.b16 %v3155
        %v3633 = vunpack.c.l.b16 %v3156
        %v3634 = vunpack.c.h.b16 %v3156
        %v3635 = vunpack.c.l.b16 %v3157
        %v3636 = vunpack.c.h.b16 %v3157
        %v3637 = vunpack.c.l.b16 %v3158
        %v3638 = vunpack.c.h.b16 %v3158
        %v3639 = vpack.c.b16 %v3391, %v3383
        %v3640 = vpack.c.b16 %v3392, %v3384
        %v3641 = vpack.c.b16 %v3393, %v3385
        %v3642 = vpack.c.b16 %v3394, %v3386
        %v3643 = vpack.c.b16 %v3395, %v3387
        %v3644 = vpack.c.b16 %v3396, %v3388
        %v3645 = vpack.c.b16 %v3397, %v3389
        %v3646 = vpack.c.b16 %v3398, %v3390
        %v3647 = vpack.c.b16 %v3407, %v3399
        %v3648 = vpack.c.b16 %v3408, %v3400
        %v3649 = vpack.c.b16 %v3409, %v3401
        %v3650 = vpack.c.b16 %v3410, %v3402
        %v3651 = vpack.c.b16 %v3411, %v3403
        %v3652 = vpack.c.b16 %v3412, %v3404
        %v3653 = vpack.c.b16 %v3413, %v3405
        %v3654 = vpack.c.b16 %v3414, %v3406
        %v3655 = vpack.c.b16 %v3423, %v3415
        %v3656 = vpack.c.b16 %v3424, %v3416
        %v3657 = vpack.c.b16 %v3425, %v3417
        %v3658 = vpack.c.b16 %v3426, %v3418
        %v3659 = vpack.c.b16 %v3427, %v3419
        %v3660 = vpack.c.b16 %v3428, %v3420
        %v3661 = vpack.c.b16 %v3429, %v3421
        %v3662 = vpack.c.b16 %v3430, %v3422
        %v3663 = vpack.c.b16 %v3439, %v3431
        %v3664 = vpack.c.b16 %v3440, %v3432
        %v3665 = vpack.c.b16 %v3441, %v3433
        %v3666 = vpack.c.b16 %v3442, %v3434
        %v3667 = vpack.c.b16 %v3443, %v3435
        %v3668 = vpack.c.b16 %v3444, %v3436
        %v3669 = vpack.c.b16 %v3445, %v3437
        %v3670 = vpack.c.b16 %v3446, %v3438
        %v3671 = vpack.c.b16 %v3455, %v3447
        %v3672 = vpack.c.b16 %v3456, %v3448
        %v3673 = vpack.c.b16 %v3457, %v3449
        %v3674 = vpack.c.b16 %v3458, %v3450
        %v3675 = vpack.c.b16 %v3459, %v3451
        %v3676 = vpack.c.b16 %v3460, %v3452
        %v3677 = vpack.c.b16 %v3461, %v3453
        %v3678 = vpack.c.b16 %v3462, %v3454
        %v3679 = vpack.c.b16 %v3471, %v3463
        %v3680 = vpack.c.b16 %v3472, %v3464
        %v3681 = vpack.c.b16 %v3473, %v3465
        %v3682 = vpack.c.b16 %v3474, %v3466
        %v3683 = vpack.c.b16 %v3475, %v3467
        %v3684 = vpack.c.b16 %v3476, %v3468
        %v3685 = vpack.c.b16 %v3477, %v3469
        %v3686 = vpack.c.b16 %v3478, %v3470
        %v3687 = vpack.c.b16 %v3487, %v3479
        %v3688 = vpack.c.b16 %v3488, %v3480
        %v3689 = vpack.c.b16 %v3489, %v3481
        %v3690 = vpack.c.b16 %v3490, %v3482
        %v3691 = vpack.c.b16 %v3491, %v3483
        %v3692 = vpack.c.b16 %v3492, %v3484
        %v3693 = vpack.c.b16 %v3493, %v3485
        %v3694 = vpack.c.b16 %v3494, %v3486
        %v3695 = vpack.c.b16 %v3503, %v3495
        %v3696 = vpack.c.b16 %v3504, %v3496
        %v3697 = vpack.c.b16 %v3505, %v3497
        %v3698 = vpack.c.b16 %v3506, %v3498
        %v3699 = vpack.c.b16 %v3507, %v3499
        %v3700 = vpack.c.b16 %v3508, %v3500
        %v3701 = vpack.c.b16 %v3509, %v3501
        %v3702 = vpack.c.b16 %v3510, %v3502
        %v3703 = vpack.c.b16 %v3519, %v3511
        %v3704 = vpack.c.b16 %v3520, %v3512
        %v3705 = vpack.c.b16 %v3521, %v3513
        %v3706 = vpack.c.b16 %v3522, %v3514
        %v3707 = vpack.c.b16 %v3523, %v3515
        %v3708 = vpack.c.b16 %v3524, %v3516
        %v3709 = vpack.c.b16 %v3525, %v3517
        %v3710 = vpack.c.b16 %v3526, %v3518
        %v3711 = vpack.c.b16 %v3535, %v3527
        %v3712 = vpack.c.b16 %v3536, %v3528
        %v3713 = vpack.c.b16 %v3537, %v3529
        %v3714 = vpack.c.b16 %v3538, %v3530
        %v3715 = vpack.c.b16 %v3539, %v3531
        %v3716 = vpack.c.b16 %v3540, %v3532
        %v3717 = vpack.c.b16 %v3541, %v3533
        %v3718 = vpack.c.b16 %v3542, %v3534
        %v3719 = vpack.c.b16 %v3551, %v3543
        %v3720 = vpack.c.b16 %v3552, %v3544
        %v3721 = vpack.c.b16 %v3553, %v3545
        %v3722 = vpack.c.b16 %v3554, %v3546
        %v3723 = vpack.c.b16 %v3555, %v3547
        %v3724 = vpack.c.b16 %v3556, %v3548
        %v3725 = vpack.c.b16 %v3557, %v3549
        %v3726 = vpack.c.b16 %v3558, %v3550
        %v3727 = vpack.c.b16 %v3567, %v3559
        %v3728 = vpack.c.b16 %v3568, %v3560
        %v3729 = vpack.c.b16 %v3569, %v3561
        %v3730 = vpack.c.b16 %v3570, %v3562
        %v3731 = vpack.c.b16 %v3571, %v3563
        %v3732 = vpack.c.b16 %v3572, %v3564
        %v3733 = vpack.c.b16 %v3573, %v3565
        %v3734 = vpack.c.b16 %v3574, %v3566
        %v3735 = vpack.c.b16 %v3583, %v3575
        %v3736 = vpack.c.b16 %v3584, %v3576
        %v3737 = vpack.c.b16 %v3585, %v3577
        %v3738 = vpack.c.b16 %v3586, %v3578
        %v3739 = vpack.c.b16 %v3587, %v3579
        %v3740 = vpack.c.b16 %v3588, %v3580
        %v3741 = vpack.c.b16 %v3589, %v3581
        %v3742 = vpack.c.b16 %v3590, %v3582
        %v3743 = vpack.c.b16 %v3599, %v3591
        %v3744 = vpack.c.b16 %v3600, %v3592
        %v3745 = vpack.c.b16 %v3601, %v3593
        %v3746 = vpack.c.b16 %v3602, %v3594
        %v3747 = vpack.c.b16 %v3603, %v3595
        %v3748 = vpack.c.b16 %v3604, %v3596
        %v3749 = vpack.c.b16 %v3605, %v3597
        %v3750 = vpack.c.b16 %v3606, %v3598
        %v3751 = vpack.c.b16 %v3615, %v3607
        %v3752 = vpack.c.b16 %v3616, %v3608
        %v3753 = vpack.c.b16 %v3617, %v3609
        %v3754 = vpack.c.b16 %v3618, %v3610
        %v3755 = vpack.c.b16 %v3619, %v3611
        %v3756 = vpack.c.b16 %v3620, %v3612
        %v3757 = vpack.c.b16 %v3621, %v3613
        %v3758 = vpack.c.b16 %v3622, %v3614
        %v3759 = vpack.c.b16 %v3631, %v3623
        %v3760 = vpack.c.b16 %v3632, %v3624
        %v3761 = vpack.c.b16 %v3633, %v3625
        %v3762 = vpack.c.b16 %v3634, %v3626
        %v3763 = vpack.c.b16 %v3635, %v3627
        %v3764 = vpack.c.b16 %v3636, %v3628
        %v3765 = vpack.c.b16 %v3637, %v3629
        %v3766 = vpack.c.b16 %v3638, %v3630
        %3895 = vmatprep.subr.bf16.mxu0 0
        %3896 = vmatpush1.bf16.msra.mxu0 %v3159
        %3897 = vmatprep.subr.bf16.mxu0 0
        %3898 = vmatpush1.bf16.msra.mxu0 %v3160
        %3899 = vmatprep.subr.bf16.mxu0 0
        %3900 = vmatpush1.bf16.msra.mxu0 %v3161
        %3901 = vmatprep.subr.bf16.mxu0 0
        %3902 = vmatpush1.bf16.msra.mxu0 %v3162
        %3903 = vmatprep.subr.bf16.mxu0 0
        %3904 = vmatpush1.bf16.msra.mxu0 %v3163
        %3905 = vmatprep.subr.bf16.mxu0 0
        %3906 = vmatpush1.bf16.msra.mxu0 %v3164
        %3907 = vmatprep.subr.bf16.mxu0 0
        %3908 = vmatpush1.bf16.msra.mxu0 %v3165
        %3909 = vmatprep.subr.bf16.mxu0 0
        %3910 = vmatpush1.bf16.msra.mxu0 %v3166
        %3911 = vmatprep.subr.bf16.mxu0 0
        %3912 = vmatpush1.bf16.msra.mxu0 %v3167
        %3913 = vmatprep.subr.bf16.mxu0 0
        %3914 = vmatpush1.bf16.msra.mxu0 %v3168
        %3915 = vmatprep.subr.bf16.mxu0 0
        %3916 = vmatpush1.bf16.msra.mxu0 %v3169
        %3917 = vmatprep.subr.bf16.mxu0 0
        %3918 = vmatpush1.bf16.msra.mxu0 %v3170
        %3919 = vmatprep.subr.bf16.mxu0 0
        %3920 = vmatpush1.bf16.msra.mxu0 %v3171
        %3921 = vmatprep.subr.bf16.mxu0 0
        %3922 = vmatpush1.bf16.msra.mxu0 %v3172
        %3923 = vmatprep.subr.bf16.mxu0 0
        %3924 = vmatpush1.bf16.msra.mxu0 %v3173
        %3925 = vmatprep.subr.bf16.mxu0 0
        %3926 = vmatpush1.bf16.msra.mxu0 %v3174
        %3927 = vmatprep.mubr.bf16.mxu0 %v3640
        %3928 = vmatmul.mubr.bf16.gmra.mrb[0].mxu0 %v3639
        %v3929 = vpop.f32.mrb[0].mxu0
        %v3930 = vadd.f32 %v3223, %v3929
        %v3931 = vpop.f32.mrb[0].mxu0
        %v3932 = vpop.f32.mrb[0].mxu0
        %v3933 = vadd.f32 %v3224, %v3932
        %v3934 = vpop.f32.mrb[0].mxu0
        %3935 = vmatprep.mubr.bf16.mxu0 %v3648
        %3936 = vmatmul.mubr.bf16.gmra.mrb[0].mxu0 %v3647
        %v3937 = vpop.f32.mrb[0].mxu0
        %v3938 = vadd.f32 %v3225, %v3937
        %v3939 = vpop.f32.mrb[0].mxu0
        %v3940 = vpop.f32.mrb[0].mxu0
        %v3941 = vadd.f32 %v3226, %v3940
        %v3942 = vpop.f32.mrb[0].mxu0
        %3943 = vmatprep.mubr.bf16.mxu0 %v3656
        %3944 = vmatmul.mubr.bf16.gmra.mrb[0].mxu0 %v3655
        %v3945 = vpop.f32.mrb[0].mxu0
        %v3946 = vadd.f32 %v3227, %v3945
        %v3947 = vpop.f32.mrb[0].mxu0
        %v3948 = vpop.f32.mrb[0].mxu0
        %v3949 = vadd.f32 %v3228, %v3948
        %v3950 = vpop.f32.mrb[0].mxu0
        %3951 = vmatprep.mubr.bf16.mxu0 %v3664
        %3952 = vmatmul.mubr.bf16.gmra.mrb[0].mxu0 %v3663
        %v3953 = vpop.f32.mrb[0].mxu0
        %v3954 = vadd.f32 %v3229, %v3953
        %v3955 = vpop.f32.mrb[0].mxu0
        %v3956 = vpop.f32.mrb[0].mxu0
        %v3957 = vadd.f32 %v3230, %v3956
        %v3958 = vpop.f32.mrb[0].mxu0
        %3959 = vmatprep.mubr.bf16.mxu0 %v3672
        %3960 = vmatmul.mubr.bf16.gmra.mrb[0].mxu0 %v3671
        %v3961 = vpop.f32.mrb[0].mxu0
        %v3962 = vadd.f32 %v3231, %v3961
        %v3963 = vpop.f32.mrb[0].mxu0
        %v3964 = vpop.f32.mrb[0].mxu0
        %v3965 = vadd.f32 %v3232, %v3964
        %v3966 = vpop.f32.mrb[0].mxu0
        %3967 = vmatprep.mubr.bf16.mxu0 %v3680
        %3968 = vmatmul.mubr.bf16.gmra.mrb[0].mxu0 %v3679
        %v3969 = vpop.f32.mrb[0].mxu0
        %v3970 = vadd.f32 %v3233, %v3969
        %v3971 = vpop.f32.mrb[0].mxu0
        %v3972 = vpop.f32.mrb[0].mxu0
        %v3973 = vadd.f32 %v3234, %v3972
        %v3974 = vpop.f32.mrb[0].mxu0
        %3975 = vmatprep.mubr.bf16.mxu0 %v3688
        %3976 = vmatmul.mubr.bf16.gmra.mrb[0].mxu0 %v3687
        %v3977 = vpop.f32.mrb[0].mxu0
        %v3978 = vadd.f32 %v3235, %v3977
        %v3979 = vpop.f32.mrb[0].mxu0
        %v3980 = vpop.f32.mrb[0].mxu0
        %v3981 = vadd.f32 %v3236, %v3980
        %v3982 = vpop.f32.mrb[0].mxu0
        %3983 = vmatprep.mubr.bf16.mxu0 %v3696
        %3984 = vmatmul.mubr.bf16.gmra.mrb[0].mxu0 %v3695
        %v3985 = vpop.f32.mrb[0].mxu0
        %v3986 = vadd.f32 %v3237, %v3985
        %v3987 = vpop.f32.mrb[0].mxu0
        %v3988 = vpop.f32.mrb[0].mxu0
        %v3989 = vadd.f32 %v3238, %v3988
        %v3990 = vpop.f32.mrb[0].mxu0
        %3991 = vmatprep.mubr.bf16.mxu0 %v3704
        %3992 = vmatmul.mubr.bf16.gmra.mrb[0].mxu0 %v3703
        %v3993 = vpop.f32.mrb[0].mxu0
        %v3994 = vadd.f32 %v3239, %v3993
        %v3995 = vpop.f32.mrb[0].mxu0
        %v3996 = vpop.f32.mrb[0].mxu0
        %v3997 = vadd.f32 %v3240, %v3996
        %v3998 = vpop.f32.mrb[0].mxu0
        %3999 = vmatprep.mubr.bf16.mxu0 %v3712
        %4000 = vmatmul.mubr.bf16.gmra.mrb[0].mxu0 %v3711
        %v4001 = vpop.f32.mrb[0].mxu0
        %v4002 = vadd.f32 %v3241, %v4001
        %v4003 = vpop.f32.mrb[0].mxu0
        %v4004 = vpop.f32.mrb[0].mxu0
        %v4005 = vadd.f32 %v3242, %v4004
        %v4006 = vpop.f32.mrb[0].mxu0
        %4007 = vmatprep.mubr.bf16.mxu0 %v3720
        %4008 = vmatmul.mubr.bf16.gmra.mrb[0].mxu0 %v3719
        %v4009 = vpop.f32.mrb[0].mxu0
        %v4010 = vadd.f32 %v3243, %v4009
        %v4011 = vpop.f32.mrb[0].mxu0
        %v4012 = vpop.f32.mrb[0].mxu0
        %v4013 = vadd.f32 %v3244, %v4012
        %v4014 = vpop.f32.mrb[0].mxu0
        %4015 = vmatprep.mubr.bf16.mxu0 %v3728
        %4016 = vmatmul.mubr.bf16.gmra.mrb[0].mxu0 %v3727
        %v4017 = vpop.f32.mrb[0].mxu0
        %v4018 = vadd.f32 %v3245, %v4017
        %v4019 = vpop.f32.mrb[0].mxu0
        %v4020 = vpop.f32.mrb[0].mxu0
        %v4021 = vadd.f32 %v3246, %v4020
        %v4022 = vpop.f32.mrb[0].mxu0
        %4023 = vmatprep.mubr.bf16.mxu0 %v3736
        %4024 = vmatmul.mubr.bf16.gmra.mrb[0].mxu0 %v3735
        %v4025 = vpop.f32.mrb[0].mxu0
        %v4026 = vadd.f32 %v3247, %v4025
        %v4027 = vpop.f32.mrb[0].mxu0
        %v4028 = vpop.f32.mrb[0].mxu0
        %v4029 = vadd.f32 %v3248, %v4028
        %v4030 = vpop.f32.mrb[0].mxu0
        %4031 = vmatprep.mubr.bf16.mxu0 %v3744
        %4032 = vmatmul.mubr.bf16.gmra.mrb[0].mxu0 %v3743
        %v4033 = vpop.f32.mrb[0].mxu0
        %v4034 = vadd.f32 %v3249, %v4033
        %v4035 = vpop.f32.mrb[0].mxu0
        %v4036 = vpop.f32.mrb[0].mxu0
        %v4037 = vadd.f32 %v3250, %v4036
        %v4038 = vpop.f32.mrb[0].mxu0
        %4039 = vmatprep.mubr.bf16.mxu0 %v3752
        %4040 = vmatmul.mubr.bf16.gmra.mrb[0].mxu0 %v3751
        %v4041 = vpop.f32.mrb[0].mxu0
        %v4042 = vadd.f32 %v3251, %v4041
        %v4043 = vpop.f32.mrb[0].mxu0
        %v4044 = vpop.f32.mrb[0].mxu0
        %v4045 = vadd.f32 %v3252, %v4044
        %v4046 = vpop.f32.mrb[0].mxu0
        %4047 = vmatprep.mubr.bf16.mxu0 %v3760
        %4048 = vmatmul.mubr.bf16.gmra.mrb[0].mxu0 %v3759
        %v4049 = vpop.f32.mrb[0].mxu0
        %v4050 = vadd.f32 %v3253, %v4049
        %v4051 = vpop.f32.mrb[0].mxu0
        %v4052 = vpop.f32.mrb[0].mxu0
        %v4053 = vadd.f32 %v3254, %v4052
        %v4054 = vpop.f32.mrb[0].mxu0
        %4055 = vdwg.mxu0
        %4056 = vmatprep.subr.bf16.mxu0 0
        %4057 = vmatpush1.bf16.msra.mxu0 %v3175
        %4058 = vmatprep.subr.bf16.mxu0 0
        %4059 = vmatpush1.bf16.msra.mxu0 %v3176
        %4060 = vmatprep.subr.bf16.mxu0 0
        %4061 = vmatpush1.bf16.msra.mxu0 %v3177
        %4062 = vmatprep.subr.bf16.mxu0 0
        %4063 = vmatpush1.bf16.msra.mxu0 %v3178
        %4064 = vmatprep.subr.bf16.mxu0 0
        %4065 = vmatpush1.bf16.msra.mxu0 %v3179
        %4066 = vmatprep.subr.bf16.mxu0 0
        %4067 = vmatpush1.bf16.msra.mxu0 %v3180
        %4068 = vmatprep.subr.bf16.mxu0 0
        %4069 = vmatpush1.bf16.msra.mxu0 %v3181
        %4070 = vmatprep.subr.bf16.mxu0 0
        %4071 = vmatpush1.bf16.msra.mxu0 %v3182
        %4072 = vmatprep.subr.bf16.mxu0 0
        %4073 = vmatpush1.bf16.msra.mxu0 %v3183
        %4074 = vmatprep.subr.bf16.mxu0 0
        %4075 = vmatpush1.bf16.msra.mxu0 %v3184
        %4076 = vmatprep.subr.bf16.mxu0 0
        %4077 = vmatpush1.bf16.msra.mxu0 %v3185
        %4078 = vmatprep.subr.bf16.mxu0 0
        %4079 = vmatpush1.bf16.msra.mxu0 %v3186
        %4080 = vmatprep.subr.bf16.mxu0 0
        %4081 = vmatpush1.bf16.msra.mxu0 %v3187
        %4082 = vmatprep.subr.bf16.mxu0 0
        %4083 = vmatpush1.bf16.msra.mxu0 %v3188
        %4084 = vmatprep.subr.bf16.mxu0 0
        %4085 = vmatpush1.bf16.msra.mxu0 %v3189
        %4086 = vmatprep.subr.bf16.mxu0 0
        %4087 = vmatpush1.bf16.msra.mxu0 %v3190
        %4088 = vmatprep.mubr.bf16.mxu0 %v3642
        %4089 = vmatmul.mubr.bf16.gmra.mrb[0].mxu0 %v3641
        %v4090 = vpop.f32.mrb[0].mxu0
        %v4091 = vadd.f32 %v3930, %v4090
        %v4092 = vpop.f32.mrb[0].mxu0
        %v4093 = vpop.f32.mrb[0].mxu0
        %v4094 = vadd.f32 %v3933, %v4093
        %v4095 = vpop.f32.mrb[0].mxu0
        %4096 = vmatprep.mubr.bf16.mxu0 %v3650
        %4097 = vmatmul.mubr.bf16.gmra.mrb[0].mxu0 %v3649
        %v4098 = vpop.f32.mrb[0].mxu0
        %v4099 = vadd.f32 %v3938, %v4098
        %v4100 = vpop.f32.mrb[0].mxu0
        %v4101 = vpop.f32.mrb[0].mxu0
        %v4102 = vadd.f32 %v3941, %v4101
        %v4103 = vpop.f32.mrb[0].mxu0
        %4104 = vmatprep.mubr.bf16.mxu0 %v3658
        %4105 = vmatmul.mubr.bf16.gmra.mrb[0].mxu0 %v3657
        %v4106 = vpop.f32.mrb[0].mxu0
        %v4107 = vadd.f32 %v3946, %v4106
        %v4108 = vpop.f32.mrb[0].mxu0
        %v4109 = vpop.f32.mrb[0].mxu0
        %v4110 = vadd.f32 %v3949, %v4109
        %v4111 = vpop.f32.mrb[0].mxu0
        %4112 = vmatprep.mubr.bf16.mxu0 %v3666
        %4113 = vmatmul.mubr.bf16.gmra.mrb[0].mxu0 %v3665
        %v4114 = vpop.f32.mrb[0].mxu0
        %v4115 = vadd.f32 %v3954, %v4114
        %v4116 = vpop.f32.mrb[0].mxu0
        %v4117 = vpop.f32.mrb[0].mxu0
        %v4118 = vadd.f32 %v3957, %v4117
        %v4119 = vpop.f32.mrb[0].mxu0
        %4120 = vmatprep.mubr.bf16.mxu0 %v3674
        %4121 = vmatmul.mubr.bf16.gmra.mrb[0].mxu0 %v3673
        %v4122 = vpop.f32.mrb[0].mxu0
        %v4123 = vadd.f32 %v3962, %v4122
        %v4124 = vpop.f32.mrb[0].mxu0
        %v4125 = vpop.f32.mrb[0].mxu0
        %v4126 = vadd.f32 %v3965, %v4125
        %v4127 = vpop.f32.mrb[0].mxu0
        %4128 = vmatprep.mubr.bf16.mxu0 %v3682
        %4129 = vmatmul.mubr.bf16.gmra.mrb[0].mxu0 %v3681
        %v4130 = vpop.f32.mrb[0].mxu0
        %v4131 = vadd.f32 %v3970, %v4130
        %v4132 = vpop.f32.mrb[0].mxu0
        %v4133 = vpop.f32.mrb[0].mxu0
        %v4134 = vadd.f32 %v3973, %v4133
        %v4135 = vpop.f32.mrb[0].mxu0
        %4136 = vmatprep.mubr.bf16.mxu0 %v3690
        %4137 = vmatmul.mubr.bf16.gmra.mrb[0].mxu0 %v3689
        %v4138 = vpop.f32.mrb[0].mxu0
        %v4139 = vadd.f32 %v3978, %v4138
        %v4140 = vpop.f32.mrb[0].mxu0
        %v4141 = vpop.f32.mrb[0].mxu0
        %v4142 = vadd.f32 %v3981, %v4141
        %v4143 = vpop.f32.mrb[0].mxu0
        %4144 = vmatprep.mubr.bf16.mxu0 %v3698
        %4145 = vmatmul.mubr.bf16.gmra.mrb[0].mxu0 %v3697
        %v4146 = vpop.f32.mrb[0].mxu0
        %v4147 = vadd.f32 %v3986, %v4146
        %v4148 = vpop.f32.mrb[0].mxu0
        %v4149 = vpop.f32.mrb[0].mxu0
        %v4150 = vadd.f32 %v3989, %v4149
        %v4151 = vpop.f32.mrb[0].mxu0
        %4152 = vmatprep.mubr.bf16.mxu0 %v3706
        %4153 = vmatmul.mubr.bf16.gmra.mrb[0].mxu0 %v3705
        %v4154 = vpop.f32.mrb[0].mxu0
        %v4155 = vadd.f32 %v3994, %v4154
        %v4156 = vpop.f32.mrb[0].mxu0
        %v4157 = vpop.f32.mrb[0].mxu0
        %v4158 = vadd.f32 %v3997, %v4157
        %v4159 = vpop.f32.mrb[0].mxu0
        %4160 = vmatprep.mubr.bf16.mxu0 %v3714
        %4161 = vmatmul.mubr.bf16.gmra.mrb[0].mxu0 %v3713
        %v4162 = vpop.f32.mrb[0].mxu0
        %v4163 = vadd.f32 %v4002, %v4162
        %v4164 = vpop.f32.mrb[0].mxu0
        %v4165 = vpop.f32.mrb[0].mxu0
        %v4166 = vadd.f32 %v4005, %v4165
        %v4167 = vpop.f32.mrb[0].mxu0
        %4168 = vmatprep.mubr.bf16.mxu0 %v3722
        %4169 = vmatmul.mubr.bf16.gmra.mrb[0].mxu0 %v3721
        %v4170 = vpop.f32.mrb[0].mxu0
        %v4171 = vadd.f32 %v4010, %v4170
        %v4172 = vpop.f32.mrb[0].mxu0
        %v4173 = vpop.f32.mrb[0].mxu0
        %v4174 = vadd.f32 %v4013, %v4173
        %v4175 = vpop.f32.mrb[0].mxu0
        %4176 = vmatprep.mubr.bf16.mxu0 %v3730
        %4177 = vmatmul.mubr.bf16.gmra.mrb[0].mxu0 %v3729
        %v4178 = vpop.f32.mrb[0].mxu0
        %v4179 = vadd.f32 %v4018, %v4178
        %v4180 = vpop.f32.mrb[0].mxu0
        %v4181 = vpop.f32.mrb[0].mxu0
        %v4182 = vadd.f32 %v4021, %v4181
        %v4183 = vpop.f32.mrb[0].mxu0
        %4184 = vmatprep.mubr.bf16.mxu0 %v3738
        %4185 = vmatmul.mubr.bf16.gmra.mrb[0].mxu0 %v3737
        %v4186 = vpop.f32.mrb[0].mxu0
        %v4187 = vadd.f32 %v4026, %v4186
        %v4188 = vpop.f32.mrb[0].mxu0
        %v4189 = vpop.f32.mrb[0].mxu0
        %v4190 = vadd.f32 %v4029, %v4189
        %v4191 = vpop.f32.mrb[0].mxu0
        %4192 = vmatprep.mubr.bf16.mxu0 %v3746
        %4193 = vmatmul.mubr.bf16.gmra.mrb[0].mxu0 %v3745
        %v4194 = vpop.f32.mrb[0].mxu0
        %v4195 = vadd.f32 %v4034, %v4194
        %v4196 = vpop.f32.mrb[0].mxu0
        %v4197 = vpop.f32.mrb[0].mxu0
        %v4198 = vadd.f32 %v4037, %v4197
        %v4199 = vpop.f32.mrb[0].mxu0
        %4200 = vmatprep.mubr.bf16.mxu0 %v3754
        %4201 = vmatmul.mubr.bf16.gmra.mrb[0].mxu0 %v3753
        %v4202 = vpop.f32.mrb[0].mxu0
        %v4203 = vadd.f32 %v4042, %v4202
        %v4204 = vpop.f32.mrb[0].mxu0
        %v4205 = vpop.f32.mrb[0].mxu0
        %v4206 = vadd.f32 %v4045, %v4205
        %v4207 = vpop.f32.mrb[0].mxu0
        %4208 = vmatprep.mubr.bf16.mxu0 %v3762
        %4209 = vmatmul.mubr.bf16.gmra.mrb[0].mxu0 %v3761
        %v4210 = vpop.f32.mrb[0].mxu0
        %v4211 = vadd.f32 %v4050, %v4210
        %v4212 = vpop.f32.mrb[0].mxu0
        %v4213 = vpop.f32.mrb[0].mxu0
        %v4214 = vadd.f32 %v4053, %v4213
        %v4215 = vpop.f32.mrb[0].mxu0
        %4216 = vdwg.mxu0
        %4217 = vmatprep.subr.bf16.mxu0 0
        %4218 = vmatpush1.bf16.msra.mxu0 %v3191
        %4219 = vmatprep.subr.bf16.mxu0 0
        %4220 = vmatpush1.bf16.msra.mxu0 %v3192
        %4221 = vmatprep.subr.bf16.mxu0 0
        %4222 = vmatpush1.bf16.msra.mxu0 %v3193
        %4223 = vmatprep.subr.bf16.mxu0 0
        %4224 = vmatpush1.bf16.msra.mxu0 %v3194
        %4225 = vmatprep.subr.bf16.mxu0 0
        %4226 = vmatpush1.bf16.msra.mxu0 %v3195
        %4227 = vmatprep.subr.bf16.mxu0 0
        %4228 = vmatpush1.bf16.msra.mxu0 %v3196
        %4229 = vmatprep.subr.bf16.mxu0 0
        %4230 = vmatpush1.bf16.msra.mxu0 %v3197
        %4231 = vmatprep.subr.bf16.mxu0 0
        %4232 = vmatpush1.bf16.msra.mxu0 %v3198
        %4233 = vmatprep.subr.bf16.mxu0 0
        %4234 = vmatpush1.bf16.msra.mxu0 %v3199
        %4235 = vmatprep.subr.bf16.mxu0 0
        %4236 = vmatpush1.bf16.msra.mxu0 %v3200
        %4237 = vmatprep.subr.bf16.mxu0 0
        %4238 = vmatpush1.bf16.msra.mxu0 %v3201
        %4239 = vmatprep.subr.bf16.mxu0 0
        %4240 = vmatpush1.bf16.msra.mxu0 %v3202
        %4241 = vmatprep.subr.bf16.mxu0 0
        %4242 = vmatpush1.bf16.msra.mxu0 %v3203
        %4243 = vmatprep.subr.bf16.mxu0 0
        %4244 = vmatpush1.bf16.msra.mxu0 %v3204
        %4245 = vmatprep.subr.bf16.mxu0 0
        %4246 = vmatpush1.bf16.msra.mxu0 %v3205
        %4247 = vmatprep.subr.bf16.mxu0 0
        %4248 = vmatpush1.bf16.msra.mxu0 %v3206
        %4249 = vmatprep.mubr.bf16.mxu0 %v3644
        %4250 = vmatmul.mubr.bf16.gmra.mrb[0].mxu0 %v3643
        %v4251 = vpop.f32.mrb[0].mxu0
        %v4252 = vadd.f32 %v4091, %v4251
        %v4253 = vpop.f32.mrb[0].mxu0
        %v4254 = vpop.f32.mrb[0].mxu0
        %v4255 = vadd.f32 %v4094, %v4254
        %v4256 = vpop.f32.mrb[0].mxu0
        %4257 = vmatprep.mubr.bf16.mxu0 %v3652
        %4258 = vmatmul.mubr.bf16.gmra.mrb[0].mxu0 %v3651
        %v4259 = vpop.f32.mrb[0].mxu0
        %v4260 = vadd.f32 %v4099, %v4259
        %v4261 = vpop.f32.mrb[0].mxu0
        %v4262 = vpop.f32.mrb[0].mxu0
        %v4263 = vadd.f32 %v4102, %v4262
        %v4264 = vpop.f32.mrb[0].mxu0
        %4265 = vmatprep.mubr.bf16.mxu0 %v3660
        %4266 = vmatmul.mubr.bf16.gmra.mrb[0].mxu0 %v3659
        %v4267 = vpop.f32.mrb[0].mxu0
        %v4268 = vadd.f32 %v4107, %v4267
        %v4269 = vpop.f32.mrb[0].mxu0
        %v4270 = vpop.f32.mrb[0].mxu0
        %v4271 = vadd.f32 %v4110, %v4270
        %v4272 = vpop.f32.mrb[0].mxu0
        %4273 = vmatprep.mubr.bf16.mxu0 %v3668
        %4274 = vmatmul.mubr.bf16.gmra.mrb[0].mxu0 %v3667
        %v4275 = vpop.f32.mrb[0].mxu0
        %v4276 = vadd.f32 %v4115, %v4275
        %v4277 = vpop.f32.mrb[0].mxu0
        %v4278 = vpop.f32.mrb[0].mxu0
        %v4279 = vadd.f32 %v4118, %v4278
        %v4280 = vpop.f32.mrb[0].mxu0
        %4281 = vmatprep.mubr.bf16.mxu0 %v3676
        %4282 = vmatmul.mubr.bf16.gmra.mrb[0].mxu0 %v3675
        %v4283 = vpop.f32.mrb[0].mxu0
        %v4284 = vadd.f32 %v4123, %v4283
        %v4285 = vpop.f32.mrb[0].mxu0
        %v4286 = vpop.f32.mrb[0].mxu0
        %v4287 = vadd.f32 %v4126, %v4286
        %v4288 = vpop.f32.mrb[0].mxu0
        %4289 = vmatprep.mubr.bf16.mxu0 %v3684
        %4290 = vmatmul.mubr.bf16.gmra.mrb[0].mxu0 %v3683
        %v4291 = vpop.f32.mrb[0].mxu0
        %v4292 = vadd.f32 %v4131, %v4291
        %v4293 = vpop.f32.mrb[0].mxu0
        %v4294 = vpop.f32.mrb[0].mxu0
        %v4295 = vadd.f32 %v4134, %v4294
        %v4296 = vpop.f32.mrb[0].mxu0
        %4297 = vmatprep.mubr.bf16.mxu0 %v3692
        %4298 = vmatmul.mubr.bf16.gmra.mrb[0].mxu0 %v3691
        %v4299 = vpop.f32.mrb[0].mxu0
        %v4300 = vadd.f32 %v4139, %v4299
        %v4301 = vpop.f32.mrb[0].mxu0
        %v4302 = vpop.f32.mrb[0].mxu0
        %v4303 = vadd.f32 %v4142, %v4302
        %v4304 = vpop.f32.mrb[0].mxu0
        %4305 = vmatprep.mubr.bf16.mxu0 %v3700
        %4306 = vmatmul.mubr.bf16.gmra.mrb[0].mxu0 %v3699
        %v4307 = vpop.f32.mrb[0].mxu0
        %v4308 = vadd.f32 %v4147, %v4307
        %v4309 = vpop.f32.mrb[0].mxu0
        %v4310 = vpop.f32.mrb[0].mxu0
        %v4311 = vadd.f32 %v4150, %v4310
        %v4312 = vpop.f32.mrb[0].mxu0
        %4313 = vmatprep.mubr.bf16.mxu0 %v3708
        %4314 = vmatmul.mubr.bf16.gmra.mrb[0].mxu0 %v3707
        %v4315 = vpop.f32.mrb[0].mxu0
        %v4316 = vadd.f32 %v4155, %v4315
        %v4317 = vpop.f32.mrb[0].mxu0
        %v4318 = vpop.f32.mrb[0].mxu0
        %v4319 = vadd.f32 %v4158, %v4318
        %v4320 = vpop.f32.mrb[0].mxu0
        %4321 = vmatprep.mubr.bf16.mxu0 %v3716
        %4322 = vmatmul.mubr.bf16.gmra.mrb[0].mxu0 %v3715
        %v4323 = vpop.f32.mrb[0].mxu0
        %v4324 = vadd.f32 %v4163, %v4323
        %v4325 = vpop.f32.mrb[0].mxu0
        %v4326 = vpop.f32.mrb[0].mxu0
        %v4327 = vadd.f32 %v4166, %v4326
        %v4328 = vpop.f32.mrb[0].mxu0
        %4329 = vmatprep.mubr.bf16.mxu0 %v3724
        %4330 = vmatmul.mubr.bf16.gmra.mrb[0].mxu0 %v3723
        %v4331 = vpop.f32.mrb[0].mxu0
        %v4332 = vadd.f32 %v4171, %v4331
        %v4333 = vpop.f32.mrb[0].mxu0
        %v4334 = vpop.f32.mrb[0].mxu0
        %v4335 = vadd.f32 %v4174, %v4334
        %v4336 = vpop.f32.mrb[0].mxu0
        %4337 = vmatprep.mubr.bf16.mxu0 %v3732
        %4338 = vmatmul.mubr.bf16.gmra.mrb[0].mxu0 %v3731
        %v4339 = vpop.f32.mrb[0].mxu0
        %v4340 = vadd.f32 %v4179, %v4339
        %v4341 = vpop.f32.mrb[0].mxu0
        %v4342 = vpop.f32.mrb[0].mxu0
        %v4343 = vadd.f32 %v4182, %v4342
        %v4344 = vpop.f32.mrb[0].mxu0
        %4345 = vmatprep.mubr.bf16.mxu0 %v3740
        %4346 = vmatmul.mubr.bf16.gmra.mrb[0].mxu0 %v3739
        %v4347 = vpop.f32.mrb[0].mxu0
        %v4348 = vadd.f32 %v4187, %v4347
        %v4349 = vpop.f32.mrb[0].mxu0
        %v4350 = vpop.f32.mrb[0].mxu0
        %v4351 = vadd.f32 %v4190, %v4350
        %v4352 = vpop.f32.mrb[0].mxu0
        %4353 = vmatprep.mubr.bf16.mxu0 %v3748
        %4354 = vmatmul.mubr.bf16.gmra.mrb[0].mxu0 %v3747
        %v4355 = vpop.f32.mrb[0].mxu0
        %v4356 = vadd.f32 %v4195, %v4355
        %v4357 = vpop.f32.mrb[0].mxu0
        %v4358 = vpop.f32.mrb[0].mxu0
        %v4359 = vadd.f32 %v4198, %v4358
        %v4360 = vpop.f32.mrb[0].mxu0
        %4361 = vmatprep.mubr.bf16.mxu0 %v3756
        %4362 = vmatmul.mubr.bf16.gmra.mrb[0].mxu0 %v3755
        %v4363 = vpop.f32.mrb[0].mxu0
        %v4364 = vadd.f32 %v4203, %v4363
        %v4365 = vpop.f32.mrb[0].mxu0
        %v4366 = vpop.f32.mrb[0].mxu0
        %v4367 = vadd.f32 %v4206, %v4366
        %v4368 = vpop.f32.mrb[0].mxu0
        %4369 = vmatprep.mubr.bf16.mxu0 %v3764
        %4370 = vmatmul.mubr.bf16.gmra.mrb[0].mxu0 %v3763
        %v4371 = vpop.f32.mrb[0].mxu0
        %v4372 = vadd.f32 %v4211, %v4371
        %v4373 = vpop.f32.mrb[0].mxu0
        %v4374 = vpop.f32.mrb[0].mxu0
        %v4375 = vadd.f32 %v4214, %v4374
        %v4376 = vpop.f32.mrb[0].mxu0
        %4377 = vdwg.mxu0
        %4378 = vmatprep.subr.bf16.mxu0 0
        %4379 = vmatpush1.bf16.msra.mxu0 %v3207
        %4380 = vmatprep.subr.bf16.mxu0 0
        %4381 = vmatpush1.bf16.msra.mxu0 %v3208
        %4382 = vmatprep.subr.bf16.mxu0 0
        %4383 = vmatpush1.bf16.msra.mxu0 %v3209
        %4384 = vmatprep.subr.bf16.mxu0 0
        %4385 = vmatpush1.bf16.msra.mxu0 %v3210
        %4386 = vmatprep.subr.bf16.mxu0 0
        %4387 = vmatpush1.bf16.msra.mxu0 %v3211
        %4388 = vmatprep.subr.bf16.mxu0 0
        %4389 = vmatpush1.bf16.msra.mxu0 %v3212
        %4390 = vmatprep.subr.bf16.mxu0 0
        %4391 = vmatpush1.bf16.msra.mxu0 %v3213
        %4392 = vmatprep.subr.bf16.mxu0 0
        %4393 = vmatpush1.bf16.msra.mxu0 %v3214
        %4394 = vmatprep.subr.bf16.mxu0 0
        %4395 = vmatpush1.bf16.msra.mxu0 %v3215
        %4396 = vmatprep.subr.bf16.mxu0 0
        %4397 = vmatpush1.bf16.msra.mxu0 %v3216
        %4398 = vmatprep.subr.bf16.mxu0 0
        %4399 = vmatpush1.bf16.msra.mxu0 %v3217
        %4400 = vmatprep.subr.bf16.mxu0 0
        %4401 = vmatpush1.bf16.msra.mxu0 %v3218
        %4402 = vmatprep.subr.bf16.mxu0 0
        %4403 = vmatpush1.bf16.msra.mxu0 %v3219
        %4404 = vmatprep.subr.bf16.mxu0 0
        %4405 = vmatpush1.bf16.msra.mxu0 %v3220
        %4406 = vmatprep.subr.bf16.mxu0 0
        %4407 = vmatpush1.bf16.msra.mxu0 %v3221
        %4408 = vmatprep.subr.bf16.mxu0 0
        %4409 = vmatpush1.bf16.msra.mxu0 %v3222
        %4410 = vmatprep.mubr.bf16.mxu0 %v3646
        %4411 = vmatmul.mubr.bf16.gmra.mrb[0].mxu0 %v3645
        %v4412 = vpop.f32.mrb[0].mxu0
        %v4413 = vadd.f32 %v4252, %v4412
        %v4414 = vpop.f32.mrb[0].mxu0
        %v4415 = vpop.f32.mrb[0].mxu0
        %v4416 = vadd.f32 %v4255, %v4415
        %v4417 = vpop.f32.mrb[0].mxu0
        %4418 = vmatprep.mubr.bf16.mxu0 %v3654
        %4419 = vmatmul.mubr.bf16.gmra.mrb[0].mxu0 %v3653
        %v4420 = vpop.f32.mrb[0].mxu0
        %v4421 = vadd.f32 %v4260, %v4420
        %v4422 = vpop.f32.mrb[0].mxu0
        %v4423 = vpop.f32.mrb[0].mxu0
        %v4424 = vadd.f32 %v4263, %v4423
        %v4425 = vpop.f32.mrb[0].mxu0
        %4426 = vmatprep.mubr.bf16.mxu0 %v3662
        %4427 = vmatmul.mubr.bf16.gmra.mrb[0].mxu0 %v3661
        %v4428 = vpop.f32.mrb[0].mxu0
        %v4429 = vadd.f32 %v4268, %v4428
        %v4430 = vpop.f32.mrb[0].mxu0
        %v4431 = vpop.f32.mrb[0].mxu0
        %v4432 = vadd.f32 %v4271, %v4431
        %v4433 = vpop.f32.mrb[0].mxu0
        %4434 = vmatprep.mubr.bf16.mxu0 %v3670
        %4435 = vmatmul.mubr.bf16.gmra.mrb[0].mxu0 %v3669
        %v4436 = vpop.f32.mrb[0].mxu0
        %v4437 = vadd.f32 %v4276, %v4436
        %v4438 = vpop.f32.mrb[0].mxu0
        %v4439 = vpop.f32.mrb[0].mxu0
        %v4440 = vadd.f32 %v4279, %v4439
        %v4441 = vpop.f32.mrb[0].mxu0
        %4442 = vmatprep.mubr.bf16.mxu0 %v3678
        %4443 = vmatmul.mubr.bf16.gmra.mrb[0].mxu0 %v3677
        %v4444 = vpop.f32.mrb[0].mxu0
        %v4445 = vadd.f32 %v4284, %v4444
        %v4446 = vpop.f32.mrb[0].mxu0
        %v4447 = vpop.f32.mrb[0].mxu0
        %v4448 = vadd.f32 %v4287, %v4447
        %v4449 = vpop.f32.mrb[0].mxu0
        %4450 = vmatprep.mubr.bf16.mxu0 %v3686
        %4451 = vmatmul.mubr.bf16.gmra.mrb[0].mxu0 %v3685
        %v4452 = vpop.f32.mrb[0].mxu0
        %v4453 = vadd.f32 %v4292, %v4452
        %v4454 = vpop.f32.mrb[0].mxu0
        %v4455 = vpop.f32.mrb[0].mxu0
        %v4456 = vadd.f32 %v4295, %v4455
        %v4457 = vpop.f32.mrb[0].mxu0
        %4458 = vmatprep.mubr.bf16.mxu0 %v3694
        %4459 = vmatmul.mubr.bf16.gmra.mrb[0].mxu0 %v3693
        %v4460 = vpop.f32.mrb[0].mxu0
        %v4461 = vadd.f32 %v4300, %v4460
        %v4462 = vpop.f32.mrb[0].mxu0
        %v4463 = vpop.f32.mrb[0].mxu0
        %v4464 = vadd.f32 %v4303, %v4463
        %v4465 = vpop.f32.mrb[0].mxu0
        %4466 = vmatprep.mubr.bf16.mxu0 %v3702
        %4467 = vmatmul.mubr.bf16.gmra.mrb[0].mxu0 %v3701
        %v4468 = vpop.f32.mrb[0].mxu0
        %v4469 = vadd.f32 %v4308, %v4468
        %v4470 = vpop.f32.mrb[0].mxu0
        %v4471 = vpop.f32.mrb[0].mxu0
        %v4472 = vadd.f32 %v4311, %v4471
        %v4473 = vpop.f32.mrb[0].mxu0
        %4474 = vmatprep.mubr.bf16.mxu0 %v3710
        %4475 = vmatmul.mubr.bf16.gmra.mrb[0].mxu0 %v3709
        %v4476 = vpop.f32.mrb[0].mxu0
        %v4477 = vadd.f32 %v4316, %v4476
        %v4478 = vpop.f32.mrb[0].mxu0
        %v4479 = vpop.f32.mrb[0].mxu0
        %v4480 = vadd.f32 %v4319, %v4479
        %v4481 = vpop.f32.mrb[0].mxu0
        %4482 = vmatprep.mubr.bf16.mxu0 %v3718
        %4483 = vmatmul.mubr.bf16.gmra.mrb[0].mxu0 %v3717
        %v4484 = vpop.f32.mrb[0].mxu0
        %v4485 = vadd.f32 %v4324, %v4484
        %v4486 = vpop.f32.mrb[0].mxu0
        %v4487 = vpop.f32.mrb[0].mxu0
        %v4488 = vadd.f32 %v4327, %v4487
        %v4489 = vpop.f32.mrb[0].mxu0
        %4490 = vmatprep.mubr.bf16.mxu0 %v3726
        %4491 = vmatmul.mubr.bf16.gmra.mrb[0].mxu0 %v3725
        %v4492 = vpop.f32.mrb[0].mxu0
        %v4493 = vadd.f32 %v4332, %v4492
        %v4494 = vpop.f32.mrb[0].mxu0
        %v4495 = vpop.f32.mrb[0].mxu0
        %v4496 = vadd.f32 %v4335, %v4495
        %v4497 = vpop.f32.mrb[0].mxu0
        %4498 = vmatprep.mubr.bf16.mxu0 %v3734
        %4499 = vmatmul.mubr.bf16.gmra.mrb[0].mxu0 %v3733
        %v4500 = vpop.f32.mrb[0].mxu0
        %v4501 = vadd.f32 %v4340, %v4500
        %v4502 = vpop.f32.mrb[0].mxu0
        %v4503 = vpop.f32.mrb[0].mxu0
        %v4504 = vadd.f32 %v4343, %v4503
        %v4505 = vpop.f32.mrb[0].mxu0
        %4506 = vmatprep.mubr.bf16.mxu0 %v3742
        %4507 = vmatmul.mubr.bf16.gmra.mrb[0].mxu0 %v3741
        %v4508 = vpop.f32.mrb[0].mxu0
        %v4509 = vadd.f32 %v4348, %v4508
        %v4510 = vpop.f32.mrb[0].mxu0
        %v4511 = vpop.f32.mrb[0].mxu0
        %v4512 = vadd.f32 %v4351, %v4511
        %v4513 = vpop.f32.mrb[0].mxu0
        %4514 = vmatprep.mubr.bf16.mxu0 %v3750
        %4515 = vmatmul.mubr.bf16.gmra.mrb[0].mxu0 %v3749
        %v4516 = vpop.f32.mrb[0].mxu0
        %v4517 = vadd.f32 %v4356, %v4516
        %v4518 = vpop.f32.mrb[0].mxu0
        %v4519 = vpop.f32.mrb[0].mxu0
        %v4520 = vadd.f32 %v4359, %v4519
        %v4521 = vpop.f32.mrb[0].mxu0
        %4522 = vmatprep.mubr.bf16.mxu0 %v3758
        %4523 = vmatmul.mubr.bf16.gmra.mrb[0].mxu0 %v3757
        %v4524 = vpop.f32.mrb[0].mxu0
        %v4525 = vadd.f32 %v4364, %v4524
        %v4526 = vpop.f32.mrb[0].mxu0
        %v4527 = vpop.f32.mrb[0].mxu0
        %v4528 = vadd.f32 %v4367, %v4527
        %v4529 = vpop.f32.mrb[0].mxu0
        %4530 = vmatprep.mubr.bf16.mxu0 %v3766
        %4531 = vmatmul.mubr.bf16.gmra.mrb[0].mxu0 %v3765
        %v4532 = vpop.f32.mrb[0].mxu0
        %v4533 = vadd.f32 %v4372, %v4532
        %v4534 = vpop.f32.mrb[0].mxu0
        %v4535 = vpop.f32.mrb[0].mxu0
        %v4536 = vadd.f32 %v4375, %v4535
        %v4537 = vpop.f32.mrb[0].mxu0
        %4538 = vdwg.mxu0
        %v4539 = vmax.f32 %v4413, 0.0
        %v4540 = vmax.f32 %v4416, 0.0
        %v4541 = vmax.f32 %v4421, 0.0
        %v4542 = vmax.f32 %v4424, 0.0
        %v4543 = vmax.f32 %v4429, 0.0
        %v4544 = vmax.f32 %v4432, 0.0
        %v4545 = vmax.f32 %v4437, 0.0
        %v4546 = vmax.f32 %v4440, 0.0
        %v4547 = vmax.f32 %v4445, 0.0
        %v4548 = vmax.f32 %v4448, 0.0
        %v4549 = vmax.f32 %v4453, 0.0
        %v4550 = vmax.f32 %v4456, 0.0
        %v4551 = vmax.f32 %v4461, 0.0
        %v4552 = vmax.f32 %v4464, 0.0
        %v4553 = vmax.f32 %v4469, 0.0
        %v4554 = vmax.f32 %v4472, 0.0
        %v4555 = vmax.f32 %v4477, 0.0
        %v4556 = vmax.f32 %v4480, 0.0
        %v4557 = vmax.f32 %v4485, 0.0
        %v4558 = vmax.f32 %v4488, 0.0
        %v4559 = vmax.f32 %v4493, 0.0
        %v4560 = vmax.f32 %v4496, 0.0
        %v4561 = vmax.f32 %v4501, 0.0
        %v4562 = vmax.f32 %v4504, 0.0
        %v4563 = vmax.f32 %v4509, 0.0
        %v4564 = vmax.f32 %v4512, 0.0
        %v4565 = vmax.f32 %v4517, 0.0
        %v4566 = vmax.f32 %v4520, 0.0
        %v4567 = vmax.f32 %v4525, 0.0
        %v4568 = vmax.f32 %v4528, 0.0
        %v4569 = vmax.f32 %v4533, 0.0
        %v4570 = vmax.f32 %v4536, 0.0
        %v4571 = vld [vmem:[%s7] sm:$0xff]
        %v4572 = vld [vmem:[%s7 + $0x8] sm:$0xff]
        %v4573 = vld [vmem:[%s7 + $0x10] sm:$0x1]
        %v4574 = vld [vmem:[%s7 + $0x18] sm:$0x1]
        %v4575 = vld [vmem:[%s8] sm:$0xff]
        %v4576 = vld [vmem:[%s8 + $0x8] sm:$0x1]
        %4577 = vmatprep.subr.mxu0 0.0
        %4578 = vmatpush1.msra.mxu0 %v4539
        %4579 = vmatprep.subr.mxu0 0.0
        %4580 = vmatpush1.msra.mxu0 %v4540
        %4581 = vmatprep.subr.mxu0 0.0
        %4582 = vmatpush1.msra.mxu0 %v4541
        %4583 = vmatprep.subr.mxu0 0.0
        %4584 = vmatpush1.msra.mxu0 %v4542
        %4585 = vmatprep.subr.mxu0 0.0
        %4586 = vmatpush1.msra.mxu0 %v4543
        %4587 = vmatprep.subr.mxu0 0.0
        %4588 = vmatpush1.msra.mxu0 %v4544
        %4589 = vmatprep.subr.mxu0 0.0
        %4590 = vmatpush1.msra.mxu0 %v4545
        %4591 = vmatprep.subr.mxu0 0.0
        %4592 = vmatpush1.msra.mxu0 %v4546
        %4593 = vmatprep.subr.mxu0 0.0
        %4594 = vmatpush1.msra.mxu0 %v4547
        %4595 = vmatprep.subr.mxu0 0.0
        %4596 = vmatpush1.msra.mxu0 %v4548
        %4597 = vmatprep.subr.mxu0 0.0
        %4598 = vmatpush1.msra.mxu0 %v4549
        %4599 = vmatprep.subr.mxu0 0.0
        %4600 = vmatpush1.msra.mxu0 %v4550
        %4601 = vmatprep.subr.mxu0 0.0
        %4602 = vmatpush1.msra.mxu0 %v4551
        %4603 = vmatprep.subr.mxu0 0.0
        %4604 = vmatpush1.msra.mxu0 %v4552
        %4605 = vmatprep.subr.mxu0 0.0
        %4606 = vmatpush1.msra.mxu0 %v4553
        %4607 = vmatprep.subr.mxu0 0.0
        %4608 = vmatpush1.msra.mxu0 %v4554
        %4609 = vmatprep.subr.mxu0 0.0
        %4610 = vmatpush1.msra.mxu0 %v4555
        %4611 = vmatprep.subr.mxu0 0.0
        %4612 = vmatpush1.msra.mxu0 %v4556
        %4613 = vmatprep.subr.mxu0 0.0
        %4614 = vmatpush1.msra.mxu0 %v4557
        %4615 = vmatprep.subr.mxu0 0.0
        %4616 = vmatpush1.msra.mxu0 %v4558
        %4617 = vmatprep.subr.mxu0 0.0
        %4618 = vmatpush1.msra.mxu0 %v4559
        %4619 = vmatprep.subr.mxu0 0.0
        %4620 = vmatpush1.msra.mxu0 %v4560
        %4621 = vmatprep.subr.mxu0 0.0
        %4622 = vmatpush1.msra.mxu0 %v4561
        %4623 = vmatprep.subr.mxu0 0.0
        %4624 = vmatpush1.msra.mxu0 %v4562
        %4625 = vmatprep.subr.mxu0 0.0
        %4626 = vmatpush1.msra.mxu0 %v4563
        %4627 = vmatprep.subr.mxu0 0.0
        %4628 = vmatpush1.msra.mxu0 %v4564
        %4629 = vmatprep.subr.mxu0 0.0
        %4630 = vmatpush1.msra.mxu0 %v4565
        %4631 = vmatprep.subr.mxu0 0.0
        %4632 = vmatpush1.msra.mxu0 %v4566
        %4633 = vmatprep.subr.mxu0 0.0
        %4634 = vmatpush1.msra.mxu0 %v4567
        %4635 = vmatprep.subr.mxu0 0.0
        %4636 = vmatpush1.msra.mxu0 %v4568
        %4637 = vmatprep.subr.mxu0 0.0
        %4638 = vmatpush1.msra.mxu0 %v4569
        %4639 = vmatprep.subr.mxu0 0.0
        %4640 = vmatpush1.msra.mxu0 %v4570
        %4641 = vmatprep.mubr.f32.mxu0 %v4572
        %4642 = vmatmul.mubr.f32.gmra.mrb[0].mxu0 %v4571
        %v4643 = vpop.f32.mrb[0].mxu0
        %v4644 = vadd.f32 %v4575, %v4643
        %v4645 = vpop.f32.mrb[0].mxu0
        %4646 = vmatprep.mubr.f32.mxu0 %v4574
        %4647 = vmatmul.mubr.f32.gmra.mrb[0].mxu0 %v4573
        %v4648 = vpop.f32.mrb[0].mxu0
        %v4649 = vadd.f32 %v4576, %v4648
        %v4650 = vpop.f32.mrb[0].mxu0
        %4651 = vdwg.mxu0
        %v4652 = vtanh.pop %v4644
        %v4653 = vtanh.pop %v4649
        %vm4654 = vcmask 7168
        %4655 = vst.msk [vmem:[%s352] sm:$0xff] %vm4654, %v4652
        %vm4656 = vcmask 0
        %4657 = vst.msk [vmem:[%s352 + $0x8] sm:$0x1] %vm4656, %v4653
      $region64: #{t_net_forward.1} parent=55 // pred_fallthru
        _
      %p4658 = scmp.lt.s32.totalorder %s24, 1
      %s4659 = scalar_select %p4658, %s24, 1
      %s4660 = smul.addr %s4659, 2
      %s4661 = smul.addr %s4660, 8
      %s4662 = scalar_lea.vmem %s9, %s4661
      // Predicated region
      $region65: #{t_net_forward.1} parent=55 // pred_check
        %p4663 = pneg %p246
      $region66: #{t_net_forward.1} parent=55 // pred_check_branch
        %4665 = sbr.rel (%p4663) target = $region68
      $region67: #{t_net_forward.1} parent=55 // pred_region
        _
      $region68: #{t_net_forward.1} parent=55 // pred_fallthru
        _
    $region56: #{t_net_forward.1} parent=5 // pred_fallthru
      _
    %p4666 = scmp.le.s32.totalorder 2, %s15
    // Predicated region
    $region69: #{t_net_forward.1} parent=5 // pred_check
      %p4667 = pneg %p4666
    $region70: #{t_net_forward.1} parent=5 // pred_check_branch
      %4669 = sbr.rel (%p4667) target = $region72
    $region71: #{t_net_forward.1} parent=5 // pred_region
      %s4670 = ssub.s32 %s15, 2
      // Predicated region
      $region73: #{t_net_forward.1} parent=71 // pred_check
        %p4671 = pneg %p252
      $region74: #{t_net_forward.1} parent=71 // pred_check_branch
        %4673 = sbr.rel (%p4671) target = $region76
      $region75: #{t_net_forward.1} parent=71 // pred_region
        %p4674 = scmp.lt.s32.totalorder %s26, 1
        %s4675 = scalar_select %p4674, %s26, 1
        %s4676 = smul.addr %s4675, 2
        %s4677 = smul.addr %s4676, 8
        %s4678 = scalar_lea.vmem %s9, %s4677
      $region76: #{t_net_forward.1} parent=71 // pred_fallthru
        _
    $region72: #{t_net_forward.1} parent=5 // pred_fallthru
      _
  $region6: #{t_net_forward.1} parent=0 // loop_footer
    %s19 = sadd.s32 1, %s15
  $region7: #{t_net_forward.1} parent=0 // loop_footer_branch
    %14 = sbr.rel target = $region3
  $region8: #{t_net_forward.1} parent=0 // loop_exit
    _

</llo_original>
